<compile_context>
chip_gen: v7x
topology: tpu7x:2x2x1
jax: 0.10.0
libtpu: 0.0.40
codegen_flags: <defaults>
</compile_context>

<pallas_src>
import functools

import jax
import jax.numpy as jnp
from jax.experimental import pallas as pl
from jax.experimental.pallas import tpu as pltpu

LN_EPS = 1e-5                                   # torch.nn.LayerNorm default
_DOT_PRECISION = jax.lax.Precision.HIGHEST      # full-f32 moment matmuls


def _segment_matrices(s_tokens, s_pad, d):
    """0/1 matrices mapping lane-dense (token*D) columns <-> token ids.

    gather : (s_tokens*d, s_pad)  -- x_flat @ gather sums each token's D lanes
    scatter: (s_pad, s_tokens*d)  -- t @ scatter broadcasts a per-token value to its D lanes
    Columns/rows >= s_tokens are all zero (padding keeps the matmul N/K dims >= 8).
    """
    sd = s_tokens * d
    row = jax.lax.broadcasted_iota(jnp.int32, (sd, s_pad), 0)
    col = jax.lax.broadcasted_iota(jnp.int32, (sd, s_pad), 1)
    lo = col * d
    gather = ((row >= lo) & (row < lo + d)).astype(jnp.float32)

    rowt = jax.lax.broadcasted_iota(jnp.int32, (s_pad, sd), 0)
    colt = jax.lax.broadcasted_iota(jnp.int32, (s_pad, sd), 1)
    lot = rowt * d
    scatter = ((colt >= lot) & (colt < lot + d)).astype(jnp.float32)
    return gather, scatter


def _layernorm_lane_dense(x_flat, gamma_row, beta_row, s_tokens, d):
    """LayerNorm over each token's D features on a lane-dense (TB, s_tokens*d) f32 tile."""
    s_pad = max(8, ((s_tokens + 7) // 8) * 8)
    gather, scatter = _segment_matrices(s_tokens, s_pad, d)
    inv_d = jnp.float32(1.0 / d)

    # Per-token first / second moments on the MXU (lane-dense inputs, exact f32).
    sums = jnp.dot(x_flat, gather, precision=_DOT_PRECISION,
                   preferred_element_type=jnp.float32)              # (TB, s_pad)
    sqs = jnp.dot(x_flat * x_flat, gather, precision=_DOT_PRECISION,
                  preferred_element_type=jnp.float32)               # (TB, s_pad)
    mean = sums * inv_d
    var = sqs * inv_d - mean * mean
    rstd = jax.lax.rsqrt(var + LN_EPS)                              # (TB, s_pad), EUP

    # Broadcast per-token scale / shift back to the lane-dense layout (0/1 matmul, exact).
    scale = jnp.dot(rstd, scatter, precision=_DOT_PRECISION,
                    preferred_element_type=jnp.float32)             # (TB, s_tokens*d)
    shift = jnp.dot(mean * rstd, scatter, precision=_DOT_PRECISION,
                    preferred_element_type=jnp.float32)             # (TB, s_tokens*d)
    y = x_flat * scale - shift                                      # == (x - mean) * rstd
    return y * gamma_row + beta_row                                 # lane-dense affine


def _global_mlp_kernel(vis_ref, aud_ref, gv_ref, bv_ref, ga_ref, ba_ref, o_ref,
                       *, sv, sa, d):
    sv_d = sv * d
    xv = vis_ref[...].astype(jnp.float32)            # (TB, Sv*D) lane-dense tile
    xa = aud_ref[...].astype(jnp.float32)            # (TB, Sa*D) lane-dense tile
    yv = _layernorm_lane_dense(xv, gv_ref[...].astype(jnp.float32),
                               bv_ref[...].astype(jnp.float32), sv, d)
    ya = _layernorm_lane_dense(xa, ga_ref[...].astype(jnp.float32),
                               ba_ref[...].astype(jnp.float32), sa, d)
    # Final flattened row layout = [vis token 0..Sv-1 | aud token 0..Sa-1], matching
    # torch.cat(dim=1).view(B, (Sv+Sa)*D).
    o_ref[:, :sv_d] = yv.astype(o_ref.dtype)
    o_ref[:, sv_d:] = ya.astype(o_ref.dtype)


def _choose_batch_tile(batch, row_bytes, target_bytes=2 << 20):
    """Largest batch tile keeping the per-step input tile around `target_bytes`."""
    if batch <= 8:
        return batch                              # full-dim block is always legal
    tb = min(batch, max(8, target_bytes // max(row_bytes, 1)))
    tb = max(8, (tb // 8) * 8)                    # (8, 128) rule on the sublane dim
    return min(tb, (batch // 8) * 8)              # never exceed the array extent


def global_mlp_forward(vis_selectors, aud_selectors,
                       vis_ln_w, vis_ln_b, aud_ln_w, aud_ln_b):
    """Fused GlobalMLP forward: two LayerNorms + concat + flatten in one pallas_call."""
    B, Sv, D = vis_selectors.shape
    Ba, Sa, Da = aud_selectors.shape
    assert Ba == B and Da == D, "vis/aud batch and embedding dims must match"
    sv_d, sa_d = Sv * D, Sa * D
    out_cols = sv_d + sa_d
    out_dtype = vis_selectors.dtype

    # Free contiguous reshapes: fold tokens into the lane dimension (no HBM copy).
    vis2 = vis_selectors.reshape(B, sv_d)
    aud2 = aud_selectors.reshape(B, sa_d)

    # Tile gamma/beta per token so the in-kernel affine is a plain lane-dense mul/add.
    f32 = jnp.float32
    gv = jnp.tile(vis_ln_w.astype(f32).reshape(1, D), (1, Sv))
    bv = jnp.tile(vis_ln_b.astype(f32).reshape(1, D), (1, Sv))
    ga = jnp.tile(aud_ln_w.astype(f32).reshape(1, D), (1, Sa))
    ba = jnp.tile(aud_ln_b.astype(f32).reshape(1, D), (1, Sa))

    itemsize = jnp.dtype(out_dtype).itemsize
    tb = _choose_batch_tile(B, out_cols * itemsize)
    grid = (pl.cdiv(B, tb),)

    out = pl.pallas_call(
        functools.partial(_global_mlp_kernel, sv=Sv, sa=Sa, d=D),
        out_shape=jax.ShapeDtypeStruct((B, out_cols), out_dtype),
        grid_spec=pltpu.PrefetchScalarGridSpec(
            num_scalar_prefetch=0,
            grid=grid,
            in_specs=[
                pl.BlockSpec((tb, sv_d), lambda i: (i, 0)),
                pl.BlockSpec((tb, sa_d), lambda i: (i, 0)),
                pl.BlockSpec((1, sv_d), lambda i: (0, 0)),
                pl.BlockSpec((1, sv_d), lambda i: (0, 0)),
                pl.BlockSpec((1, sa_d), lambda i: (0, 0)),
                pl.BlockSpec((1, sa_d), lambda i: (0, 0)),
            ],
            out_specs=pl.BlockSpec((tb, out_cols), lambda i: (i, 0)),
        ),
        compiler_params=pltpu.CompilerParams(
            # Batch tiles are independent -> megacore can shard them (v7x: 2 TCs).
            dimension_semantics=("parallel",),
        ),
    )(vis2, aud2, gv, bv, ga, ba)

    return out[:, None, :]                         # unsqueeze(1) -> (B, 1, (Sv+Sa)*D)


class GlobalMLPPallas:
    """JAX/Pallas re-implementation of GlobalMLP (inference mode)."""

    def __init__(self, tok_pdrop, embd_pdrop, resid_pdrop, attn_pdrop,
                 n_layer, n_head, n_embd):
        self.n_embd = n_embd
        # init_weights: LayerNorm weight <- 1.0, bias <- 0.0 (deterministic).
        self.vis_ln_w = jnp.ones((n_embd,), dtype=jnp.float32)
        self.vis_ln_b = jnp.zeros((n_embd,), dtype=jnp.float32)
        self.aud_ln_w = jnp.ones((n_embd,), dtype=jnp.float32)
        self.aud_ln_b = jnp.zeros((n_embd,), dtype=jnp.float32)
        # TODO(synk): training-mode Dropout2d/Dropout (pltpu.prng_*) not implemented; identity at inference.

    @functools.partial(jax.jit, static_argnums=0)
    def __call__(self, vis_selectors, aud_selectors):
        return global_mlp_forward(vis_selectors, aud_selectors,
                                  self.vis_ln_w, self.vis_ln_b,
                                  self.aud_ln_w, self.aud_ln_b)


def _reference_forward(vis, aud, gw_v, gb_v, gw_a, gb_a, eps=LN_EPS):
    """Pure-JAX reference (matches torch semantics) for correctness checking."""
    def ln(x, g, b):
        m = jnp.mean(x, axis=-1, keepdims=True)
        v = jnp.mean((x - m) ** 2, axis=-1, keepdims=True)
        return (x - m) * jax.lax.rsqrt(v + eps) * g + b
    B, Sv, D = vis.shape
    _, Sa, _ = aud.shape
    x = jnp.concatenate([ln(vis, gw_v, gb_v), ln(aud, gw_a, gb_a)], axis=1)
    return x.reshape(B, (Sv + Sa) * D)[:, None, :]


if __name__ == "__main__":
    # ---- Test 1: module as constructed (identity affine), B=2, Sv=Sa=8, D=32 ----
    B, Sv, Sa, D = 2, 8, 8, 32
    key = jax.random.PRNGKey(0)
    kv, ka, kg1, kb1, kg2, kb2 = jax.random.split(key, 6)
    vis = jax.random.normal(kv, (B, Sv, D), dtype=jnp.float32)
    aud = jax.random.normal(ka, (B, Sa, D), dtype=jnp.float32)

    model = GlobalMLPPallas(tok_pdrop=0.1, embd_pdrop=0.1, resid_pdrop=0.1,
                            attn_pdrop=0.1, n_layer=2, n_head=4, n_embd=D)
    out = jax.block_until_ready(model(vis, aud))
    assert out.shape == (B, 1, (Sv + Sa) * D), out.shape
    ref = _reference_forward(vis, aud, model.vis_ln_w, model.vis_ln_b,
                             model.aud_ln_w, model.aud_ln_b)
    assert jnp.allclose(out, ref, atol=1e-5, rtol=1e-5), "mismatch vs reference (test 1)"

    # ---- Test 2: trained-style (non-identity) affine + asymmetric token counts ----
    B2, Sv2, Sa2 = 4, 4, 12
    k1, k2 = jax.random.split(kv)
    vis_b = jax.random.normal(k1, (B2, Sv2, D), dtype=jnp.float32)
    aud_b = jax.random.normal(k2, (B2, Sa2, D), dtype=jnp.float32)
    gw_v = 1.0 + 0.1 * jax.random.normal(kg1, (D,), dtype=jnp.float32)
    gb_v = 0.1 * jax.random.normal(kb1, (D,), dtype=jnp.float32)
    gw_a = 1.0 + 0.1 * jax.random.normal(kg2, (D,), dtype=jnp.float32)
    gb_a = 0.1 * jax.random.normal(kb2, (D,), dtype=jnp.float32)
    out2 = jax.block_until_ready(
        jax.jit(global_mlp_forward)(vis_b, aud_b, gw_v, gb_v, gw_a, gb_a))
    assert out2.shape == (B2, 1, (Sv2 + Sa2) * D), out2.shape
    ref2 = _reference_forward(vis_b, aud_b, gw_v, gb_v, gw_a, gb_a)
    assert jnp.allclose(out2, ref2, atol=1e-5, rtol=1e-5), "mismatch vs reference (test 2)"

    print("KERNEL_OK")
</pallas_src>

<mosaic_0001>
module attributes {stable_mosaic.version = 11 : i64} {
  func.func @_global_mlp_kernel(%arg0: i32, %arg1: memref<2x256xf32, #tpu.memory_space<vmem>>, %arg2: memref<2x256xf32, #tpu.memory_space<vmem>>, %arg3: memref<1x256xf32, #tpu.memory_space<vmem>>, %arg4: memref<1x256xf32, #tpu.memory_space<vmem>>, %arg5: memref<1x256xf32, #tpu.memory_space<vmem>>, %arg6: memref<1x256xf32, #tpu.memory_space<vmem>>, %arg7: memref<2x512xf32, #tpu.memory_space<vmem>>) attributes {dimension_semantics = [#tpu.dimension_semantics<parallel>], iteration_bounds = array<i64: 1>, scalar_prefetch = 0 : i64, scratch_operands = 0 : i64, tpu.core_type = #tpu.core_type<tc>, window_params = [{transform_indices = @transform_0, window_bounds = array<i64: 2, 256>}, {transform_indices = @transform_1, window_bounds = array<i64: 2, 256>}, {pipeline_mode = #tpu.pipeline_mode<synchronous>, transform_indices = @transform_2, window_bounds = array<i64: 1, 256>}, {pipeline_mode = #tpu.pipeline_mode<synchronous>, transform_indices = @transform_3, window_bounds = array<i64: 1, 256>}, {pipeline_mode = #tpu.pipeline_mode<synchronous>, transform_indices = @transform_4, window_bounds = array<i64: 1, 256>}, {pipeline_mode = #tpu.pipeline_mode<synchronous>, transform_indices = @transform_5, window_bounds = array<i64: 1, 256>}, {transform_indices = @transform_6, window_bounds = array<i64: 2, 512>}]} {
    %c0 = arith.constant 0 : index
    %c0_0 = arith.constant 0 : index
    %0 = vector.load %arg1[%c0, %c0_0] : memref<2x256xf32, #tpu.memory_space<vmem>>, vector<2x256xf32>
    %c0_1 = arith.constant 0 : index
    %c0_2 = arith.constant 0 : index
    %1 = vector.load %arg2[%c0_1, %c0_2] : memref<2x256xf32, #tpu.memory_space<vmem>>, vector<2x256xf32>
    %c0_3 = arith.constant 0 : index
    %c0_4 = arith.constant 0 : index
    %2 = vector.load %arg3[%c0_3, %c0_4] : memref<1x256xf32, #tpu.memory_space<vmem>>, vector<1x256xf32>
    %c0_5 = arith.constant 0 : index
    %c0_6 = arith.constant 0 : index
    %3 = vector.load %arg4[%c0_5, %c0_6] : memref<1x256xf32, #tpu.memory_space<vmem>>, vector<1x256xf32>
    %4 = tpu.iota {dimensions = array<i32: 0>} : vector<256x8xi32>
    %5 = tpu.iota {dimensions = array<i32: 1>} : vector<256x8xi32>
    %c32_i32 = arith.constant 32 : i32
    %6 = vector.broadcast %c32_i32 : i32 to vector<256x8xi32>
    %7 = arith.muli %5, %6 : vector<256x8xi32>
    %8 = arith.cmpi sge, %4, %7 : vector<256x8xi32>
    %c32_i32_7 = arith.constant 32 : i32
    %9 = vector.broadcast %c32_i32_7 : i32 to vector<256x8xi32>
    %10 = arith.addi %7, %9 : vector<256x8xi32>
    %11 = arith.cmpi slt, %4, %10 : vector<256x8xi32>
    %12 = arith.andi %8, %11 : vector<256x8xi1>
    %13 = arith.extui %12 : vector<256x8xi1> to vector<256x8xi32>
    %14 = arith.sitofp %13 : vector<256x8xi32> to vector<256x8xf32>
    %15 = tpu.iota {dimensions = array<i32: 0>} : vector<8x256xi32>
    %16 = tpu.iota {dimensions = array<i32: 1>} : vector<8x256xi32>
    %c32_i32_8 = arith.constant 32 : i32
    %17 = vector.broadcast %c32_i32_8 : i32 to vector<8x256xi32>
    %18 = arith.muli %15, %17 : vector<8x256xi32>
    %19 = arith.cmpi sge, %16, %18 : vector<8x256xi32>
    %c32_i32_9 = arith.constant 32 : i32
    %20 = vector.broadcast %c32_i32_9 : i32 to vector<8x256xi32>
    %21 = arith.addi %18, %20 : vector<8x256xi32>
    %22 = arith.cmpi slt, %16, %21 : vector<8x256xi32>
    %23 = arith.andi %19, %22 : vector<8x256xi1>
    %24 = arith.extui %23 : vector<8x256xi1> to vector<8x256xi32>
    %25 = arith.sitofp %24 : vector<8x256xi32> to vector<8x256xf32>
    %cst = arith.constant dense<0.000000e+00> : vector<2x8xf32>
    %26 = tpu.matmul %0, %14, %cst {dimension_numbers = #tpu.dot_dimension_numbers<[1], [0], [0], [1], [0, 0, 1, 1], [], []>, precision = #tpu.contract_precision<fp32>} : vector<2x256xf32>, vector<256x8xf32>, vector<2x8xf32> -> vector<2x8xf32>
    %27 = arith.mulf %0, %0 : vector<2x256xf32>
    %cst_10 = arith.constant dense<0.000000e+00> : vector<2x8xf32>
    %28 = tpu.matmul %27, %14, %cst_10 {dimension_numbers = #tpu.dot_dimension_numbers<[1], [0], [0], [1], [0, 0, 1, 1], [], []>, precision = #tpu.contract_precision<fp32>} : vector<2x256xf32>, vector<256x8xf32>, vector<2x8xf32> -> vector<2x8xf32>
    %cst_11 = arith.constant 3.125000e-02 : f32
    %29 = vector.broadcast %cst_11 : f32 to vector<2x8xf32>
    %30 = arith.mulf %26, %29 : vector<2x8xf32>
    %cst_12 = arith.constant 3.125000e-02 : f32
    %31 = vector.broadcast %cst_12 : f32 to vector<2x8xf32>
    %32 = arith.mulf %28, %31 : vector<2x8xf32>
    %33 = arith.mulf %30, %30 : vector<2x8xf32>
    %34 = arith.subf %32, %33 : vector<2x8xf32>
    %cst_13 = arith.constant 9.99999974E-6 : f32
    %35 = vector.broadcast %cst_13 : f32 to vector<2x8xf32>
    %36 = arith.addf %34, %35 : vector<2x8xf32>
    %37 = math.rsqrt %36 : vector<2x8xf32>
    %cst_14 = arith.constant dense<0.000000e+00> : vector<2x256xf32>
    %38 = tpu.matmul %37, %25, %cst_14 {dimension_numbers = #tpu.dot_dimension_numbers<[1], [0], [0], [1], [0, 0, 1, 1], [], []>, precision = #tpu.contract_precision<fp32>} : vector<2x8xf32>, vector<8x256xf32>, vector<2x256xf32> -> vector<2x256xf32>
    %39 = arith.mulf %30, %37 : vector<2x8xf32>
    %cst_15 = arith.constant dense<0.000000e+00> : vector<2x256xf32>
    %40 = tpu.matmul %39, %25, %cst_15 {dimension_numbers = #tpu.dot_dimension_numbers<[1], [0], [0], [1], [0, 0, 1, 1], [], []>, precision = #tpu.contract_precision<fp32>} : vector<2x8xf32>, vector<8x256xf32>, vector<2x256xf32> -> vector<2x256xf32>
    %41 = arith.mulf %0, %38 : vector<2x256xf32>
    %42 = arith.subf %41, %40 : vector<2x256xf32>
    %43 = vector.broadcast %2 : vector<1x256xf32> to vector<2x256xf32>
    %44 = arith.mulf %42, %43 : vector<2x256xf32>
    %45 = vector.broadcast %3 : vector<1x256xf32> to vector<2x256xf32>
    %46 = arith.addf %44, %45 : vector<2x256xf32>
    %c0_16 = arith.constant 0 : index
    %c0_17 = arith.constant 0 : index
    %47 = vector.load %arg5[%c0_16, %c0_17] : memref<1x256xf32, #tpu.memory_space<vmem>>, vector<1x256xf32>
    %c0_18 = arith.constant 0 : index
    %c0_19 = arith.constant 0 : index
    %48 = vector.load %arg6[%c0_18, %c0_19] : memref<1x256xf32, #tpu.memory_space<vmem>>, vector<1x256xf32>
    %49 = tpu.iota {dimensions = array<i32: 0>} : vector<256x8xi32>
    %50 = tpu.iota {dimensions = array<i32: 1>} : vector<256x8xi32>
    %c32_i32_20 = arith.constant 32 : i32
    %51 = vector.broadcast %c32_i32_20 : i32 to vector<256x8xi32>
    %52 = arith.muli %50, %51 : vector<256x8xi32>
    %53 = arith.cmpi sge, %49, %52 : vector<256x8xi32>
    %c32_i32_21 = arith.constant 32 : i32
    %54 = vector.broadcast %c32_i32_21 : i32 to vector<256x8xi32>
    %55 = arith.addi %52, %54 : vector<256x8xi32>
    %56 = arith.cmpi slt, %49, %55 : vector<256x8xi32>
    %57 = arith.andi %53, %56 : vector<256x8xi1>
    %58 = arith.extui %57 : vector<256x8xi1> to vector<256x8xi32>
    %59 = arith.sitofp %58 : vector<256x8xi32> to vector<256x8xf32>
    %60 = tpu.iota {dimensions = array<i32: 0>} : vector<8x256xi32>
    %61 = tpu.iota {dimensions = array<i32: 1>} : vector<8x256xi32>
    %c32_i32_22 = arith.constant 32 : i32
    %62 = vector.broadcast %c32_i32_22 : i32 to vector<8x256xi32>
    %63 = arith.muli %60, %62 : vector<8x256xi32>
    %64 = arith.cmpi sge, %61, %63 : vector<8x256xi32>
    %c32_i32_23 = arith.constant 32 : i32
    %65 = vector.broadcast %c32_i32_23 : i32 to vector<8x256xi32>
    %66 = arith.addi %63, %65 : vector<8x256xi32>
    %67 = arith.cmpi slt, %61, %66 : vector<8x256xi32>
    %68 = arith.andi %64, %67 : vector<8x256xi1>
    %69 = arith.extui %68 : vector<8x256xi1> to vector<8x256xi32>
    %70 = arith.sitofp %69 : vector<8x256xi32> to vector<8x256xf32>
    %cst_24 = arith.constant dense<0.000000e+00> : vector<2x8xf32>
    %71 = tpu.matmul %1, %59, %cst_24 {dimension_numbers = #tpu.dot_dimension_numbers<[1], [0], [0], [1], [0, 0, 1, 1], [], []>, precision = #tpu.contract_precision<fp32>} : vector<2x256xf32>, vector<256x8xf32>, vector<2x8xf32> -> vector<2x8xf32>
    %72 = arith.mulf %1, %1 : vector<2x256xf32>
    %cst_25 = arith.constant dense<0.000000e+00> : vector<2x8xf32>
    %73 = tpu.matmul %72, %59, %cst_25 {dimension_numbers = #tpu.dot_dimension_numbers<[1], [0], [0], [1], [0, 0, 1, 1], [], []>, precision = #tpu.contract_precision<fp32>} : vector<2x256xf32>, vector<256x8xf32>, vector<2x8xf32> -> vector<2x8xf32>
    %cst_26 = arith.constant 3.125000e-02 : f32
    %74 = vector.broadcast %cst_26 : f32 to vector<2x8xf32>
    %75 = arith.mulf %71, %74 : vector<2x8xf32>
    %cst_27 = arith.constant 3.125000e-02 : f32
    %76 = vector.broadcast %cst_27 : f32 to vector<2x8xf32>
    %77 = arith.mulf %73, %76 : vector<2x8xf32>
    %78 = arith.mulf %75, %75 : vector<2x8xf32>
    %79 = arith.subf %77, %78 : vector<2x8xf32>
    %cst_28 = arith.constant 9.99999974E-6 : f32
    %80 = vector.broadcast %cst_28 : f32 to vector<2x8xf32>
    %81 = arith.addf %79, %80 : vector<2x8xf32>
    %82 = math.rsqrt %81 : vector<2x8xf32>
    %cst_29 = arith.constant dense<0.000000e+00> : vector<2x256xf32>
    %83 = tpu.matmul %82, %70, %cst_29 {dimension_numbers = #tpu.dot_dimension_numbers<[1], [0], [0], [1], [0, 0, 1, 1], [], []>, precision = #tpu.contract_precision<fp32>} : vector<2x8xf32>, vector<8x256xf32>, vector<2x256xf32> -> vector<2x256xf32>
    %84 = arith.mulf %75, %82 : vector<2x8xf32>
    %cst_30 = arith.constant dense<0.000000e+00> : vector<2x256xf32>
    %85 = tpu.matmul %84, %70, %cst_30 {dimension_numbers = #tpu.dot_dimension_numbers<[1], [0], [0], [1], [0, 0, 1, 1], [], []>, precision = #tpu.contract_precision<fp32>} : vector<2x8xf32>, vector<8x256xf32>, vector<2x256xf32> -> vector<2x256xf32>
    %86 = arith.mulf %1, %83 : vector<2x256xf32>
    %87 = arith.subf %86, %85 : vector<2x256xf32>
    %88 = vector.broadcast %47 : vector<1x256xf32> to vector<2x256xf32>
    %89 = arith.mulf %87, %88 : vector<2x256xf32>
    %90 = vector.broadcast %48 : vector<1x256xf32> to vector<2x256xf32>
    %91 = arith.addf %89, %90 : vector<2x256xf32>
    %c0_31 = arith.constant 0 : index
    %c0_32 = arith.constant 0 : index
    %92 = vector.load %arg7[%c0_31, %c0_32] : memref<2x512xf32, #tpu.memory_space<vmem>>, vector<2x256xf32>
    tpu.vector_store %arg7[%c0_31, %c0_32], %46 {strides = array<i32>} : memref<2x512xf32, #tpu.memory_space<vmem>>, vector<2x256xf32>,
    %c0_33 = arith.constant 0 : index
    %c256 = arith.constant 256 : index
    %93 = vector.load %arg7[%c0_33, %c256] : memref<2x512xf32, #tpu.memory_space<vmem>>, vector<2x256xf32>
    tpu.vector_store %arg7[%c0_33, %c256], %91 {strides = array<i32>} : memref<2x512xf32, #tpu.memory_space<vmem>>, vector<2x256xf32>,
    return
  }
  func.func @transform_0(%arg0: i32) -> (i32, i32) {
    %c0_i32 = arith.constant 0 : i32
    %c0_i32_0 = arith.constant 0 : i32
    return %arg0, %c0_i32 : i32, i32
  }
  func.func @transform_1(%arg0: i32) -> (i32, i32) {
    %c0_i32 = arith.constant 0 : i32
    %c0_i32_0 = arith.constant 0 : i32
    return %arg0, %c0_i32 : i32, i32
  }
  func.func @transform_2(%arg0: i32) -> (i32, i32) {
    %c0_i32 = arith.constant 0 : i32
    %c0_i32_0 = arith.constant 0 : i32
    %c0_i32_1 = arith.constant 0 : i32
    return %c0_i32, %c0_i32_0 : i32, i32
  }
  func.func @transform_3(%arg0: i32) -> (i32, i32) {
    %c0_i32 = arith.constant 0 : i32
    %c0_i32_0 = arith.constant 0 : i32
    %c0_i32_1 = arith.constant 0 : i32
    return %c0_i32, %c0_i32_0 : i32, i32
  }
  func.func @transform_4(%arg0: i32) -> (i32, i32) {
    %c0_i32 = arith.constant 0 : i32
    %c0_i32_0 = arith.constant 0 : i32
    %c0_i32_1 = arith.constant 0 : i32
    return %c0_i32, %c0_i32_0 : i32, i32
  }
  func.func @transform_5(%arg0: i32) -> (i32, i32) {
    %c0_i32 = arith.constant 0 : i32
    %c0_i32_0 = arith.constant 0 : i32
    %c0_i32_1 = arith.constant 0 : i32
    return %c0_i32, %c0_i32_0 : i32, i32
  }
  func.func @transform_6(%arg0: i32) -> (i32, i32) {
    %c0_i32 = arith.constant 0 : i32
    %c0_i32_0 = arith.constant 0 : i32
    return %arg0, %c0_i32 : i32, i32
  }
}

</mosaic_0001>

<llo_original>
// kernel: a_call__.1
$region0: #{a_call__.1}
  #allocation0 [shape = 'u32[]', space=smem, size = 0x4, offset = 0x4, fixed_abs, tag = 'smem constant byte address 0x4 - core index']
  #allocation1 [shape = 'u32[144,128]{1,0:T(1,128)}', space=vmem, size = 0x12000, scoped, tag = 'internal scratch']
  %s0 = inlined_call_operand.vmem [shape: f32[2,256], index: 0, kind: input, shape index: {}]
  %s1 = inlined_call_operand.vmem [shape: f32[2,256], index: 1, kind: input, shape index: {}]
  %s2 = inlined_call_operand.vmem [shape: f32[1,256], index: 2, kind: input, shape index: {}, may-alias: {2,4}]
  %s3 = inlined_call_operand.vmem [shape: f32[1,256], index: 3, kind: input, shape index: {}, may-alias: {3,5}]
  %s4 = inlined_call_operand.vmem [shape: f32[1,256], index: 4, kind: input, shape index: {}, may-alias: {2,4}]
  %s5 = inlined_call_operand.vmem [shape: f32[1,256], index: 5, kind: input, shape index: {}, may-alias: {3,5}]
  %s6 = inlined_call_operand.vmem [shape: f32[2,512], index: 6, kind: output, shape index: {}]
  %s7 = sld [smem:[#allocation0]]
  $region34: #{a_call__.1} parent=0
    _
  %s9 = ssub.s32 1, %s7
  %s10 = scalar_select 0, %s9, %s7
  // Predicated region
  $region2: #{a_call__.1} parent=0 // pred_check
    _
  $region3: #{a_call__.1} parent=0 // pred_check_branch
    %12 = sbr.rel (0) target = $region5
  $region4: #{a_call__.1} parent=0 // pred_region
    _
  $region5: #{a_call__.1} parent=0 // pred_fallthru
    _
  // Predicated region
  $region6: #{a_call__.1} parent=0 // pred_check
    _
  $region7: #{a_call__.1} parent=0 // pred_check_branch
    %14 = sbr.rel (0) target = $region9
  $region8: #{a_call__.1} parent=0 // pred_region
    _
  $region9: #{a_call__.1} parent=0 // pred_fallthru
    _
  // Predicated region
  $region10: #{a_call__.1} parent=0 // pred_check
    _
  $region11: #{a_call__.1} parent=0 // pred_check_branch
    %16 = sbr.rel (0) target = $region13
  $region12: #{a_call__.1} parent=0 // pred_region
    _
  $region13: #{a_call__.1} parent=0 // pred_fallthru
    _
  // Predicated region
  $region14: #{a_call__.1} parent=0 // pred_check
    _
  $region15: #{a_call__.1} parent=0 // pred_check_branch
    %18 = sbr.rel (0) target = $region17
  $region16: #{a_call__.1} parent=0 // pred_region
    _
  $region17: #{a_call__.1} parent=0 // pred_fallthru
    _
  // Predicated region
  $region18: #{a_call__.1} parent=0 // pred_check
    _
  $region19: #{a_call__.1} parent=0 // pred_check_branch
    %20 = sbr.rel (0) target = $region21
  $region20: #{a_call__.1} parent=0 // pred_region
    _
  $region21: #{a_call__.1} parent=0 // pred_fallthru
    _
  // Predicated region
  $region22: #{a_call__.1} parent=0 // pred_check
    _
  $region23: #{a_call__.1} parent=0 // pred_check_branch
    %22 = sbr.rel (0) target = $region25
  $region24: #{a_call__.1} parent=0 // pred_region
    _
  $region25: #{a_call__.1} parent=0 // pred_fallthru
    _
  %v23 = vld [vmem:[%s0] sm:$0xf]
  %v24 = vld [vmem:[%s1] sm:$0xf]
  %v25 = vld [vmem:[%s2] sm:$0x3]
  %v26 = vld [vmem:[%s3] sm:$0x3]
  %v27 = vlaneseq
  %v28 = vshrl.u32 %v27, 7
  %v29 = vadd.s32 %v28, 8
  %v30 = vadd.s32 %v28, 16
  %v31 = vadd.s32 %v28, 24
  %v32 = vadd.s32 %v28, 32
  %v33 = vadd.s32 %v28, 40
  %v34 = vadd.s32 %v28, 48
  %v35 = vadd.s32 %v28, 56
  %v36 = vadd.s32 %v28, 64
  %v37 = vadd.s32 %v28, 72
  %v38 = vadd.s32 %v28, 80
  %v39 = vadd.s32 %v28, 88
  %v40 = vadd.s32 %v28, 96
  %v41 = vadd.s32 %v28, 104
  %v42 = vadd.s32 %v28, 112
  %v43 = vadd.s32 %v28, 120
  %v44 = vadd.s32 %v28, 128
  %v45 = vadd.s32 %v28, 136
  %v46 = vadd.s32 %v28, 144
  %v47 = vadd.s32 %v28, 152
  %v48 = vadd.s32 %v28, 160
  %v49 = vadd.s32 %v28, 168
  %v50 = vadd.s32 %v28, 176
  %v51 = vadd.s32 %v28, 184
  %v52 = vadd.s32 %v28, 192
  %v53 = vadd.s32 %v28, 200
  %v54 = vadd.s32 %v28, 208
  %v55 = vadd.s32 %v28, 216
  %v56 = vadd.s32 %v28, 224
  %v57 = vadd.s32 %v28, 232
  %v58 = vadd.s32 %v28, 240
  %v59 = vadd.s32 %v28, 248
  %v60 = vlaneseq
  %v61 = vand.u32 %v60, 127
  %v62 = vmul.u32 %v61, 32
  %vm63 = vcmp.ge.s32.totalorder %v28, %v62
  %vm64 = vcmp.ge.s32.totalorder %v29, %v62
  %vm65 = vcmp.ge.s32.totalorder %v30, %v62
  %vm66 = vcmp.ge.s32.totalorder %v31, %v62
  %vm67 = vcmp.ge.s32.totalorder %v32, %v62
  %vm68 = vcmp.ge.s32.totalorder %v33, %v62
  %vm69 = vcmp.ge.s32.totalorder %v34, %v62
  %vm70 = vcmp.ge.s32.totalorder %v35, %v62
  %vm71 = vcmp.ge.s32.totalorder %v36, %v62
  %vm72 = vcmp.ge.s32.totalorder %v37, %v62
  %vm73 = vcmp.ge.s32.totalorder %v38, %v62
  %vm74 = vcmp.ge.s32.totalorder %v39, %v62
  %vm75 = vcmp.ge.s32.totalorder %v40, %v62
  %vm76 = vcmp.ge.s32.totalorder %v41, %v62
  %vm77 = vcmp.ge.s32.totalorder %v42, %v62
  %vm78 = vcmp.ge.s32.totalorder %v43, %v62
  %vm79 = vcmp.ge.s32.totalorder %v44, %v62
  %vm80 = vcmp.ge.s32.totalorder %v45, %v62
  %vm81 = vcmp.ge.s32.totalorder %v46, %v62
  %vm82 = vcmp.ge.s32.totalorder %v47, %v62
  %vm83 = vcmp.ge.s32.totalorder %v48, %v62
  %vm84 = vcmp.ge.s32.totalorder %v49, %v62
  %vm85 = vcmp.ge.s32.totalorder %v50, %v62
  %vm86 = vcmp.ge.s32.totalorder %v51, %v62
  %vm87 = vcmp.ge.s32.totalorder %v52, %v62
  %vm88 = vcmp.ge.s32.totalorder %v53, %v62
  %vm89 = vcmp.ge.s32.totalorder %v54, %v62
  %vm90 = vcmp.ge.s32.totalorder %v55, %v62
  %vm91 = vcmp.ge.s32.totalorder %v56, %v62
  %vm92 = vcmp.ge.s32.totalorder %v57, %v62
  %vm93 = vcmp.ge.s32.totalorder %v58, %v62
  %vm94 = vcmp.ge.s32.totalorder %v59, %v62
  %v95 = vadd.s32 %v62, 32
  %vm96 = vcmp.lt.s32.totalorder %v28, %v95
  %vm97 = vcmp.lt.s32.totalorder %v29, %v95
  %vm98 = vcmp.lt.s32.totalorder %v30, %v95
  %vm99 = vcmp.lt.s32.totalorder %v31, %v95
  %vm100 = vcmp.lt.s32.totalorder %v32, %v95
  %vm101 = vcmp.lt.s32.totalorder %v33, %v95
  %vm102 = vcmp.lt.s32.totalorder %v34, %v95
  %vm103 = vcmp.lt.s32.totalorder %v35, %v95
  %vm104 = vcmp.lt.s32.totalorder %v36, %v95
  %vm105 = vcmp.lt.s32.totalorder %v37, %v95
  %vm106 = vcmp.lt.s32.totalorder %v38, %v95
  %vm107 = vcmp.lt.s32.totalorder %v39, %v95
  %vm108 = vcmp.lt.s32.totalorder %v40, %v95
  %vm109 = vcmp.lt.s32.totalorder %v41, %v95
  %vm110 = vcmp.lt.s32.totalorder %v42, %v95
  %vm111 = vcmp.lt.s32.totalorder %v43, %v95
  %vm112 = vcmp.lt.s32.totalorder %v44, %v95
  %vm113 = vcmp.lt.s32.totalorder %v45, %v95
  %vm114 = vcmp.lt.s32.totalorder %v46, %v95
  %vm115 = vcmp.lt.s32.totalorder %v47, %v95
  %vm116 = vcmp.lt.s32.totalorder %v48, %v95
  %vm117 = vcmp.lt.s32.totalorder %v49, %v95
  %vm118 = vcmp.lt.s32.totalorder %v50, %v95
  %vm119 = vcmp.lt.s32.totalorder %v51, %v95
  %vm120 = vcmp.lt.s32.totalorder %v52, %v95
  %vm121 = vcmp.lt.s32.totalorder %v53, %v95
  %vm122 = vcmp.lt.s32.totalorder %v54, %v95
  %vm123 = vcmp.lt.s32.totalorder %v55, %v95
  %vm124 = vcmp.lt.s32.totalorder %v56, %v95
  %vm125 = vcmp.lt.s32.totalorder %v57, %v95
  %vm126 = vcmp.lt.s32.totalorder %v58, %v95
  %vm127 = vcmp.lt.s32.totalorder %v59, %v95
  %vm128 = vmand %vm63, %vm96
  %vm129 = vmand %vm64, %vm97
  %vm130 = vmand %vm65, %vm98
  %vm131 = vmand %vm66, %vm99
  %vm132 = vmand %vm67, %vm100
  %vm133 = vmand %vm68, %vm101
  %vm134 = vmand %vm69, %vm102
  %vm135 = vmand %vm70, %vm103
  %vm136 = vmand %vm71, %vm104
  %vm137 = vmand %vm72, %vm105
  %vm138 = vmand %vm73, %vm106
  %vm139 = vmand %vm74, %vm107
  %vm140 = vmand %vm75, %vm108
  %vm141 = vmand %vm76, %vm109
  %vm142 = vmand %vm77, %vm110
  %vm143 = vmand %vm78, %vm111
  %vm144 = vmand %vm79, %vm112
  %vm145 = vmand %vm80, %vm113
  %vm146 = vmand %vm81, %vm114
  %vm147 = vmand %vm82, %vm115
  %vm148 = vmand %vm83, %vm116
  %vm149 = vmand %vm84, %vm117
  %vm150 = vmand %vm85, %vm118
  %vm151 = vmand %vm86, %vm119
  %vm152 = vmand %vm87, %vm120
  %vm153 = vmand %vm88, %vm121
  %vm154 = vmand %vm89, %vm122
  %vm155 = vmand %vm90, %vm123
  %vm156 = vmand %vm91, %vm124
  %vm157 = vmand %vm92, %vm125
  %vm158 = vmand %vm93, %vm126
  %vm159 = vmand %vm94, %vm127
  %v160 = vsel %vm128, 1, 0
  %v161 = vsel %vm129, 1, 0
  %v162 = vsel %vm130, 1, 0
  %v163 = vsel %vm131, 1, 0
  %v164 = vsel %vm132, 1, 0
  %v165 = vsel %vm133, 1, 0
  %v166 = vsel %vm134, 1, 0
  %v167 = vsel %vm135, 1, 0
  %v168 = vsel %vm136, 1, 0
  %v169 = vsel %vm137, 1, 0
  %v170 = vsel %vm138, 1, 0
  %v171 = vsel %vm139, 1, 0
  %v172 = vsel %vm140, 1, 0
  %v173 = vsel %vm141, 1, 0
  %v174 = vsel %vm142, 1, 0
  %v175 = vsel %vm143, 1, 0
  %v176 = vsel %vm144, 1, 0
  %v177 = vsel %vm145, 1, 0
  %v178 = vsel %vm146, 1, 0
  %v179 = vsel %vm147, 1, 0
  %v180 = vsel %vm148, 1, 0
  %v181 = vsel %vm149, 1, 0
  %v182 = vsel %vm150, 1, 0
  %v183 = vsel %vm151, 1, 0
  %v184 = vsel %vm152, 1, 0
  %v185 = vsel %vm153, 1, 0
  %v186 = vsel %vm154, 1, 0
  %v187 = vsel %vm155, 1, 0
  %v188 = vsel %vm156, 1, 0
  %v189 = vsel %vm157, 1, 0
  %v190 = vsel %vm158, 1, 0
  %v191 = vsel %vm159, 1, 0
  %v192 = vcvt.s32.f32 %v160
  %v193 = vcvt.s32.f32 %v161
  %v194 = vcvt.s32.f32 %v162
  %v195 = vcvt.s32.f32 %v163
  %v196 = vcvt.s32.f32 %v164
  %v197 = vcvt.s32.f32 %v165
  %v198 = vcvt.s32.f32 %v166
  %v199 = vcvt.s32.f32 %v167
  %v200 = vcvt.s32.f32 %v168
  %v201 = vcvt.s32.f32 %v169
  %v202 = vcvt.s32.f32 %v170
  %v203 = vcvt.s32.f32 %v171
  %v204 = vcvt.s32.f32 %v172
  %v205 = vcvt.s32.f32 %v173
  %v206 = vcvt.s32.f32 %v174
  %v207 = vcvt.s32.f32 %v175
  %v208 = vcvt.s32.f32 %v176
  %v209 = vcvt.s32.f32 %v177
  %v210 = vcvt.s32.f32 %v178
  %v211 = vcvt.s32.f32 %v179
  %v212 = vcvt.s32.f32 %v180
  %v213 = vcvt.s32.f32 %v181
  %v214 = vcvt.s32.f32 %v182
  %v215 = vcvt.s32.f32 %v183
  %v216 = vcvt.s32.f32 %v184
  %v217 = vcvt.s32.f32 %v185
  %v218 = vcvt.s32.f32 %v186
  %v219 = vcvt.s32.f32 %v187
  %v220 = vcvt.s32.f32 %v188
  %v221 = vcvt.s32.f32 %v189
  %v222 = vcvt.s32.f32 %v190
  %v223 = vcvt.s32.f32 %v191
  %v224 = vadd.s32 %v61, 128
  %v225 = vmul.u32 %v28, 32
  %vm226 = vcmp.ge.s32.totalorder %v61, %v225
  %vm227 = vcmp.ge.s32.totalorder %v224, %v225
  %v228 = vadd.s32 %v225, 32
  %vm229 = vcmp.lt.s32.totalorder %v61, %v228
  %vm230 = vcmp.lt.s32.totalorder %v224, %v228
  %vm231 = vmand %vm226, %vm229
  %vm232 = vmand %vm227, %vm230
  %v233 = vsel %vm231, 1, 0
  %v234 = vsel %vm232, 1, 0
  %v235 = vcvt.s32.f32 %v233
  %v236 = vcvt.s32.f32 %v234
  %v239 = vunpack.c.l.s4 1983009808
  %v240 = vunpack.c.0.s8 %v239
  %v241 = vlaneseq
  %v242 = vshrl.u32 %v241, 7
  %v243 = vsub.s32 %v240, %v242
  %v244 = vrot.slane %v23, %v243
  %v245 = vcombine.high %v244, %v244
  %248 = vmatprep.subr.mxu0 0.0
  %v249 = vand.u32 %v192, 4294901760
  %250 = vmatpush1.msra.mxu0 %v249
  %251 = vmatprep.subr.mxu0 0.0
  %v252 = vand.u32 %v193, 4294901760
  %253 = vmatpush1.msra.mxu0 %v252
  %254 = vmatprep.subr.mxu0 0.0
  %v255 = vand.u32 %v194, 4294901760
  %256 = vmatpush1.msra.mxu0 %v255
  %257 = vmatprep.subr.mxu0 0.0
  %v258 = vand.u32 %v195, 4294901760
  %259 = vmatpush1.msra.mxu0 %v258
  %260 = vmatprep.subr.mxu0 0.0
  %v261 = vand.u32 %v196, 4294901760
  %262 = vmatpush1.msra.mxu0 %v261
  %263 = vmatprep.subr.mxu0 0.0
  %v264 = vand.u32 %v197, 4294901760
  %265 = vmatpush1.msra.mxu0 %v264
  %266 = vmatprep.subr.mxu0 0.0
  %v267 = vand.u32 %v198, 4294901760
  %268 = vmatpush1.msra.mxu0 %v267
  %269 = vmatprep.subr.mxu0 0.0
  %v270 = vand.u32 %v199, 4294901760
  %271 = vmatpush1.msra.mxu0 %v270
  %272 = vmatprep.subr.mxu0 0.0
  %v273 = vand.u32 %v200, 4294901760
  %274 = vmatpush1.msra.mxu0 %v273
  %275 = vmatprep.subr.mxu0 0.0
  %v276 = vand.u32 %v201, 4294901760
  %277 = vmatpush1.msra.mxu0 %v276
  %278 = vmatprep.subr.mxu0 0.0
  %v279 = vand.u32 %v202, 4294901760
  %280 = vmatpush1.msra.mxu0 %v279
  %281 = vmatprep.subr.mxu0 0.0
  %v282 = vand.u32 %v203, 4294901760
  %283 = vmatpush1.msra.mxu0 %v282
  %284 = vmatprep.subr.mxu0 0.0
  %v285 = vand.u32 %v204, 4294901760
  %286 = vmatpush1.msra.mxu0 %v285
  %287 = vmatprep.subr.mxu0 0.0
  %v288 = vand.u32 %v205, 4294901760
  %289 = vmatpush1.msra.mxu0 %v288
  %290 = vmatprep.subr.mxu0 0.0
  %v291 = vand.u32 %v206, 4294901760
  %292 = vmatpush1.msra.mxu0 %v291
  %293 = vmatprep.subr.mxu0 0.0
  %v294 = vand.u32 %v207, 4294901760
  %295 = vmatpush1.msra.mxu0 %v294
  %296 = vmatprep.subr.mxu0 0.0
  %v297 = vand.u32 %v208, 4294901760
  %298 = vmatpush1.msra.mxu0 %v297
  %299 = vmatprep.subr.mxu0 0.0
  %v300 = vand.u32 %v209, 4294901760
  %301 = vmatpush1.msra.mxu0 %v300
  %302 = vmatprep.subr.mxu0 0.0
  %v303 = vand.u32 %v210, 4294901760
  %304 = vmatpush1.msra.mxu0 %v303
  %305 = vmatprep.subr.mxu0 0.0
  %v306 = vand.u32 %v211, 4294901760
  %307 = vmatpush1.msra.mxu0 %v306
  %308 = vmatprep.subr.mxu0 0.0
  %v309 = vand.u32 %v212, 4294901760
  %310 = vmatpush1.msra.mxu0 %v309
  %311 = vmatprep.subr.mxu0 0.0
  %v312 = vand.u32 %v213, 4294901760
  %313 = vmatpush1.msra.mxu0 %v312
  %314 = vmatprep.subr.mxu0 0.0
  %v315 = vand.u32 %v214, 4294901760
  %316 = vmatpush1.msra.mxu0 %v315
  %317 = vmatprep.subr.mxu0 0.0
  %v318 = vand.u32 %v215, 4294901760
  %319 = vmatpush1.msra.mxu0 %v318
  %320 = vmatprep.subr.mxu0 0.0
  %v321 = vand.u32 %v216, 4294901760
  %322 = vmatpush1.msra.mxu0 %v321
  %323 = vmatprep.subr.mxu0 0.0
  %v324 = vand.u32 %v217, 4294901760
  %325 = vmatpush1.msra.mxu0 %v324
  %326 = vmatprep.subr.mxu0 0.0
  %v327 = vand.u32 %v218, 4294901760
  %328 = vmatpush1.msra.mxu0 %v327
  %329 = vmatprep.subr.mxu0 0.0
  %v330 = vand.u32 %v219, 4294901760
  %331 = vmatpush1.msra.mxu0 %v330
  %332 = vmatprep.subr.mxu0 0.0
  %v333 = vand.u32 %v220, 4294901760
  %334 = vmatpush1.msra.mxu0 %v333
  %335 = vmatprep.subr.mxu0 0.0
  %v336 = vand.u32 %v221, 4294901760
  %337 = vmatpush1.msra.mxu0 %v336
  %338 = vmatprep.subr.mxu0 0.0
  %v339 = vand.u32 %v222, 4294901760
  %340 = vmatpush1.msra.mxu0 %v339
  %341 = vmatprep.subr.mxu0 0.0
  %v342 = vand.u32 %v223, 4294901760
  %343 = vmatpush1.msra.mxu0 %v342
  %v344 = vand.u32 %v245, 4294901760
  %v345 = vsub.f32 %v245, %v344
  %v346 = vand.u32 %v345, 4294901760
  %v347 = vsub.f32 %v345, %v346
  %v348 = vand.u32 %v347, 4294901760
  %349 = vmatprep.mubr.f32.mxu0 %v348
  %v350 = vand.u32 %v244, 4294901760
  %v351 = vsub.f32 %v244, %v350
  %v352 = vand.u32 %v351, 4294901760
  %v353 = vsub.f32 %v351, %v352
  %v354 = vand.u32 %v353, 4294901760
  %355 = vmatmul.mubr.f32.gmra.mrb[0].mxu0 %v354
  %v356 = vpop.f32.mrb[0].mxu0
  %v357 = vadd.f32 0.0, %v356
  %v358 = vpop.f32.mrb[0].mxu0
  %359 = vdwg.mxu0
  %360 = vmatprep.subr.mxu0 0.0
  %v361 = vand.u32 %v192, 4294901760
  %v362 = vsub.f32 %v192, %v361
  %v363 = vand.u32 %v362, 4294901760
  %v364 = vsub.f32 %v362, %v363
  %v365 = vand.u32 %v364, 4294901760
  %366 = vmatpush1.msra.mxu0 %v365
  %367 = vmatprep.subr.mxu0 0.0
  %v368 = vand.u32 %v193, 4294901760
  %v369 = vsub.f32 %v193, %v368
  %v370 = vand.u32 %v369, 4294901760
  %v371 = vsub.f32 %v369, %v370
  %v372 = vand.u32 %v371, 4294901760
  %373 = vmatpush1.msra.mxu0 %v372
  %374 = vmatprep.subr.mxu0 0.0
  %v375 = vand.u32 %v194, 4294901760
  %v376 = vsub.f32 %v194, %v375
  %v377 = vand.u32 %v376, 4294901760
  %v378 = vsub.f32 %v376, %v377
  %v379 = vand.u32 %v378, 4294901760
  %380 = vmatpush1.msra.mxu0 %v379
  %381 = vmatprep.subr.mxu0 0.0
  %v382 = vand.u32 %v195, 4294901760
  %v383 = vsub.f32 %v195, %v382
  %v384 = vand.u32 %v383, 4294901760
  %v385 = vsub.f32 %v383, %v384
  %v386 = vand.u32 %v385, 4294901760
  %387 = vmatpush1.msra.mxu0 %v386
  %388 = vmatprep.subr.mxu0 0.0
  %v389 = vand.u32 %v196, 4294901760
  %v390 = vsub.f32 %v196, %v389
  %v391 = vand.u32 %v390, 4294901760
  %v392 = vsub.f32 %v390, %v391
  %v393 = vand.u32 %v392, 4294901760
  %394 = vmatpush1.msra.mxu0 %v393
  %395 = vmatprep.subr.mxu0 0.0
  %v396 = vand.u32 %v197, 4294901760
  %v397 = vsub.f32 %v197, %v396
  %v398 = vand.u32 %v397, 4294901760
  %v399 = vsub.f32 %v397, %v398
  %v400 = vand.u32 %v399, 4294901760
  %401 = vmatpush1.msra.mxu0 %v400
  %402 = vmatprep.subr.mxu0 0.0
  %v403 = vand.u32 %v198, 4294901760
  %v404 = vsub.f32 %v198, %v403
  %v405 = vand.u32 %v404, 4294901760
  %v406 = vsub.f32 %v404, %v405
  %v407 = vand.u32 %v406, 4294901760
  %408 = vmatpush1.msra.mxu0 %v407
  %409 = vmatprep.subr.mxu0 0.0
  %v410 = vand.u32 %v199, 4294901760
  %v411 = vsub.f32 %v199, %v410
  %v412 = vand.u32 %v411, 4294901760
  %v413 = vsub.f32 %v411, %v412
  %v414 = vand.u32 %v413, 4294901760
  %415 = vmatpush1.msra.mxu0 %v414
  %416 = vmatprep.subr.mxu0 0.0
  %v417 = vand.u32 %v200, 4294901760
  %v418 = vsub.f32 %v200, %v417
  %v419 = vand.u32 %v418, 4294901760
  %v420 = vsub.f32 %v418, %v419
  %v421 = vand.u32 %v420, 4294901760
  %422 = vmatpush1.msra.mxu0 %v421
  %423 = vmatprep.subr.mxu0 0.0
  %v424 = vand.u32 %v201, 4294901760
  %v425 = vsub.f32 %v201, %v424
  %v426 = vand.u32 %v425, 4294901760
  %v427 = vsub.f32 %v425, %v426
  %v428 = vand.u32 %v427, 4294901760
  %429 = vmatpush1.msra.mxu0 %v428
  %430 = vmatprep.subr.mxu0 0.0
  %v431 = vand.u32 %v202, 4294901760
  %v432 = vsub.f32 %v202, %v431
  %v433 = vand.u32 %v432, 4294901760
  %v434 = vsub.f32 %v432, %v433
  %v435 = vand.u32 %v434, 4294901760
  %436 = vmatpush1.msra.mxu0 %v435
  %437 = vmatprep.subr.mxu0 0.0
  %v438 = vand.u32 %v203, 4294901760
  %v439 = vsub.f32 %v203, %v438
  %v440 = vand.u32 %v439, 4294901760
  %v441 = vsub.f32 %v439, %v440
  %v442 = vand.u32 %v441, 4294901760
  %443 = vmatpush1.msra.mxu0 %v442
  %444 = vmatprep.subr.mxu0 0.0
  %v445 = vand.u32 %v204, 4294901760
  %v446 = vsub.f32 %v204, %v445
  %v447 = vand.u32 %v446, 4294901760
  %v448 = vsub.f32 %v446, %v447
  %v449 = vand.u32 %v448, 4294901760
  %450 = vmatpush1.msra.mxu0 %v449
  %451 = vmatprep.subr.mxu0 0.0
  %v452 = vand.u32 %v205, 4294901760
  %v453 = vsub.f32 %v205, %v452
  %v454 = vand.u32 %v453, 4294901760
  %v455 = vsub.f32 %v453, %v454
  %v456 = vand.u32 %v455, 4294901760
  %457 = vmatpush1.msra.mxu0 %v456
  %458 = vmatprep.subr.mxu0 0.0
  %v459 = vand.u32 %v206, 4294901760
  %v460 = vsub.f32 %v206, %v459
  %v461 = vand.u32 %v460, 4294901760
  %v462 = vsub.f32 %v460, %v461
  %v463 = vand.u32 %v462, 4294901760
  %464 = vmatpush1.msra.mxu0 %v463
  %465 = vmatprep.subr.mxu0 0.0
  %v466 = vand.u32 %v207, 4294901760
  %v467 = vsub.f32 %v207, %v466
  %v468 = vand.u32 %v467, 4294901760
  %v469 = vsub.f32 %v467, %v468
  %v470 = vand.u32 %v469, 4294901760
  %471 = vmatpush1.msra.mxu0 %v470
  %472 = vmatprep.subr.mxu0 0.0
  %v473 = vand.u32 %v208, 4294901760
  %v474 = vsub.f32 %v208, %v473
  %v475 = vand.u32 %v474, 4294901760
  %v476 = vsub.f32 %v474, %v475
  %v477 = vand.u32 %v476, 4294901760
  %478 = vmatpush1.msra.mxu0 %v477
  %479 = vmatprep.subr.mxu0 0.0
  %v480 = vand.u32 %v209, 4294901760
  %v481 = vsub.f32 %v209, %v480
  %v482 = vand.u32 %v481, 4294901760
  %v483 = vsub.f32 %v481, %v482
  %v484 = vand.u32 %v483, 4294901760
  %485 = vmatpush1.msra.mxu0 %v484
  %486 = vmatprep.subr.mxu0 0.0
  %v487 = vand.u32 %v210, 4294901760
  %v488 = vsub.f32 %v210, %v487
  %v489 = vand.u32 %v488, 4294901760
  %v490 = vsub.f32 %v488, %v489
  %v491 = vand.u32 %v490, 4294901760
  %492 = vmatpush1.msra.mxu0 %v491
  %493 = vmatprep.subr.mxu0 0.0
  %v494 = vand.u32 %v211, 4294901760
  %v495 = vsub.f32 %v211, %v494
  %v496 = vand.u32 %v495, 4294901760
  %v497 = vsub.f32 %v495, %v496
  %v498 = vand.u32 %v497, 4294901760
  %499 = vmatpush1.msra.mxu0 %v498
  %500 = vmatprep.subr.mxu0 0.0
  %v501 = vand.u32 %v212, 4294901760
  %v502 = vsub.f32 %v212, %v501
  %v503 = vand.u32 %v502, 4294901760
  %v504 = vsub.f32 %v502, %v503
  %v505 = vand.u32 %v504, 4294901760
  %506 = vmatpush1.msra.mxu0 %v505
  %507 = vmatprep.subr.mxu0 0.0
  %v508 = vand.u32 %v213, 4294901760
  %v509 = vsub.f32 %v213, %v508
  %v510 = vand.u32 %v509, 4294901760
  %v511 = vsub.f32 %v509, %v510
  %v512 = vand.u32 %v511, 4294901760
  %513 = vmatpush1.msra.mxu0 %v512
  %514 = vmatprep.subr.mxu0 0.0
  %v515 = vand.u32 %v214, 4294901760
  %v516 = vsub.f32 %v214, %v515
  %v517 = vand.u32 %v516, 4294901760
  %v518 = vsub.f32 %v516, %v517
  %v519 = vand.u32 %v518, 4294901760
  %520 = vmatpush1.msra.mxu0 %v519
  %521 = vmatprep.subr.mxu0 0.0
  %v522 = vand.u32 %v215, 4294901760
  %v523 = vsub.f32 %v215, %v522
  %v524 = vand.u32 %v523, 4294901760
  %v525 = vsub.f32 %v523, %v524
  %v526 = vand.u32 %v525, 4294901760
  %527 = vmatpush1.msra.mxu0 %v526
  %528 = vmatprep.subr.mxu0 0.0
  %v529 = vand.u32 %v216, 4294901760
  %v530 = vsub.f32 %v216, %v529
  %v531 = vand.u32 %v530, 4294901760
  %v532 = vsub.f32 %v530, %v531
  %v533 = vand.u32 %v532, 4294901760
  %534 = vmatpush1.msra.mxu0 %v533
  %535 = vmatprep.subr.mxu0 0.0
  %v536 = vand.u32 %v217, 4294901760
  %v537 = vsub.f32 %v217, %v536
  %v538 = vand.u32 %v537, 4294901760
  %v539 = vsub.f32 %v537, %v538
  %v540 = vand.u32 %v539, 4294901760
  %541 = vmatpush1.msra.mxu0 %v540
  %542 = vmatprep.subr.mxu0 0.0
  %v543 = vand.u32 %v218, 4294901760
  %v544 = vsub.f32 %v218, %v543
  %v545 = vand.u32 %v544, 4294901760
  %v546 = vsub.f32 %v544, %v545
  %v547 = vand.u32 %v546, 4294901760
  %548 = vmatpush1.msra.mxu0 %v547
  %549 = vmatprep.subr.mxu0 0.0
  %v550 = vand.u32 %v219, 4294901760
  %v551 = vsub.f32 %v219, %v550
  %v552 = vand.u32 %v551, 4294901760
  %v553 = vsub.f32 %v551, %v552
  %v554 = vand.u32 %v553, 4294901760
  %555 = vmatpush1.msra.mxu0 %v554
  %556 = vmatprep.subr.mxu0 0.0
  %v557 = vand.u32 %v220, 4294901760
  %v558 = vsub.f32 %v220, %v557
  %v559 = vand.u32 %v558, 4294901760
  %v560 = vsub.f32 %v558, %v559
  %v561 = vand.u32 %v560, 4294901760
  %562 = vmatpush1.msra.mxu0 %v561
  %563 = vmatprep.subr.mxu0 0.0
  %v564 = vand.u32 %v221, 4294901760
  %v565 = vsub.f32 %v221, %v564
  %v566 = vand.u32 %v565, 4294901760
  %v567 = vsub.f32 %v565, %v566
  %v568 = vand.u32 %v567, 4294901760
  %569 = vmatpush1.msra.mxu0 %v568
  %570 = vmatprep.subr.mxu0 0.0
  %v571 = vand.u32 %v222, 4294901760
  %v572 = vsub.f32 %v222, %v571
  %v573 = vand.u32 %v572, 4294901760
  %v574 = vsub.f32 %v572, %v573
  %v575 = vand.u32 %v574, 4294901760
  %576 = vmatpush1.msra.mxu0 %v575
  %577 = vmatprep.subr.mxu0 0.0
  %v578 = vand.u32 %v223, 4294901760
  %v579 = vsub.f32 %v223, %v578
  %v580 = vand.u32 %v579, 4294901760
  %v581 = vsub.f32 %v579, %v580
  %v582 = vand.u32 %v581, 4294901760
  %583 = vmatpush1.msra.mxu0 %v582
  %v584 = vand.u32 %v245, 4294901760
  %585 = vmatprep.mubr.f32.mxu0 %v584
  %v586 = vand.u32 %v244, 4294901760
  %587 = vmatmul.mubr.f32.gmra.mrb[0].mxu0 %v586
  %v588 = vpop.f32.mrb[0].mxu0
  %v589 = vadd.f32 %v357, %v588
  %v590 = vpop.f32.mrb[0].mxu0
  %591 = vdwg.mxu0
  %592 = vmatprep.subr.mxu0 0.0
  %v593 = vand.u32 %v192, 4294901760
  %v594 = vsub.f32 %v192, %v593
  %595 = vmatpush1.msra.mxu0 %v594
  %596 = vmatprep.subr.mxu0 0.0
  %v597 = vand.u32 %v193, 4294901760
  %v598 = vsub.f32 %v193, %v597
  %599 = vmatpush1.msra.mxu0 %v598
  %600 = vmatprep.subr.mxu0 0.0
  %v601 = vand.u32 %v194, 4294901760
  %v602 = vsub.f32 %v194, %v601
  %603 = vmatpush1.msra.mxu0 %v602
  %604 = vmatprep.subr.mxu0 0.0
  %v605 = vand.u32 %v195, 4294901760
  %v606 = vsub.f32 %v195, %v605
  %607 = vmatpush1.msra.mxu0 %v606
  %608 = vmatprep.subr.mxu0 0.0
  %v609 = vand.u32 %v196, 4294901760
  %v610 = vsub.f32 %v196, %v609
  %611 = vmatpush1.msra.mxu0 %v610
  %612 = vmatprep.subr.mxu0 0.0
  %v613 = vand.u32 %v197, 4294901760
  %v614 = vsub.f32 %v197, %v613
  %615 = vmatpush1.msra.mxu0 %v614
  %616 = vmatprep.subr.mxu0 0.0
  %v617 = vand.u32 %v198, 4294901760
  %v618 = vsub.f32 %v198, %v617
  %619 = vmatpush1.msra.mxu0 %v618
  %620 = vmatprep.subr.mxu0 0.0
  %v621 = vand.u32 %v199, 4294901760
  %v622 = vsub.f32 %v199, %v621
  %623 = vmatpush1.msra.mxu0 %v622
  %624 = vmatprep.subr.mxu0 0.0
  %v625 = vand.u32 %v200, 4294901760
  %v626 = vsub.f32 %v200, %v625
  %627 = vmatpush1.msra.mxu0 %v626
  %628 = vmatprep.subr.mxu0 0.0
  %v629 = vand.u32 %v201, 4294901760
  %v630 = vsub.f32 %v201, %v629
  %631 = vmatpush1.msra.mxu0 %v630
  %632 = vmatprep.subr.mxu0 0.0
  %v633 = vand.u32 %v202, 4294901760
  %v634 = vsub.f32 %v202, %v633
  %635 = vmatpush1.msra.mxu0 %v634
  %636 = vmatprep.subr.mxu0 0.0
  %v637 = vand.u32 %v203, 4294901760
  %v638 = vsub.f32 %v203, %v637
  %639 = vmatpush1.msra.mxu0 %v638
  %640 = vmatprep.subr.mxu0 0.0
  %v641 = vand.u32 %v204, 4294901760
  %v642 = vsub.f32 %v204, %v641
  %643 = vmatpush1.msra.mxu0 %v642
  %644 = vmatprep.subr.mxu0 0.0
  %v645 = vand.u32 %v205, 4294901760
  %v646 = vsub.f32 %v205, %v645
  %647 = vmatpush1.msra.mxu0 %v646
  %648 = vmatprep.subr.mxu0 0.0
  %v649 = vand.u32 %v206, 4294901760
  %v650 = vsub.f32 %v206, %v649
  %651 = vmatpush1.msra.mxu0 %v650
  %652 = vmatprep.subr.mxu0 0.0
  %v653 = vand.u32 %v207, 4294901760
  %v654 = vsub.f32 %v207, %v653
  %655 = vmatpush1.msra.mxu0 %v654
  %656 = vmatprep.subr.mxu0 0.0
  %v657 = vand.u32 %v208, 4294901760
  %v658 = vsub.f32 %v208, %v657
  %659 = vmatpush1.msra.mxu0 %v658
  %660 = vmatprep.subr.mxu0 0.0
  %v661 = vand.u32 %v209, 4294901760
  %v662 = vsub.f32 %v209, %v661
  %663 = vmatpush1.msra.mxu0 %v662
  %664 = vmatprep.subr.mxu0 0.0
  %v665 = vand.u32 %v210, 4294901760
  %v666 = vsub.f32 %v210, %v665
  %667 = vmatpush1.msra.mxu0 %v666
  %668 = vmatprep.subr.mxu0 0.0
  %v669 = vand.u32 %v211, 4294901760
  %v670 = vsub.f32 %v211, %v669
  %671 = vmatpush1.msra.mxu0 %v670
  %672 = vmatprep.subr.mxu0 0.0
  %v673 = vand.u32 %v212, 4294901760
  %v674 = vsub.f32 %v212, %v673
  %675 = vmatpush1.msra.mxu0 %v674
  %676 = vmatprep.subr.mxu0 0.0
  %v677 = vand.u32 %v213, 4294901760
  %v678 = vsub.f32 %v213, %v677
  %679 = vmatpush1.msra.mxu0 %v678
  %680 = vmatprep.subr.mxu0 0.0
  %v681 = vand.u32 %v214, 4294901760
  %v682 = vsub.f32 %v214, %v681
  %683 = vmatpush1.msra.mxu0 %v682
  %684 = vmatprep.subr.mxu0 0.0
  %v685 = vand.u32 %v215, 4294901760
  %v686 = vsub.f32 %v215, %v685
  %687 = vmatpush1.msra.mxu0 %v686
  %688 = vmatprep.subr.mxu0 0.0
  %v689 = vand.u32 %v216, 4294901760
  %v690 = vsub.f32 %v216, %v689
  %691 = vmatpush1.msra.mxu0 %v690
  %692 = vmatprep.subr.mxu0 0.0
  %v693 = vand.u32 %v217, 4294901760
  %v694 = vsub.f32 %v217, %v693
  %695 = vmatpush1.msra.mxu0 %v694
  %696 = vmatprep.subr.mxu0 0.0
  %v697 = vand.u32 %v218, 4294901760
  %v698 = vsub.f32 %v218, %v697
  %699 = vmatpush1.msra.mxu0 %v698
  %700 = vmatprep.subr.mxu0 0.0
  %v701 = vand.u32 %v219, 4294901760
  %v702 = vsub.f32 %v219, %v701
  %703 = vmatpush1.msra.mxu0 %v702
  %704 = vmatprep.subr.mxu0 0.0
  %v705 = vand.u32 %v220, 4294901760
  %v706 = vsub.f32 %v220, %v705
  %707 = vmatpush1.msra.mxu0 %v706
  %708 = vmatprep.subr.mxu0 0.0
  %v709 = vand.u32 %v221, 4294901760
  %v710 = vsub.f32 %v221, %v709
  %711 = vmatpush1.msra.mxu0 %v710
  %712 = vmatprep.subr.mxu0 0.0
  %v713 = vand.u32 %v222, 4294901760
  %v714 = vsub.f32 %v222, %v713
  %715 = vmatpush1.msra.mxu0 %v714
  %716 = vmatprep.subr.mxu0 0.0
  %v717 = vand.u32 %v223, 4294901760
  %v718 = vsub.f32 %v223, %v717
  %719 = vmatpush1.msra.mxu0 %v718
  %v720 = vand.u32 %v245, 4294901760
  %v721 = vsub.f32 %v245, %v720
  %722 = vmatprep.mubr.f32.mxu0 %v721
  %v723 = vand.u32 %v244, 4294901760
  %v724 = vsub.f32 %v244, %v723
  %725 = vmatmul.mubr.f32.gmra.mrb[0].mxu0 %v724
  %v726 = vpop.f32.mrb[0].mxu0
  %v727 = vadd.f32 %v589, %v726
  %v728 = vpop.f32.mrb[0].mxu0
  %729 = vdwg.mxu0
  %730 = vmatprep.subr.mxu0 0.0
  %v731 = vand.u32 %v192, 4294901760
  %732 = vmatpush1.msra.mxu0 %v731
  %733 = vmatprep.subr.mxu0 0.0
  %v734 = vand.u32 %v193, 4294901760
  %735 = vmatpush1.msra.mxu0 %v734
  %736 = vmatprep.subr.mxu0 0.0
  %v737 = vand.u32 %v194, 4294901760
  %738 = vmatpush1.msra.mxu0 %v737
  %739 = vmatprep.subr.mxu0 0.0
  %v740 = vand.u32 %v195, 4294901760
  %741 = vmatpush1.msra.mxu0 %v740
  %742 = vmatprep.subr.mxu0 0.0
  %v743 = vand.u32 %v196, 4294901760
  %744 = vmatpush1.msra.mxu0 %v743
  %745 = vmatprep.subr.mxu0 0.0
  %v746 = vand.u32 %v197, 4294901760
  %747 = vmatpush1.msra.mxu0 %v746
  %748 = vmatprep.subr.mxu0 0.0
  %v749 = vand.u32 %v198, 4294901760
  %750 = vmatpush1.msra.mxu0 %v749
  %751 = vmatprep.subr.mxu0 0.0
  %v752 = vand.u32 %v199, 4294901760
  %753 = vmatpush1.msra.mxu0 %v752
  %754 = vmatprep.subr.mxu0 0.0
  %v755 = vand.u32 %v200, 4294901760
  %756 = vmatpush1.msra.mxu0 %v755
  %757 = vmatprep.subr.mxu0 0.0
  %v758 = vand.u32 %v201, 4294901760
  %759 = vmatpush1.msra.mxu0 %v758
  %760 = vmatprep.subr.mxu0 0.0
  %v761 = vand.u32 %v202, 4294901760
  %762 = vmatpush1.msra.mxu0 %v761
  %763 = vmatprep.subr.mxu0 0.0
  %v764 = vand.u32 %v203, 4294901760
  %765 = vmatpush1.msra.mxu0 %v764
  %766 = vmatprep.subr.mxu0 0.0
  %v767 = vand.u32 %v204, 4294901760
  %768 = vmatpush1.msra.mxu0 %v767
  %769 = vmatprep.subr.mxu0 0.0
  %v770 = vand.u32 %v205, 4294901760
  %771 = vmatpush1.msra.mxu0 %v770
  %772 = vmatprep.subr.mxu0 0.0
  %v773 = vand.u32 %v206, 4294901760
  %774 = vmatpush1.msra.mxu0 %v773
  %775 = vmatprep.subr.mxu0 0.0
  %v776 = vand.u32 %v207, 4294901760
  %777 = vmatpush1.msra.mxu0 %v776
  %778 = vmatprep.subr.mxu0 0.0
  %v779 = vand.u32 %v208, 4294901760
  %780 = vmatpush1.msra.mxu0 %v779
  %781 = vmatprep.subr.mxu0 0.0
  %v782 = vand.u32 %v209, 4294901760
  %783 = vmatpush1.msra.mxu0 %v782
  %784 = vmatprep.subr.mxu0 0.0
  %v785 = vand.u32 %v210, 4294901760
  %786 = vmatpush1.msra.mxu0 %v785
  %787 = vmatprep.subr.mxu0 0.0
  %v788 = vand.u32 %v211, 4294901760
  %789 = vmatpush1.msra.mxu0 %v788
  %790 = vmatprep.subr.mxu0 0.0
  %v791 = vand.u32 %v212, 4294901760
  %792 = vmatpush1.msra.mxu0 %v791
  %793 = vmatprep.subr.mxu0 0.0
  %v794 = vand.u32 %v213, 4294901760
  %795 = vmatpush1.msra.mxu0 %v794
  %796 = vmatprep.subr.mxu0 0.0
  %v797 = vand.u32 %v214, 4294901760
  %798 = vmatpush1.msra.mxu0 %v797
  %799 = vmatprep.subr.mxu0 0.0
  %v800 = vand.u32 %v215, 4294901760
  %801 = vmatpush1.msra.mxu0 %v800
  %802 = vmatprep.subr.mxu0 0.0
  %v803 = vand.u32 %v216, 4294901760
  %804 = vmatpush1.msra.mxu0 %v803
  %805 = vmatprep.subr.mxu0 0.0
  %v806 = vand.u32 %v217, 4294901760
  %807 = vmatpush1.msra.mxu0 %v806
  %808 = vmatprep.subr.mxu0 0.0
  %v809 = vand.u32 %v218, 4294901760
  %810 = vmatpush1.msra.mxu0 %v809
  %811 = vmatprep.subr.mxu0 0.0
  %v812 = vand.u32 %v219, 4294901760
  %813 = vmatpush1.msra.mxu0 %v812
  %814 = vmatprep.subr.mxu0 0.0
  %v815 = vand.u32 %v220, 4294901760
  %816 = vmatpush1.msra.mxu0 %v815
  %817 = vmatprep.subr.mxu0 0.0
  %v818 = vand.u32 %v221, 4294901760
  %819 = vmatpush1.msra.mxu0 %v818
  %820 = vmatprep.subr.mxu0 0.0
  %v821 = vand.u32 %v222, 4294901760
  %822 = vmatpush1.msra.mxu0 %v821
  %823 = vmatprep.subr.mxu0 0.0
  %v824 = vand.u32 %v223, 4294901760
  %825 = vmatpush1.msra.mxu0 %v824
  %v826 = vand.u32 %v245, 4294901760
  %v827 = vsub.f32 %v245, %v826
  %v828 = vand.u32 %v827, 4294901760
  %829 = vmatprep.mubr.f32.mxu0 %v828
  %v830 = vand.u32 %v244, 4294901760
  %v831 = vsub.f32 %v244, %v830
  %v832 = vand.u32 %v831, 4294901760
  %833 = vmatmul.mubr.f32.gmra.mrb[0].mxu0 %v832
  %v834 = vpop.f32.mrb[0].mxu0
  %v835 = vadd.f32 %v727, %v834
  %v836 = vpop.f32.mrb[0].mxu0
  %837 = vdwg.mxu0
  %838 = vmatprep.subr.mxu0 0.0
  %v839 = vand.u32 %v192, 4294901760
  %v840 = vsub.f32 %v192, %v839
  %v841 = vand.u32 %v840, 4294901760
  %842 = vmatpush1.msra.mxu0 %v841
  %843 = vmatprep.subr.mxu0 0.0
  %v844 = vand.u32 %v193, 4294901760
  %v845 = vsub.f32 %v193, %v844
  %v846 = vand.u32 %v845, 4294901760
  %847 = vmatpush1.msra.mxu0 %v846
  %848 = vmatprep.subr.mxu0 0.0
  %v849 = vand.u32 %v194, 4294901760
  %v850 = vsub.f32 %v194, %v849
  %v851 = vand.u32 %v850, 4294901760
  %852 = vmatpush1.msra.mxu0 %v851
  %853 = vmatprep.subr.mxu0 0.0
  %v854 = vand.u32 %v195, 4294901760
  %v855 = vsub.f32 %v195, %v854
  %v856 = vand.u32 %v855, 4294901760
  %857 = vmatpush1.msra.mxu0 %v856
  %858 = vmatprep.subr.mxu0 0.0
  %v859 = vand.u32 %v196, 4294901760
  %v860 = vsub.f32 %v196, %v859
  %v861 = vand.u32 %v860, 4294901760
  %862 = vmatpush1.msra.mxu0 %v861
  %863 = vmatprep.subr.mxu0 0.0
  %v864 = vand.u32 %v197, 4294901760
  %v865 = vsub.f32 %v197, %v864
  %v866 = vand.u32 %v865, 4294901760
  %867 = vmatpush1.msra.mxu0 %v866
  %868 = vmatprep.subr.mxu0 0.0
  %v869 = vand.u32 %v198, 4294901760
  %v870 = vsub.f32 %v198, %v869
  %v871 = vand.u32 %v870, 4294901760
  %872 = vmatpush1.msra.mxu0 %v871
  %873 = vmatprep.subr.mxu0 0.0
  %v874 = vand.u32 %v199, 4294901760
  %v875 = vsub.f32 %v199, %v874
  %v876 = vand.u32 %v875, 4294901760
  %877 = vmatpush1.msra.mxu0 %v876
  %878 = vmatprep.subr.mxu0 0.0
  %v879 = vand.u32 %v200, 4294901760
  %v880 = vsub.f32 %v200, %v879
  %v881 = vand.u32 %v880, 4294901760
  %882 = vmatpush1.msra.mxu0 %v881
  %883 = vmatprep.subr.mxu0 0.0
  %v884 = vand.u32 %v201, 4294901760
  %v885 = vsub.f32 %v201, %v884
  %v886 = vand.u32 %v885, 4294901760
  %887 = vmatpush1.msra.mxu0 %v886
  %888 = vmatprep.subr.mxu0 0.0
  %v889 = vand.u32 %v202, 4294901760
  %v890 = vsub.f32 %v202, %v889
  %v891 = vand.u32 %v890, 4294901760
  %892 = vmatpush1.msra.mxu0 %v891
  %893 = vmatprep.subr.mxu0 0.0
  %v894 = vand.u32 %v203, 4294901760
  %v895 = vsub.f32 %v203, %v894
  %v896 = vand.u32 %v895, 4294901760
  %897 = vmatpush1.msra.mxu0 %v896
  %898 = vmatprep.subr.mxu0 0.0
  %v899 = vand.u32 %v204, 4294901760
  %v900 = vsub.f32 %v204, %v899
  %v901 = vand.u32 %v900, 4294901760
  %902 = vmatpush1.msra.mxu0 %v901
  %903 = vmatprep.subr.mxu0 0.0
  %v904 = vand.u32 %v205, 4294901760
  %v905 = vsub.f32 %v205, %v904
  %v906 = vand.u32 %v905, 4294901760
  %907 = vmatpush1.msra.mxu0 %v906
  %908 = vmatprep.subr.mxu0 0.0
  %v909 = vand.u32 %v206, 4294901760
  %v910 = vsub.f32 %v206, %v909
  %v911 = vand.u32 %v910, 4294901760
  %912 = vmatpush1.msra.mxu0 %v911
  %913 = vmatprep.subr.mxu0 0.0
  %v914 = vand.u32 %v207, 4294901760
  %v915 = vsub.f32 %v207, %v914
  %v916 = vand.u32 %v915, 4294901760
  %917 = vmatpush1.msra.mxu0 %v916
  %918 = vmatprep.subr.mxu0 0.0
  %v919 = vand.u32 %v208, 4294901760
  %v920 = vsub.f32 %v208, %v919
  %v921 = vand.u32 %v920, 4294901760
  %922 = vmatpush1.msra.mxu0 %v921
  %923 = vmatprep.subr.mxu0 0.0
  %v924 = vand.u32 %v209, 4294901760
  %v925 = vsub.f32 %v209, %v924
  %v926 = vand.u32 %v925, 4294901760
  %927 = vmatpush1.msra.mxu0 %v926
  %928 = vmatprep.subr.mxu0 0.0
  %v929 = vand.u32 %v210, 4294901760
  %v930 = vsub.f32 %v210, %v929
  %v931 = vand.u32 %v930, 4294901760
  %932 = vmatpush1.msra.mxu0 %v931
  %933 = vmatprep.subr.mxu0 0.0
  %v934 = vand.u32 %v211, 4294901760
  %v935 = vsub.f32 %v211, %v934
  %v936 = vand.u32 %v935, 4294901760
  %937 = vmatpush1.msra.mxu0 %v936
  %938 = vmatprep.subr.mxu0 0.0
  %v939 = vand.u32 %v212, 4294901760
  %v940 = vsub.f32 %v212, %v939
  %v941 = vand.u32 %v940, 4294901760
  %942 = vmatpush1.msra.mxu0 %v941
  %943 = vmatprep.subr.mxu0 0.0
  %v944 = vand.u32 %v213, 4294901760
  %v945 = vsub.f32 %v213, %v944
  %v946 = vand.u32 %v945, 4294901760
  %947 = vmatpush1.msra.mxu0 %v946
  %948 = vmatprep.subr.mxu0 0.0
  %v949 = vand.u32 %v214, 4294901760
  %v950 = vsub.f32 %v214, %v949
  %v951 = vand.u32 %v950, 4294901760
  %952 = vmatpush1.msra.mxu0 %v951
  %953 = vmatprep.subr.mxu0 0.0
  %v954 = vand.u32 %v215, 4294901760
  %v955 = vsub.f32 %v215, %v954
  %v956 = vand.u32 %v955, 4294901760
  %957 = vmatpush1.msra.mxu0 %v956
  %958 = vmatprep.subr.mxu0 0.0
  %v959 = vand.u32 %v216, 4294901760
  %v960 = vsub.f32 %v216, %v959
  %v961 = vand.u32 %v960, 4294901760
  %962 = vmatpush1.msra.mxu0 %v961
  %963 = vmatprep.subr.mxu0 0.0
  %v964 = vand.u32 %v217, 4294901760
  %v965 = vsub.f32 %v217, %v964
  %v966 = vand.u32 %v965, 4294901760
  %967 = vmatpush1.msra.mxu0 %v966
  %968 = vmatprep.subr.mxu0 0.0
  %v969 = vand.u32 %v218, 4294901760
  %v970 = vsub.f32 %v218, %v969
  %v971 = vand.u32 %v970, 4294901760
  %972 = vmatpush1.msra.mxu0 %v971
  %973 = vmatprep.subr.mxu0 0.0
  %v974 = vand.u32 %v219, 4294901760
  %v975 = vsub.f32 %v219, %v974
  %v976 = vand.u32 %v975, 4294901760
  %977 = vmatpush1.msra.mxu0 %v976
  %978 = vmatprep.subr.mxu0 0.0
  %v979 = vand.u32 %v220, 4294901760
  %v980 = vsub.f32 %v220, %v979
  %v981 = vand.u32 %v980, 4294901760
  %982 = vmatpush1.msra.mxu0 %v981
  %983 = vmatprep.subr.mxu0 0.0
  %v984 = vand.u32 %v221, 4294901760
  %v985 = vsub.f32 %v221, %v984
  %v986 = vand.u32 %v985, 4294901760
  %987 = vmatpush1.msra.mxu0 %v986
  %988 = vmatprep.subr.mxu0 0.0
  %v989 = vand.u32 %v222, 4294901760
  %v990 = vsub.f32 %v222, %v989
  %v991 = vand.u32 %v990, 4294901760
  %992 = vmatpush1.msra.mxu0 %v991
  %993 = vmatprep.subr.mxu0 0.0
  %v994 = vand.u32 %v223, 4294901760
  %v995 = vsub.f32 %v223, %v994
  %v996 = vand.u32 %v995, 4294901760
  %997 = vmatpush1.msra.mxu0 %v996
  %v998 = vand.u32 %v245, 4294901760
  %999 = vmatprep.mubr.f32.mxu0 %v998
  %v1000 = vand.u32 %v244, 4294901760
  %1001 = vmatmul.mubr.f32.gmra.mrb[0].mxu0 %v1000
  %v1002 = vpop.f32.mrb[0].mxu0
  %v1003 = vadd.f32 %v835, %v1002
  %v1004 = vpop.f32.mrb[0].mxu0
  %1005 = vdwg.mxu0
  %1006 = vmatprep.subr.mxu0 0.0
  %v1007 = vand.u32 %v192, 4294901760
  %1008 = vmatpush1.msra.mxu0 %v1007
  %1009 = vmatprep.subr.mxu0 0.0
  %v1010 = vand.u32 %v193, 4294901760
  %1011 = vmatpush1.msra.mxu0 %v1010
  %1012 = vmatprep.subr.mxu0 0.0
  %v1013 = vand.u32 %v194, 4294901760
  %1014 = vmatpush1.msra.mxu0 %v1013
  %1015 = vmatprep.subr.mxu0 0.0
  %v1016 = vand.u32 %v195, 4294901760
  %1017 = vmatpush1.msra.mxu0 %v1016
  %1018 = vmatprep.subr.mxu0 0.0
  %v1019 = vand.u32 %v196, 4294901760
  %1020 = vmatpush1.msra.mxu0 %v1019
  %1021 = vmatprep.subr.mxu0 0.0
  %v1022 = vand.u32 %v197, 4294901760
  %1023 = vmatpush1.msra.mxu0 %v1022
  %1024 = vmatprep.subr.mxu0 0.0
  %v1025 = vand.u32 %v198, 4294901760
  %1026 = vmatpush1.msra.mxu0 %v1025
  %1027 = vmatprep.subr.mxu0 0.0
  %v1028 = vand.u32 %v199, 4294901760
  %1029 = vmatpush1.msra.mxu0 %v1028
  %1030 = vmatprep.subr.mxu0 0.0
  %v1031 = vand.u32 %v200, 4294901760
  %1032 = vmatpush1.msra.mxu0 %v1031
  %1033 = vmatprep.subr.mxu0 0.0
  %v1034 = vand.u32 %v201, 4294901760
  %1035 = vmatpush1.msra.mxu0 %v1034
  %1036 = vmatprep.subr.mxu0 0.0
  %v1037 = vand.u32 %v202, 4294901760
  %1038 = vmatpush1.msra.mxu0 %v1037
  %1039 = vmatprep.subr.mxu0 0.0
  %v1040 = vand.u32 %v203, 4294901760
  %1041 = vmatpush1.msra.mxu0 %v1040
  %1042 = vmatprep.subr.mxu0 0.0
  %v1043 = vand.u32 %v204, 4294901760
  %1044 = vmatpush1.msra.mxu0 %v1043
  %1045 = vmatprep.subr.mxu0 0.0
  %v1046 = vand.u32 %v205, 4294901760
  %1047 = vmatpush1.msra.mxu0 %v1046
  %1048 = vmatprep.subr.mxu0 0.0
  %v1049 = vand.u32 %v206, 4294901760
  %1050 = vmatpush1.msra.mxu0 %v1049
  %1051 = vmatprep.subr.mxu0 0.0
  %v1052 = vand.u32 %v207, 4294901760
  %1053 = vmatpush1.msra.mxu0 %v1052
  %1054 = vmatprep.subr.mxu0 0.0
  %v1055 = vand.u32 %v208, 4294901760
  %1056 = vmatpush1.msra.mxu0 %v1055
  %1057 = vmatprep.subr.mxu0 0.0
  %v1058 = vand.u32 %v209, 4294901760
  %1059 = vmatpush1.msra.mxu0 %v1058
  %1060 = vmatprep.subr.mxu0 0.0
  %v1061 = vand.u32 %v210, 4294901760
  %1062 = vmatpush1.msra.mxu0 %v1061
  %1063 = vmatprep.subr.mxu0 0.0
  %v1064 = vand.u32 %v211, 4294901760
  %1065 = vmatpush1.msra.mxu0 %v1064
  %1066 = vmatprep.subr.mxu0 0.0
  %v1067 = vand.u32 %v212, 4294901760
  %1068 = vmatpush1.msra.mxu0 %v1067
  %1069 = vmatprep.subr.mxu0 0.0
  %v1070 = vand.u32 %v213, 4294901760
  %1071 = vmatpush1.msra.mxu0 %v1070
  %1072 = vmatprep.subr.mxu0 0.0
  %v1073 = vand.u32 %v214, 4294901760
  %1074 = vmatpush1.msra.mxu0 %v1073
  %1075 = vmatprep.subr.mxu0 0.0
  %v1076 = vand.u32 %v215, 4294901760
  %1077 = vmatpush1.msra.mxu0 %v1076
  %1078 = vmatprep.subr.mxu0 0.0
  %v1079 = vand.u32 %v216, 4294901760
  %1080 = vmatpush1.msra.mxu0 %v1079
  %1081 = vmatprep.subr.mxu0 0.0
  %v1082 = vand.u32 %v217, 4294901760
  %1083 = vmatpush1.msra.mxu0 %v1082
  %1084 = vmatprep.subr.mxu0 0.0
  %v1085 = vand.u32 %v218, 4294901760
  %1086 = vmatpush1.msra.mxu0 %v1085
  %1087 = vmatprep.subr.mxu0 0.0
  %v1088 = vand.u32 %v219, 4294901760
  %1089 = vmatpush1.msra.mxu0 %v1088
  %1090 = vmatprep.subr.mxu0 0.0
  %v1091 = vand.u32 %v220, 4294901760
  %1092 = vmatpush1.msra.mxu0 %v1091
  %1093 = vmatprep.subr.mxu0 0.0
  %v1094 = vand.u32 %v221, 4294901760
  %1095 = vmatpush1.msra.mxu0 %v1094
  %1096 = vmatprep.subr.mxu0 0.0
  %v1097 = vand.u32 %v222, 4294901760
  %1098 = vmatpush1.msra.mxu0 %v1097
  %1099 = vmatprep.subr.mxu0 0.0
  %v1100 = vand.u32 %v223, 4294901760
  %1101 = vmatpush1.msra.mxu0 %v1100
  %v1102 = vand.u32 %v245, 4294901760
  %1103 = vmatprep.mubr.f32.mxu0 %v1102
  %v1104 = vand.u32 %v244, 4294901760
  %1105 = vmatmul.mubr.f32.gmra.mrb[0].mxu0 %v1104
  %v1106 = vpop.f32.mrb[0].mxu0
  %v1107 = vadd.f32 %v1003, %v1106
  %v1108 = vpop.f32.mrb[0].mxu0
  %1109 = vdwg.mxu0
  %v1110 = vmul.f32 %v23, %v23
  %v1113 = vunpack.c.l.s4 1983009808
  %v1114 = vunpack.c.0.s8 %v1113
  %v1115 = vlaneseq
  %v1116 = vshrl.u32 %v1115, 7
  %v1117 = vsub.s32 %v1114, %v1116
  %v1118 = vrot.slane %v1110, %v1117
  %v1119 = vcombine.high %v1118, %v1118
  %1122 = vmatprep.subr.mxu0 0.0
  %v1123 = vand.u32 %v192, 4294901760
  %1124 = vmatpush1.msra.mxu0 %v1123
  %1125 = vmatprep.subr.mxu0 0.0
  %v1126 = vand.u32 %v193, 4294901760
  %1127 = vmatpush1.msra.mxu0 %v1126
  %1128 = vmatprep.subr.mxu0 0.0
  %v1129 = vand.u32 %v194, 4294901760
  %1130 = vmatpush1.msra.mxu0 %v1129
  %1131 = vmatprep.subr.mxu0 0.0
  %v1132 = vand.u32 %v195, 4294901760
  %1133 = vmatpush1.msra.mxu0 %v1132
  %1134 = vmatprep.subr.mxu0 0.0
  %v1135 = vand.u32 %v196, 4294901760
  %1136 = vmatpush1.msra.mxu0 %v1135
  %1137 = vmatprep.subr.mxu0 0.0
  %v1138 = vand.u32 %v197, 4294901760
  %1139 = vmatpush1.msra.mxu0 %v1138
  %1140 = vmatprep.subr.mxu0 0.0
  %v1141 = vand.u32 %v198, 4294901760
  %1142 = vmatpush1.msra.mxu0 %v1141
  %1143 = vmatprep.subr.mxu0 0.0
  %v1144 = vand.u32 %v199, 4294901760
  %1145 = vmatpush1.msra.mxu0 %v1144
  %1146 = vmatprep.subr.mxu0 0.0
  %v1147 = vand.u32 %v200, 4294901760
  %1148 = vmatpush1.msra.mxu0 %v1147
  %1149 = vmatprep.subr.mxu0 0.0
  %v1150 = vand.u32 %v201, 4294901760
  %1151 = vmatpush1.msra.mxu0 %v1150
  %1152 = vmatprep.subr.mxu0 0.0
  %v1153 = vand.u32 %v202, 4294901760
  %1154 = vmatpush1.msra.mxu0 %v1153
  %1155 = vmatprep.subr.mxu0 0.0
  %v1156 = vand.u32 %v203, 4294901760
  %1157 = vmatpush1.msra.mxu0 %v1156
  %1158 = vmatprep.subr.mxu0 0.0
  %v1159 = vand.u32 %v204, 4294901760
  %1160 = vmatpush1.msra.mxu0 %v1159
  %1161 = vmatprep.subr.mxu0 0.0
  %v1162 = vand.u32 %v205, 4294901760
  %1163 = vmatpush1.msra.mxu0 %v1162
  %1164 = vmatprep.subr.mxu0 0.0
  %v1165 = vand.u32 %v206, 4294901760
  %1166 = vmatpush1.msra.mxu0 %v1165
  %1167 = vmatprep.subr.mxu0 0.0
  %v1168 = vand.u32 %v207, 4294901760
  %1169 = vmatpush1.msra.mxu0 %v1168
  %1170 = vmatprep.subr.mxu0 0.0
  %v1171 = vand.u32 %v208, 4294901760
  %1172 = vmatpush1.msra.mxu0 %v1171
  %1173 = vmatprep.subr.mxu0 0.0
  %v1174 = vand.u32 %v209, 4294901760
  %1175 = vmatpush1.msra.mxu0 %v1174
  %1176 = vmatprep.subr.mxu0 0.0
  %v1177 = vand.u32 %v210, 4294901760
  %1178 = vmatpush1.msra.mxu0 %v1177
  %1179 = vmatprep.subr.mxu0 0.0
  %v1180 = vand.u32 %v211, 4294901760
  %1181 = vmatpush1.msra.mxu0 %v1180
  %1182 = vmatprep.subr.mxu0 0.0
  %v1183 = vand.u32 %v212, 4294901760
  %1184 = vmatpush1.msra.mxu0 %v1183
  %1185 = vmatprep.subr.mxu0 0.0
  %v1186 = vand.u32 %v213, 4294901760
  %1187 = vmatpush1.msra.mxu0 %v1186
  %1188 = vmatprep.subr.mxu0 0.0
  %v1189 = vand.u32 %v214, 4294901760
  %1190 = vmatpush1.msra.mxu0 %v1189
  %1191 = vmatprep.subr.mxu0 0.0
  %v1192 = vand.u32 %v215, 4294901760
  %1193 = vmatpush1.msra.mxu0 %v1192
  %1194 = vmatprep.subr.mxu0 0.0
  %v1195 = vand.u32 %v216, 4294901760
  %1196 = vmatpush1.msra.mxu0 %v1195
  %1197 = vmatprep.subr.mxu0 0.0
  %v1198 = vand.u32 %v217, 4294901760
  %1199 = vmatpush1.msra.mxu0 %v1198
  %1200 = vmatprep.subr.mxu0 0.0
  %v1201 = vand.u32 %v218, 4294901760
  %1202 = vmatpush1.msra.mxu0 %v1201
  %1203 = vmatprep.subr.mxu0 0.0
  %v1204 = vand.u32 %v219, 4294901760
  %1205 = vmatpush1.msra.mxu0 %v1204
  %1206 = vmatprep.subr.mxu0 0.0
  %v1207 = vand.u32 %v220, 4294901760
  %1208 = vmatpush1.msra.mxu0 %v1207
  %1209 = vmatprep.subr.mxu0 0.0
  %v1210 = vand.u32 %v221, 4294901760
  %1211 = vmatpush1.msra.mxu0 %v1210
  %1212 = vmatprep.subr.mxu0 0.0
  %v1213 = vand.u32 %v222, 4294901760
  %1214 = vmatpush1.msra.mxu0 %v1213
  %1215 = vmatprep.subr.mxu0 0.0
  %v1216 = vand.u32 %v223, 4294901760
  %1217 = vmatpush1.msra.mxu0 %v1216
  %v1218 = vand.u32 %v1119, 4294901760
  %v1219 = vsub.f32 %v1119, %v1218
  %v1220 = vand.u32 %v1219, 4294901760
  %v1221 = vsub.f32 %v1219, %v1220
  %v1222 = vand.u32 %v1221, 4294901760
  %1223 = vmatprep.mubr.f32.mxu0 %v1222
  %v1224 = vand.u32 %v1118, 4294901760
  %v1225 = vsub.f32 %v1118, %v1224
  %v1226 = vand.u32 %v1225, 4294901760
  %v1227 = vsub.f32 %v1225, %v1226
  %v1228 = vand.u32 %v1227, 4294901760
  %1229 = vmatmul.mubr.f32.gmra.mrb[0].mxu0 %v1228
  %v1230 = vpop.f32.mrb[0].mxu0
  %v1231 = vadd.f32 0.0, %v1230
  %v1232 = vpop.f32.mrb[0].mxu0
  %1233 = vdwg.mxu0
  %1234 = vmatprep.subr.mxu0 0.0
  %v1235 = vand.u32 %v192, 4294901760
  %v1236 = vsub.f32 %v192, %v1235
  %v1237 = vand.u32 %v1236, 4294901760
  %v1238 = vsub.f32 %v1236, %v1237
  %v1239 = vand.u32 %v1238, 4294901760
  %1240 = vmatpush1.msra.mxu0 %v1239
  %1241 = vmatprep.subr.mxu0 0.0
  %v1242 = vand.u32 %v193, 4294901760
  %v1243 = vsub.f32 %v193, %v1242
  %v1244 = vand.u32 %v1243, 4294901760
  %v1245 = vsub.f32 %v1243, %v1244
  %v1246 = vand.u32 %v1245, 4294901760
  %1247 = vmatpush1.msra.mxu0 %v1246
  %1248 = vmatprep.subr.mxu0 0.0
  %v1249 = vand.u32 %v194, 4294901760
  %v1250 = vsub.f32 %v194, %v1249
  %v1251 = vand.u32 %v1250, 4294901760
  %v1252 = vsub.f32 %v1250, %v1251
  %v1253 = vand.u32 %v1252, 4294901760
  %1254 = vmatpush1.msra.mxu0 %v1253
  %1255 = vmatprep.subr.mxu0 0.0
  %v1256 = vand.u32 %v195, 4294901760
  %v1257 = vsub.f32 %v195, %v1256
  %v1258 = vand.u32 %v1257, 4294901760
  %v1259 = vsub.f32 %v1257, %v1258
  %v1260 = vand.u32 %v1259, 4294901760
  %1261 = vmatpush1.msra.mxu0 %v1260
  %1262 = vmatprep.subr.mxu0 0.0
  %v1263 = vand.u32 %v196, 4294901760
  %v1264 = vsub.f32 %v196, %v1263
  %v1265 = vand.u32 %v1264, 4294901760
  %v1266 = vsub.f32 %v1264, %v1265
  %v1267 = vand.u32 %v1266, 4294901760
  %1268 = vmatpush1.msra.mxu0 %v1267
  %1269 = vmatprep.subr.mxu0 0.0
  %v1270 = vand.u32 %v197, 4294901760
  %v1271 = vsub.f32 %v197, %v1270
  %v1272 = vand.u32 %v1271, 4294901760
  %v1273 = vsub.f32 %v1271, %v1272
  %v1274 = vand.u32 %v1273, 4294901760
  %1275 = vmatpush1.msra.mxu0 %v1274
  %1276 = vmatprep.subr.mxu0 0.0
  %v1277 = vand.u32 %v198, 4294901760
  %v1278 = vsub.f32 %v198, %v1277
  %v1279 = vand.u32 %v1278, 4294901760
  %v1280 = vsub.f32 %v1278, %v1279
  %v1281 = vand.u32 %v1280, 4294901760
  %1282 = vmatpush1.msra.mxu0 %v1281
  %1283 = vmatprep.subr.mxu0 0.0
  %v1284 = vand.u32 %v199, 4294901760
  %v1285 = vsub.f32 %v199, %v1284
  %v1286 = vand.u32 %v1285, 4294901760
  %v1287 = vsub.f32 %v1285, %v1286
  %v1288 = vand.u32 %v1287, 4294901760
  %1289 = vmatpush1.msra.mxu0 %v1288
  %1290 = vmatprep.subr.mxu0 0.0
  %v1291 = vand.u32 %v200, 4294901760
  %v1292 = vsub.f32 %v200, %v1291
  %v1293 = vand.u32 %v1292, 4294901760
  %v1294 = vsub.f32 %v1292, %v1293
  %v1295 = vand.u32 %v1294, 4294901760
  %1296 = vmatpush1.msra.mxu0 %v1295
  %1297 = vmatprep.subr.mxu0 0.0
  %v1298 = vand.u32 %v201, 4294901760
  %v1299 = vsub.f32 %v201, %v1298
  %v1300 = vand.u32 %v1299, 4294901760
  %v1301 = vsub.f32 %v1299, %v1300
  %v1302 = vand.u32 %v1301, 4294901760
  %1303 = vmatpush1.msra.mxu0 %v1302
  %1304 = vmatprep.subr.mxu0 0.0
  %v1305 = vand.u32 %v202, 4294901760
  %v1306 = vsub.f32 %v202, %v1305
  %v1307 = vand.u32 %v1306, 4294901760
  %v1308 = vsub.f32 %v1306, %v1307
  %v1309 = vand.u32 %v1308, 4294901760
  %1310 = vmatpush1.msra.mxu0 %v1309
  %1311 = vmatprep.subr.mxu0 0.0
  %v1312 = vand.u32 %v203, 4294901760
  %v1313 = vsub.f32 %v203, %v1312
  %v1314 = vand.u32 %v1313, 4294901760
  %v1315 = vsub.f32 %v1313, %v1314
  %v1316 = vand.u32 %v1315, 4294901760
  %1317 = vmatpush1.msra.mxu0 %v1316
  %1318 = vmatprep.subr.mxu0 0.0
  %v1319 = vand.u32 %v204, 4294901760
  %v1320 = vsub.f32 %v204, %v1319
  %v1321 = vand.u32 %v1320, 4294901760
  %v1322 = vsub.f32 %v1320, %v1321
  %v1323 = vand.u32 %v1322, 4294901760
  %1324 = vmatpush1.msra.mxu0 %v1323
  %1325 = vmatprep.subr.mxu0 0.0
  %v1326 = vand.u32 %v205, 4294901760
  %v1327 = vsub.f32 %v205, %v1326
  %v1328 = vand.u32 %v1327, 4294901760
  %v1329 = vsub.f32 %v1327, %v1328
  %v1330 = vand.u32 %v1329, 4294901760
  %1331 = vmatpush1.msra.mxu0 %v1330
  %1332 = vmatprep.subr.mxu0 0.0
  %v1333 = vand.u32 %v206, 4294901760
  %v1334 = vsub.f32 %v206, %v1333
  %v1335 = vand.u32 %v1334, 4294901760
  %v1336 = vsub.f32 %v1334, %v1335
  %v1337 = vand.u32 %v1336, 4294901760
  %1338 = vmatpush1.msra.mxu0 %v1337
  %1339 = vmatprep.subr.mxu0 0.0
  %v1340 = vand.u32 %v207, 4294901760
  %v1341 = vsub.f32 %v207, %v1340
  %v1342 = vand.u32 %v1341, 4294901760
  %v1343 = vsub.f32 %v1341, %v1342
  %v1344 = vand.u32 %v1343, 4294901760
  %1345 = vmatpush1.msra.mxu0 %v1344
  %1346 = vmatprep.subr.mxu0 0.0
  %v1347 = vand.u32 %v208, 4294901760
  %v1348 = vsub.f32 %v208, %v1347
  %v1349 = vand.u32 %v1348, 4294901760
  %v1350 = vsub.f32 %v1348, %v1349
  %v1351 = vand.u32 %v1350, 4294901760
  %1352 = vmatpush1.msra.mxu0 %v1351
  %1353 = vmatprep.subr.mxu0 0.0
  %v1354 = vand.u32 %v209, 4294901760
  %v1355 = vsub.f32 %v209, %v1354
  %v1356 = vand.u32 %v1355, 4294901760
  %v1357 = vsub.f32 %v1355, %v1356
  %v1358 = vand.u32 %v1357, 4294901760
  %1359 = vmatpush1.msra.mxu0 %v1358
  %1360 = vmatprep.subr.mxu0 0.0
  %v1361 = vand.u32 %v210, 4294901760
  %v1362 = vsub.f32 %v210, %v1361
  %v1363 = vand.u32 %v1362, 4294901760
  %v1364 = vsub.f32 %v1362, %v1363
  %v1365 = vand.u32 %v1364, 4294901760
  %1366 = vmatpush1.msra.mxu0 %v1365
  %1367 = vmatprep.subr.mxu0 0.0
  %v1368 = vand.u32 %v211, 4294901760
  %v1369 = vsub.f32 %v211, %v1368
  %v1370 = vand.u32 %v1369, 4294901760
  %v1371 = vsub.f32 %v1369, %v1370
  %v1372 = vand.u32 %v1371, 4294901760
  %1373 = vmatpush1.msra.mxu0 %v1372
  %1374 = vmatprep.subr.mxu0 0.0
  %v1375 = vand.u32 %v212, 4294901760
  %v1376 = vsub.f32 %v212, %v1375
  %v1377 = vand.u32 %v1376, 4294901760
  %v1378 = vsub.f32 %v1376, %v1377
  %v1379 = vand.u32 %v1378, 4294901760
  %1380 = vmatpush1.msra.mxu0 %v1379
  %1381 = vmatprep.subr.mxu0 0.0
  %v1382 = vand.u32 %v213, 4294901760
  %v1383 = vsub.f32 %v213, %v1382
  %v1384 = vand.u32 %v1383, 4294901760
  %v1385 = vsub.f32 %v1383, %v1384
  %v1386 = vand.u32 %v1385, 4294901760
  %1387 = vmatpush1.msra.mxu0 %v1386
  %1388 = vmatprep.subr.mxu0 0.0
  %v1389 = vand.u32 %v214, 4294901760
  %v1390 = vsub.f32 %v214, %v1389
  %v1391 = vand.u32 %v1390, 4294901760
  %v1392 = vsub.f32 %v1390, %v1391
  %v1393 = vand.u32 %v1392, 4294901760
  %1394 = vmatpush1.msra.mxu0 %v1393
  %1395 = vmatprep.subr.mxu0 0.0
  %v1396 = vand.u32 %v215, 4294901760
  %v1397 = vsub.f32 %v215, %v1396
  %v1398 = vand.u32 %v1397, 4294901760
  %v1399 = vsub.f32 %v1397, %v1398
  %v1400 = vand.u32 %v1399, 4294901760
  %1401 = vmatpush1.msra.mxu0 %v1400
  %1402 = vmatprep.subr.mxu0 0.0
  %v1403 = vand.u32 %v216, 4294901760
  %v1404 = vsub.f32 %v216, %v1403
  %v1405 = vand.u32 %v1404, 4294901760
  %v1406 = vsub.f32 %v1404, %v1405
  %v1407 = vand.u32 %v1406, 4294901760
  %1408 = vmatpush1.msra.mxu0 %v1407
  %1409 = vmatprep.subr.mxu0 0.0
  %v1410 = vand.u32 %v217, 4294901760
  %v1411 = vsub.f32 %v217, %v1410
  %v1412 = vand.u32 %v1411, 4294901760
  %v1413 = vsub.f32 %v1411, %v1412
  %v1414 = vand.u32 %v1413, 4294901760
  %1415 = vmatpush1.msra.mxu0 %v1414
  %1416 = vmatprep.subr.mxu0 0.0
  %v1417 = vand.u32 %v218, 4294901760
  %v1418 = vsub.f32 %v218, %v1417
  %v1419 = vand.u32 %v1418, 4294901760
  %v1420 = vsub.f32 %v1418, %v1419
  %v1421 = vand.u32 %v1420, 4294901760
  %1422 = vmatpush1.msra.mxu0 %v1421
  %1423 = vmatprep.subr.mxu0 0.0
  %v1424 = vand.u32 %v219, 4294901760
  %v1425 = vsub.f32 %v219, %v1424
  %v1426 = vand.u32 %v1425, 4294901760
  %v1427 = vsub.f32 %v1425, %v1426
  %v1428 = vand.u32 %v1427, 4294901760
  %1429 = vmatpush1.msra.mxu0 %v1428
  %1430 = vmatprep.subr.mxu0 0.0
  %v1431 = vand.u32 %v220, 4294901760
  %v1432 = vsub.f32 %v220, %v1431
  %v1433 = vand.u32 %v1432, 4294901760
  %v1434 = vsub.f32 %v1432, %v1433
  %v1435 = vand.u32 %v1434, 4294901760
  %1436 = vmatpush1.msra.mxu0 %v1435
  %1437 = vmatprep.subr.mxu0 0.0
  %v1438 = vand.u32 %v221, 4294901760
  %v1439 = vsub.f32 %v221, %v1438
  %v1440 = vand.u32 %v1439, 4294901760
  %v1441 = vsub.f32 %v1439, %v1440
  %v1442 = vand.u32 %v1441, 4294901760
  %1443 = vmatpush1.msra.mxu0 %v1442
  %1444 = vmatprep.subr.mxu0 0.0
  %v1445 = vand.u32 %v222, 4294901760
  %v1446 = vsub.f32 %v222, %v1445
  %v1447 = vand.u32 %v1446, 4294901760
  %v1448 = vsub.f32 %v1446, %v1447
  %v1449 = vand.u32 %v1448, 4294901760
  %1450 = vmatpush1.msra.mxu0 %v1449
  %1451 = vmatprep.subr.mxu0 0.0
  %v1452 = vand.u32 %v223, 4294901760
  %v1453 = vsub.f32 %v223, %v1452
  %v1454 = vand.u32 %v1453, 4294901760
  %v1455 = vsub.f32 %v1453, %v1454
  %v1456 = vand.u32 %v1455, 4294901760
  %1457 = vmatpush1.msra.mxu0 %v1456
  %v1458 = vand.u32 %v1119, 4294901760
  %1459 = vmatprep.mubr.f32.mxu0 %v1458
  %v1460 = vand.u32 %v1118, 4294901760
  %1461 = vmatmul.mubr.f32.gmra.mrb[0].mxu0 %v1460
  %v1462 = vpop.f32.mrb[0].mxu0
  %v1463 = vadd.f32 %v1231, %v1462
  %v1464 = vpop.f32.mrb[0].mxu0
  %1465 = vdwg.mxu0
  %1466 = vmatprep.subr.mxu0 0.0
  %v1467 = vand.u32 %v192, 4294901760
  %v1468 = vsub.f32 %v192, %v1467
  %1469 = vmatpush1.msra.mxu0 %v1468
  %1470 = vmatprep.subr.mxu0 0.0
  %v1471 = vand.u32 %v193, 4294901760
  %v1472 = vsub.f32 %v193, %v1471
  %1473 = vmatpush1.msra.mxu0 %v1472
  %1474 = vmatprep.subr.mxu0 0.0
  %v1475 = vand.u32 %v194, 4294901760
  %v1476 = vsub.f32 %v194, %v1475
  %1477 = vmatpush1.msra.mxu0 %v1476
  %1478 = vmatprep.subr.mxu0 0.0
  %v1479 = vand.u32 %v195, 4294901760
  %v1480 = vsub.f32 %v195, %v1479
  %1481 = vmatpush1.msra.mxu0 %v1480
  %1482 = vmatprep.subr.mxu0 0.0
  %v1483 = vand.u32 %v196, 4294901760
  %v1484 = vsub.f32 %v196, %v1483
  %1485 = vmatpush1.msra.mxu0 %v1484
  %1486 = vmatprep.subr.mxu0 0.0
  %v1487 = vand.u32 %v197, 4294901760
  %v1488 = vsub.f32 %v197, %v1487
  %1489 = vmatpush1.msra.mxu0 %v1488
  %1490 = vmatprep.subr.mxu0 0.0
  %v1491 = vand.u32 %v198, 4294901760
  %v1492 = vsub.f32 %v198, %v1491
  %1493 = vmatpush1.msra.mxu0 %v1492
  %1494 = vmatprep.subr.mxu0 0.0
  %v1495 = vand.u32 %v199, 4294901760
  %v1496 = vsub.f32 %v199, %v1495
  %1497 = vmatpush1.msra.mxu0 %v1496
  %1498 = vmatprep.subr.mxu0 0.0
  %v1499 = vand.u32 %v200, 4294901760
  %v1500 = vsub.f32 %v200, %v1499
  %1501 = vmatpush1.msra.mxu0 %v1500
  %1502 = vmatprep.subr.mxu0 0.0
  %v1503 = vand.u32 %v201, 4294901760
  %v1504 = vsub.f32 %v201, %v1503
  %1505 = vmatpush1.msra.mxu0 %v1504
  %1506 = vmatprep.subr.mxu0 0.0
  %v1507 = vand.u32 %v202, 4294901760
  %v1508 = vsub.f32 %v202, %v1507
  %1509 = vmatpush1.msra.mxu0 %v1508
  %1510 = vmatprep.subr.mxu0 0.0
  %v1511 = vand.u32 %v203, 4294901760
  %v1512 = vsub.f32 %v203, %v1511
  %1513 = vmatpush1.msra.mxu0 %v1512
  %1514 = vmatprep.subr.mxu0 0.0
  %v1515 = vand.u32 %v204, 4294901760
  %v1516 = vsub.f32 %v204, %v1515
  %1517 = vmatpush1.msra.mxu0 %v1516
  %1518 = vmatprep.subr.mxu0 0.0
  %v1519 = vand.u32 %v205, 4294901760
  %v1520 = vsub.f32 %v205, %v1519
  %1521 = vmatpush1.msra.mxu0 %v1520
  %1522 = vmatprep.subr.mxu0 0.0
  %v1523 = vand.u32 %v206, 4294901760
  %v1524 = vsub.f32 %v206, %v1523
  %1525 = vmatpush1.msra.mxu0 %v1524
  %1526 = vmatprep.subr.mxu0 0.0
  %v1527 = vand.u32 %v207, 4294901760
  %v1528 = vsub.f32 %v207, %v1527
  %1529 = vmatpush1.msra.mxu0 %v1528
  %1530 = vmatprep.subr.mxu0 0.0
  %v1531 = vand.u32 %v208, 4294901760
  %v1532 = vsub.f32 %v208, %v1531
  %1533 = vmatpush1.msra.mxu0 %v1532
  %1534 = vmatprep.subr.mxu0 0.0
  %v1535 = vand.u32 %v209, 4294901760
  %v1536 = vsub.f32 %v209, %v1535
  %1537 = vmatpush1.msra.mxu0 %v1536
  %1538 = vmatprep.subr.mxu0 0.0
  %v1539 = vand.u32 %v210, 4294901760
  %v1540 = vsub.f32 %v210, %v1539
  %1541 = vmatpush1.msra.mxu0 %v1540
  %1542 = vmatprep.subr.mxu0 0.0
  %v1543 = vand.u32 %v211, 4294901760
  %v1544 = vsub.f32 %v211, %v1543
  %1545 = vmatpush1.msra.mxu0 %v1544
  %1546 = vmatprep.subr.mxu0 0.0
  %v1547 = vand.u32 %v212, 4294901760
  %v1548 = vsub.f32 %v212, %v1547
  %1549 = vmatpush1.msra.mxu0 %v1548
  %1550 = vmatprep.subr.mxu0 0.0
  %v1551 = vand.u32 %v213, 4294901760
  %v1552 = vsub.f32 %v213, %v1551
  %1553 = vmatpush1.msra.mxu0 %v1552
  %1554 = vmatprep.subr.mxu0 0.0
  %v1555 = vand.u32 %v214, 4294901760
  %v1556 = vsub.f32 %v214, %v1555
  %1557 = vmatpush1.msra.mxu0 %v1556
  %1558 = vmatprep.subr.mxu0 0.0
  %v1559 = vand.u32 %v215, 4294901760
  %v1560 = vsub.f32 %v215, %v1559
  %1561 = vmatpush1.msra.mxu0 %v1560
  %1562 = vmatprep.subr.mxu0 0.0
  %v1563 = vand.u32 %v216, 4294901760
  %v1564 = vsub.f32 %v216, %v1563
  %1565 = vmatpush1.msra.mxu0 %v1564
  %1566 = vmatprep.subr.mxu0 0.0
  %v1567 = vand.u32 %v217, 4294901760
  %v1568 = vsub.f32 %v217, %v1567
  %1569 = vmatpush1.msra.mxu0 %v1568
  %1570 = vmatprep.subr.mxu0 0.0
  %v1571 = vand.u32 %v218, 4294901760
  %v1572 = vsub.f32 %v218, %v1571
  %1573 = vmatpush1.msra.mxu0 %v1572
  %1574 = vmatprep.subr.mxu0 0.0
  %v1575 = vand.u32 %v219, 4294901760
  %v1576 = vsub.f32 %v219, %v1575
  %1577 = vmatpush1.msra.mxu0 %v1576
  %1578 = vmatprep.subr.mxu0 0.0
  %v1579 = vand.u32 %v220, 4294901760
  %v1580 = vsub.f32 %v220, %v1579
  %1581 = vmatpush1.msra.mxu0 %v1580
  %1582 = vmatprep.subr.mxu0 0.0
  %v1583 = vand.u32 %v221, 4294901760
  %v1584 = vsub.f32 %v221, %v1583
  %1585 = vmatpush1.msra.mxu0 %v1584
  %1586 = vmatprep.subr.mxu0 0.0
  %v1587 = vand.u32 %v222, 4294901760
  %v1588 = vsub.f32 %v222, %v1587
  %1589 = vmatpush1.msra.mxu0 %v1588
  %1590 = vmatprep.subr.mxu0 0.0
  %v1591 = vand.u32 %v223, 4294901760
  %v1592 = vsub.f32 %v223, %v1591
  %1593 = vmatpush1.msra.mxu0 %v1592
  %v1594 = vand.u32 %v1119, 4294901760
  %v1595 = vsub.f32 %v1119, %v1594
  %1596 = vmatprep.mubr.f32.mxu0 %v1595
  %v1597 = vand.u32 %v1118, 4294901760
  %v1598 = vsub.f32 %v1118, %v1597
  %1599 = vmatmul.mubr.f32.gmra.mrb[0].mxu0 %v1598
  %v1600 = vpop.f32.mrb[0].mxu0
  %v1601 = vadd.f32 %v1463, %v1600
  %v1602 = vpop.f32.mrb[0].mxu0
  %1603 = vdwg.mxu0
  %1604 = vmatprep.subr.mxu0 0.0
  %v1605 = vand.u32 %v192, 4294901760
  %1606 = vmatpush1.msra.mxu0 %v1605
  %1607 = vmatprep.subr.mxu0 0.0
  %v1608 = vand.u32 %v193, 4294901760
  %1609 = vmatpush1.msra.mxu0 %v1608
  %1610 = vmatprep.subr.mxu0 0.0
  %v1611 = vand.u32 %v194, 4294901760
  %1612 = vmatpush1.msra.mxu0 %v1611
  %1613 = vmatprep.subr.mxu0 0.0
  %v1614 = vand.u32 %v195, 4294901760
  %1615 = vmatpush1.msra.mxu0 %v1614
  %1616 = vmatprep.subr.mxu0 0.0
  %v1617 = vand.u32 %v196, 4294901760
  %1618 = vmatpush1.msra.mxu0 %v1617
  %1619 = vmatprep.subr.mxu0 0.0
  %v1620 = vand.u32 %v197, 4294901760
  %1621 = vmatpush1.msra.mxu0 %v1620
  %1622 = vmatprep.subr.mxu0 0.0
  %v1623 = vand.u32 %v198, 4294901760
  %1624 = vmatpush1.msra.mxu0 %v1623
  %1625 = vmatprep.subr.mxu0 0.0
  %v1626 = vand.u32 %v199, 4294901760
  %1627 = vmatpush1.msra.mxu0 %v1626
  %1628 = vmatprep.subr.mxu0 0.0
  %v1629 = vand.u32 %v200, 4294901760
  %1630 = vmatpush1.msra.mxu0 %v1629
  %1631 = vmatprep.subr.mxu0 0.0
  %v1632 = vand.u32 %v201, 4294901760
  %1633 = vmatpush1.msra.mxu0 %v1632
  %1634 = vmatprep.subr.mxu0 0.0
  %v1635 = vand.u32 %v202, 4294901760
  %1636 = vmatpush1.msra.mxu0 %v1635
  %1637 = vmatprep.subr.mxu0 0.0
  %v1638 = vand.u32 %v203, 4294901760
  %1639 = vmatpush1.msra.mxu0 %v1638
  %1640 = vmatprep.subr.mxu0 0.0
  %v1641 = vand.u32 %v204, 4294901760
  %1642 = vmatpush1.msra.mxu0 %v1641
  %1643 = vmatprep.subr.mxu0 0.0
  %v1644 = vand.u32 %v205, 4294901760
  %1645 = vmatpush1.msra.mxu0 %v1644
  %1646 = vmatprep.subr.mxu0 0.0
  %v1647 = vand.u32 %v206, 4294901760
  %1648 = vmatpush1.msra.mxu0 %v1647
  %1649 = vmatprep.subr.mxu0 0.0
  %v1650 = vand.u32 %v207, 4294901760
  %1651 = vmatpush1.msra.mxu0 %v1650
  %1652 = vmatprep.subr.mxu0 0.0
  %v1653 = vand.u32 %v208, 4294901760
  %1654 = vmatpush1.msra.mxu0 %v1653
  %1655 = vmatprep.subr.mxu0 0.0
  %v1656 = vand.u32 %v209, 4294901760
  %1657 = vmatpush1.msra.mxu0 %v1656
  %1658 = vmatprep.subr.mxu0 0.0
  %v1659 = vand.u32 %v210, 4294901760
  %1660 = vmatpush1.msra.mxu0 %v1659
  %1661 = vmatprep.subr.mxu0 0.0
  %v1662 = vand.u32 %v211, 4294901760
  %1663 = vmatpush1.msra.mxu0 %v1662
  %1664 = vmatprep.subr.mxu0 0.0
  %v1665 = vand.u32 %v212, 4294901760
  %1666 = vmatpush1.msra.mxu0 %v1665
  %1667 = vmatprep.subr.mxu0 0.0
  %v1668 = vand.u32 %v213, 4294901760
  %1669 = vmatpush1.msra.mxu0 %v1668
  %1670 = vmatprep.subr.mxu0 0.0
  %v1671 = vand.u32 %v214, 4294901760
  %1672 = vmatpush1.msra.mxu0 %v1671
  %1673 = vmatprep.subr.mxu0 0.0
  %v1674 = vand.u32 %v215, 4294901760
  %1675 = vmatpush1.msra.mxu0 %v1674
  %1676 = vmatprep.subr.mxu0 0.0
  %v1677 = vand.u32 %v216, 4294901760
  %1678 = vmatpush1.msra.mxu0 %v1677
  %1679 = vmatprep.subr.mxu0 0.0
  %v1680 = vand.u32 %v217, 4294901760
  %1681 = vmatpush1.msra.mxu0 %v1680
  %1682 = vmatprep.subr.mxu0 0.0
  %v1683 = vand.u32 %v218, 4294901760
  %1684 = vmatpush1.msra.mxu0 %v1683
  %1685 = vmatprep.subr.mxu0 0.0
  %v1686 = vand.u32 %v219, 4294901760
  %1687 = vmatpush1.msra.mxu0 %v1686
  %1688 = vmatprep.subr.mxu0 0.0
  %v1689 = vand.u32 %v220, 4294901760
  %1690 = vmatpush1.msra.mxu0 %v1689
  %1691 = vmatprep.subr.mxu0 0.0
  %v1692 = vand.u32 %v221, 4294901760
  %1693 = vmatpush1.msra.mxu0 %v1692
  %1694 = vmatprep.subr.mxu0 0.0
  %v1695 = vand.u32 %v222, 4294901760
  %1696 = vmatpush1.msra.mxu0 %v1695
  %1697 = vmatprep.subr.mxu0 0.0
  %v1698 = vand.u32 %v223, 4294901760
  %1699 = vmatpush1.msra.mxu0 %v1698
  %v1700 = vand.u32 %v1119, 4294901760
  %v1701 = vsub.f32 %v1119, %v1700
  %v1702 = vand.u32 %v1701, 4294901760
  %1703 = vmatprep.mubr.f32.mxu0 %v1702
  %v1704 = vand.u32 %v1118, 4294901760
  %v1705 = vsub.f32 %v1118, %v1704
  %v1706 = vand.u32 %v1705, 4294901760
  %1707 = vmatmul.mubr.f32.gmra.mrb[0].mxu0 %v1706
  %v1708 = vpop.f32.mrb[0].mxu0
  %v1709 = vadd.f32 %v1601, %v1708
  %v1710 = vpop.f32.mrb[0].mxu0
  %1711 = vdwg.mxu0
  %1712 = vmatprep.subr.mxu0 0.0
  %v1713 = vand.u32 %v192, 4294901760
  %v1714 = vsub.f32 %v192, %v1713
  %v1715 = vand.u32 %v1714, 4294901760
  %1716 = vmatpush1.msra.mxu0 %v1715
  %1717 = vmatprep.subr.mxu0 0.0
  %v1718 = vand.u32 %v193, 4294901760
  %v1719 = vsub.f32 %v193, %v1718
  %v1720 = vand.u32 %v1719, 4294901760
  %1721 = vmatpush1.msra.mxu0 %v1720
  %1722 = vmatprep.subr.mxu0 0.0
  %v1723 = vand.u32 %v194, 4294901760
  %v1724 = vsub.f32 %v194, %v1723
  %v1725 = vand.u32 %v1724, 4294901760
  %1726 = vmatpush1.msra.mxu0 %v1725
  %1727 = vmatprep.subr.mxu0 0.0
  %v1728 = vand.u32 %v195, 4294901760
  %v1729 = vsub.f32 %v195, %v1728
  %v1730 = vand.u32 %v1729, 4294901760
  %1731 = vmatpush1.msra.mxu0 %v1730
  %1732 = vmatprep.subr.mxu0 0.0
  %v1733 = vand.u32 %v196, 4294901760
  %v1734 = vsub.f32 %v196, %v1733
  %v1735 = vand.u32 %v1734, 4294901760
  %1736 = vmatpush1.msra.mxu0 %v1735
  %1737 = vmatprep.subr.mxu0 0.0
  %v1738 = vand.u32 %v197, 4294901760
  %v1739 = vsub.f32 %v197, %v1738
  %v1740 = vand.u32 %v1739, 4294901760
  %1741 = vmatpush1.msra.mxu0 %v1740
  %1742 = vmatprep.subr.mxu0 0.0
  %v1743 = vand.u32 %v198, 4294901760
  %v1744 = vsub.f32 %v198, %v1743
  %v1745 = vand.u32 %v1744, 4294901760
  %1746 = vmatpush1.msra.mxu0 %v1745
  %1747 = vmatprep.subr.mxu0 0.0
  %v1748 = vand.u32 %v199, 4294901760
  %v1749 = vsub.f32 %v199, %v1748
  %v1750 = vand.u32 %v1749, 4294901760
  %1751 = vmatpush1.msra.mxu0 %v1750
  %1752 = vmatprep.subr.mxu0 0.0
  %v1753 = vand.u32 %v200, 4294901760
  %v1754 = vsub.f32 %v200, %v1753
  %v1755 = vand.u32 %v1754, 4294901760
  %1756 = vmatpush1.msra.mxu0 %v1755
  %1757 = vmatprep.subr.mxu0 0.0
  %v1758 = vand.u32 %v201, 4294901760
  %v1759 = vsub.f32 %v201, %v1758
  %v1760 = vand.u32 %v1759, 4294901760
  %1761 = vmatpush1.msra.mxu0 %v1760
  %1762 = vmatprep.subr.mxu0 0.0
  %v1763 = vand.u32 %v202, 4294901760
  %v1764 = vsub.f32 %v202, %v1763
  %v1765 = vand.u32 %v1764, 4294901760
  %1766 = vmatpush1.msra.mxu0 %v1765
  %1767 = vmatprep.subr.mxu0 0.0
  %v1768 = vand.u32 %v203, 4294901760
  %v1769 = vsub.f32 %v203, %v1768
  %v1770 = vand.u32 %v1769, 4294901760
  %1771 = vmatpush1.msra.mxu0 %v1770
  %1772 = vmatprep.subr.mxu0 0.0
  %v1773 = vand.u32 %v204, 4294901760
  %v1774 = vsub.f32 %v204, %v1773
  %v1775 = vand.u32 %v1774, 4294901760
  %1776 = vmatpush1.msra.mxu0 %v1775
  %1777 = vmatprep.subr.mxu0 0.0
  %v1778 = vand.u32 %v205, 4294901760
  %v1779 = vsub.f32 %v205, %v1778
  %v1780 = vand.u32 %v1779, 4294901760
  %1781 = vmatpush1.msra.mxu0 %v1780
  %1782 = vmatprep.subr.mxu0 0.0
  %v1783 = vand.u32 %v206, 4294901760
  %v1784 = vsub.f32 %v206, %v1783
  %v1785 = vand.u32 %v1784, 4294901760
  %1786 = vmatpush1.msra.mxu0 %v1785
  %1787 = vmatprep.subr.mxu0 0.0
  %v1788 = vand.u32 %v207, 4294901760
  %v1789 = vsub.f32 %v207, %v1788
  %v1790 = vand.u32 %v1789, 4294901760
  %1791 = vmatpush1.msra.mxu0 %v1790
  %1792 = vmatprep.subr.mxu0 0.0
  %v1793 = vand.u32 %v208, 4294901760
  %v1794 = vsub.f32 %v208, %v1793
  %v1795 = vand.u32 %v1794, 4294901760
  %1796 = vmatpush1.msra.mxu0 %v1795
  %1797 = vmatprep.subr.mxu0 0.0
  %v1798 = vand.u32 %v209, 4294901760
  %v1799 = vsub.f32 %v209, %v1798
  %v1800 = vand.u32 %v1799, 4294901760
  %1801 = vmatpush1.msra.mxu0 %v1800
  %1802 = vmatprep.subr.mxu0 0.0
  %v1803 = vand.u32 %v210, 4294901760
  %v1804 = vsub.f32 %v210, %v1803
  %v1805 = vand.u32 %v1804, 4294901760
  %1806 = vmatpush1.msra.mxu0 %v1805
  %1807 = vmatprep.subr.mxu0 0.0
  %v1808 = vand.u32 %v211, 4294901760
  %v1809 = vsub.f32 %v211, %v1808
  %v1810 = vand.u32 %v1809, 4294901760
  %1811 = vmatpush1.msra.mxu0 %v1810
  %1812 = vmatprep.subr.mxu0 0.0
  %v1813 = vand.u32 %v212, 4294901760
  %v1814 = vsub.f32 %v212, %v1813
  %v1815 = vand.u32 %v1814, 4294901760
  %1816 = vmatpush1.msra.mxu0 %v1815
  %1817 = vmatprep.subr.mxu0 0.0
  %v1818 = vand.u32 %v213, 4294901760
  %v1819 = vsub.f32 %v213, %v1818
  %v1820 = vand.u32 %v1819, 4294901760
  %1821 = vmatpush1.msra.mxu0 %v1820
  %1822 = vmatprep.subr.mxu0 0.0
  %v1823 = vand.u32 %v214, 4294901760
  %v1824 = vsub.f32 %v214, %v1823
  %v1825 = vand.u32 %v1824, 4294901760
  %1826 = vmatpush1.msra.mxu0 %v1825
  %1827 = vmatprep.subr.mxu0 0.0
  %v1828 = vand.u32 %v215, 4294901760
  %v1829 = vsub.f32 %v215, %v1828
  %v1830 = vand.u32 %v1829, 4294901760
  %1831 = vmatpush1.msra.mxu0 %v1830
  %1832 = vmatprep.subr.mxu0 0.0
  %v1833 = vand.u32 %v216, 4294901760
  %v1834 = vsub.f32 %v216, %v1833
  %v1835 = vand.u32 %v1834, 4294901760
  %1836 = vmatpush1.msra.mxu0 %v1835
  %1837 = vmatprep.subr.mxu0 0.0
  %v1838 = vand.u32 %v217, 4294901760
  %v1839 = vsub.f32 %v217, %v1838
  %v1840 = vand.u32 %v1839, 4294901760
  %1841 = vmatpush1.msra.mxu0 %v1840
  %1842 = vmatprep.subr.mxu0 0.0
  %v1843 = vand.u32 %v218, 4294901760
  %v1844 = vsub.f32 %v218, %v1843
  %v1845 = vand.u32 %v1844, 4294901760
  %1846 = vmatpush1.msra.mxu0 %v1845
  %1847 = vmatprep.subr.mxu0 0.0
  %v1848 = vand.u32 %v219, 4294901760
  %v1849 = vsub.f32 %v219, %v1848
  %v1850 = vand.u32 %v1849, 4294901760
  %1851 = vmatpush1.msra.mxu0 %v1850
  %1852 = vmatprep.subr.mxu0 0.0
  %v1853 = vand.u32 %v220, 4294901760
  %v1854 = vsub.f32 %v220, %v1853
  %v1855 = vand.u32 %v1854, 4294901760
  %1856 = vmatpush1.msra.mxu0 %v1855
  %1857 = vmatprep.subr.mxu0 0.0
  %v1858 = vand.u32 %v221, 4294901760
  %v1859 = vsub.f32 %v221, %v1858
  %v1860 = vand.u32 %v1859, 4294901760
  %1861 = vmatpush1.msra.mxu0 %v1860
  %1862 = vmatprep.subr.mxu0 0.0
  %v1863 = vand.u32 %v222, 4294901760
  %v1864 = vsub.f32 %v222, %v1863
  %v1865 = vand.u32 %v1864, 4294901760
  %1866 = vmatpush1.msra.mxu0 %v1865
  %1867 = vmatprep.subr.mxu0 0.0
  %v1868 = vand.u32 %v223, 4294901760
  %v1869 = vsub.f32 %v223, %v1868
  %v1870 = vand.u32 %v1869, 4294901760
  %1871 = vmatpush1.msra.mxu0 %v1870
  %v1872 = vand.u32 %v1119, 4294901760
  %1873 = vmatprep.mubr.f32.mxu0 %v1872
  %v1874 = vand.u32 %v1118, 4294901760
  %1875 = vmatmul.mubr.f32.gmra.mrb[0].mxu0 %v1874
  %v1876 = vpop.f32.mrb[0].mxu0
  %v1877 = vadd.f32 %v1709, %v1876
  %v1878 = vpop.f32.mrb[0].mxu0
  %1879 = vdwg.mxu0
  %1880 = vmatprep.subr.mxu0 0.0
  %v1881 = vand.u32 %v192, 4294901760
  %1882 = vmatpush1.msra.mxu0 %v1881
  %1883 = vmatprep.subr.mxu0 0.0
  %v1884 = vand.u32 %v193, 4294901760
  %1885 = vmatpush1.msra.mxu0 %v1884
  %1886 = vmatprep.subr.mxu0 0.0
  %v1887 = vand.u32 %v194, 4294901760
  %1888 = vmatpush1.msra.mxu0 %v1887
  %1889 = vmatprep.subr.mxu0 0.0
  %v1890 = vand.u32 %v195, 4294901760
  %1891 = vmatpush1.msra.mxu0 %v1890
  %1892 = vmatprep.subr.mxu0 0.0
  %v1893 = vand.u32 %v196, 4294901760
  %1894 = vmatpush1.msra.mxu0 %v1893
  %1895 = vmatprep.subr.mxu0 0.0
  %v1896 = vand.u32 %v197, 4294901760
  %1897 = vmatpush1.msra.mxu0 %v1896
  %1898 = vmatprep.subr.mxu0 0.0
  %v1899 = vand.u32 %v198, 4294901760
  %1900 = vmatpush1.msra.mxu0 %v1899
  %1901 = vmatprep.subr.mxu0 0.0
  %v1902 = vand.u32 %v199, 4294901760
  %1903 = vmatpush1.msra.mxu0 %v1902
  %1904 = vmatprep.subr.mxu0 0.0
  %v1905 = vand.u32 %v200, 4294901760
  %1906 = vmatpush1.msra.mxu0 %v1905
  %1907 = vmatprep.subr.mxu0 0.0
  %v1908 = vand.u32 %v201, 4294901760
  %1909 = vmatpush1.msra.mxu0 %v1908
  %1910 = vmatprep.subr.mxu0 0.0
  %v1911 = vand.u32 %v202, 4294901760
  %1912 = vmatpush1.msra.mxu0 %v1911
  %1913 = vmatprep.subr.mxu0 0.0
  %v1914 = vand.u32 %v203, 4294901760
  %1915 = vmatpush1.msra.mxu0 %v1914
  %1916 = vmatprep.subr.mxu0 0.0
  %v1917 = vand.u32 %v204, 4294901760
  %1918 = vmatpush1.msra.mxu0 %v1917
  %1919 = vmatprep.subr.mxu0 0.0
  %v1920 = vand.u32 %v205, 4294901760
  %1921 = vmatpush1.msra.mxu0 %v1920
  %1922 = vmatprep.subr.mxu0 0.0
  %v1923 = vand.u32 %v206, 4294901760
  %1924 = vmatpush1.msra.mxu0 %v1923
  %1925 = vmatprep.subr.mxu0 0.0
  %v1926 = vand.u32 %v207, 4294901760
  %1927 = vmatpush1.msra.mxu0 %v1926
  %1928 = vmatprep.subr.mxu0 0.0
  %v1929 = vand.u32 %v208, 4294901760
  %1930 = vmatpush1.msra.mxu0 %v1929
  %1931 = vmatprep.subr.mxu0 0.0
  %v1932 = vand.u32 %v209, 4294901760
  %1933 = vmatpush1.msra.mxu0 %v1932
  %1934 = vmatprep.subr.mxu0 0.0
  %v1935 = vand.u32 %v210, 4294901760
  %1936 = vmatpush1.msra.mxu0 %v1935
  %1937 = vmatprep.subr.mxu0 0.0
  %v1938 = vand.u32 %v211, 4294901760
  %1939 = vmatpush1.msra.mxu0 %v1938
  %1940 = vmatprep.subr.mxu0 0.0
  %v1941 = vand.u32 %v212, 4294901760
  %1942 = vmatpush1.msra.mxu0 %v1941
  %1943 = vmatprep.subr.mxu0 0.0
  %v1944 = vand.u32 %v213, 4294901760
  %1945 = vmatpush1.msra.mxu0 %v1944
  %1946 = vmatprep.subr.mxu0 0.0
  %v1947 = vand.u32 %v214, 4294901760
  %1948 = vmatpush1.msra.mxu0 %v1947
  %1949 = vmatprep.subr.mxu0 0.0
  %v1950 = vand.u32 %v215, 4294901760
  %1951 = vmatpush1.msra.mxu0 %v1950
  %1952 = vmatprep.subr.mxu0 0.0
  %v1953 = vand.u32 %v216, 4294901760
  %1954 = vmatpush1.msra.mxu0 %v1953
  %1955 = vmatprep.subr.mxu0 0.0
  %v1956 = vand.u32 %v217, 4294901760
  %1957 = vmatpush1.msra.mxu0 %v1956
  %1958 = vmatprep.subr.mxu0 0.0
  %v1959 = vand.u32 %v218, 4294901760
  %1960 = vmatpush1.msra.mxu0 %v1959
  %1961 = vmatprep.subr.mxu0 0.0
  %v1962 = vand.u32 %v219, 4294901760
  %1963 = vmatpush1.msra.mxu0 %v1962
  %1964 = vmatprep.subr.mxu0 0.0
  %v1965 = vand.u32 %v220, 4294901760
  %1966 = vmatpush1.msra.mxu0 %v1965
  %1967 = vmatprep.subr.mxu0 0.0
  %v1968 = vand.u32 %v221, 4294901760
  %1969 = vmatpush1.msra.mxu0 %v1968
  %1970 = vmatprep.subr.mxu0 0.0
  %v1971 = vand.u32 %v222, 4294901760
  %1972 = vmatpush1.msra.mxu0 %v1971
  %1973 = vmatprep.subr.mxu0 0.0
  %v1974 = vand.u32 %v223, 4294901760
  %1975 = vmatpush1.msra.mxu0 %v1974
  %v1976 = vand.u32 %v1119, 4294901760
  %1977 = vmatprep.mubr.f32.mxu0 %v1976
  %v1978 = vand.u32 %v1118, 4294901760
  %1979 = vmatmul.mubr.f32.gmra.mrb[0].mxu0 %v1978
  %v1980 = vpop.f32.mrb[0].mxu0
  %v1981 = vadd.f32 %v1877, %v1980
  %v1982 = vpop.f32.mrb[0].mxu0
  %1983 = vdwg.mxu0
  %v1984 = vmul.f32 %v1107, 0.03125
  %v1985 = vmul.f32 %v1981, 0.03125
  %v1986 = vmul.f32 %v1984, %v1984
  %v1987 = vsub.f32 %v1985, %v1986
  %v1988 = vadd.f32 %v1987, 1e-05
  %v1989 = vrsqrt.pop %v1988
  %vm1990 = vcmask 64512
  %v1992 = vsel %vm1990, %v1989, 0
  %v1994 = vand.u32 %v236, 4294901760
  %1995 = vmatprep.subr.mxu0 %v1994
  %v1996 = vand.u32 %v235, 4294901760
  %1997 = vmatpush1.msra.mxu0 %v1996
  %1998 = vmatprep.subr.mxu0 0.0
  %1999 = vmatpush1.msra.mxu0 0.0
  %2000 = vmatprep.subr.mxu0 0.0
  %2001 = vmatpush1.msra.mxu0 0.0
  %2002 = vmatprep.subr.mxu0 0.0
  %2003 = vmatpush1.msra.mxu0 0.0
  %2004 = vmatprep.subr.mxu0 0.0
  %2005 = vmatpush1.msra.mxu0 0.0
  %2006 = vmatprep.subr.mxu0 0.0
  %2007 = vmatpush1.msra.mxu0 0.0
  %2008 = vmatprep.subr.mxu0 0.0
  %2009 = vmatpush1.msra.mxu0 0.0
  %2010 = vmatprep.subr.mxu0 0.0
  %2011 = vmatpush1.msra.mxu0 0.0
  %2012 = vmatprep.subr.mxu0 0.0
  %2013 = vmatpush1.msra.mxu0 0.0
  %2014 = vmatprep.subr.mxu0 0.0
  %2015 = vmatpush1.msra.mxu0 0.0
  %2016 = vmatprep.subr.mxu0 0.0
  %2017 = vmatpush1.msra.mxu0 0.0
  %2018 = vmatprep.subr.mxu0 0.0
  %2019 = vmatpush1.msra.mxu0 0.0
  %2020 = vmatprep.subr.mxu0 0.0
  %2021 = vmatpush1.msra.mxu0 0.0
  %2022 = vmatprep.subr.mxu0 0.0
  %2023 = vmatpush1.msra.mxu0 0.0
  %2024 = vmatprep.subr.mxu0 0.0
  %2025 = vmatpush1.msra.mxu0 0.0
  %2026 = vmatprep.subr.mxu0 0.0
  %2027 = vmatpush1.msra.mxu0 0.0
  %2028 = vmatprep.subr.mxu0 0.0
  %2029 = vmatpush1.msra.mxu0 0.0
  %2030 = vmatprep.subr.mxu0 0.0
  %2031 = vmatpush1.msra.mxu0 0.0
  %2032 = vmatprep.subr.mxu0 0.0
  %2033 = vmatpush1.msra.mxu0 0.0
  %2034 = vmatprep.subr.mxu0 0.0
  %2035 = vmatpush1.msra.mxu0 0.0
  %2036 = vmatprep.subr.mxu0 0.0
  %2037 = vmatpush1.msra.mxu0 0.0
  %2038 = vmatprep.subr.mxu0 0.0
  %2039 = vmatpush1.msra.mxu0 0.0
  %2040 = vmatprep.subr.mxu0 0.0
  %2041 = vmatpush1.msra.mxu0 0.0
  %2042 = vmatprep.subr.mxu0 0.0
  %2043 = vmatpush1.msra.mxu0 0.0
  %2044 = vmatprep.subr.mxu0 0.0
  %2045 = vmatpush1.msra.mxu0 0.0
  %2046 = vmatprep.subr.mxu0 0.0
  %2047 = vmatpush1.msra.mxu0 0.0
  %2048 = vmatprep.subr.mxu0 0.0
  %2049 = vmatpush1.msra.mxu0 0.0
  %2050 = vmatprep.subr.mxu0 0.0
  %2051 = vmatpush1.msra.mxu0 0.0
  %2052 = vmatprep.subr.mxu0 0.0
  %2053 = vmatpush1.msra.mxu0 0.0
  %2054 = vmatprep.subr.mxu0 0.0
  %2055 = vmatpush1.msra.mxu0 0.0
  %2056 = vmatprep.subr.mxu0 0.0
  %2057 = vmatpush1.msra.mxu0 0.0
  %2058 = vmatprep.subr.mxu0 0.0
  %2059 = vmatpush1.msra.mxu0 0.0
  %2060 = vmatprep.mubr.f32.mxu0 0.0
  %v2061 = vand.u32 %v1992, 4294901760
  %v2062 = vsub.f32 %v1992, %v2061
  %v2063 = vand.u32 %v2062, 4294901760
  %v2064 = vsub.f32 %v2062, %v2063
  %v2065 = vand.u32 %v2064, 4294901760
  %2066 = vmatmul.mubr.f32.gmra.mrb[0].mxu0 %v2065
  %v2067 = vpop.f32.mrb[0].mxu0
  %v2068 = vadd.f32 0.0, %v2067
  %v2069 = vpop.f32.mrb[0].mxu0
  %v2070 = vadd.f32 0.0, %v2069
  %2071 = vdwg.mxu0
  %v2072 = vand.u32 %v236, 4294901760
  %v2073 = vsub.f32 %v236, %v2072
  %v2074 = vand.u32 %v2073, 4294901760
  %v2075 = vsub.f32 %v2073, %v2074
  %v2076 = vand.u32 %v2075, 4294901760
  %2077 = vmatprep.subr.mxu0 %v2076
  %v2078 = vand.u32 %v235, 4294901760
  %v2079 = vsub.f32 %v235, %v2078
  %v2080 = vand.u32 %v2079, 4294901760
  %v2081 = vsub.f32 %v2079, %v2080
  %v2082 = vand.u32 %v2081, 4294901760
  %2083 = vmatpush1.msra.mxu0 %v2082
  %2084 = vmatprep.subr.mxu0 0.0
  %2085 = vmatpush1.msra.mxu0 0.0
  %2086 = vmatprep.subr.mxu0 0.0
  %2087 = vmatpush1.msra.mxu0 0.0
  %2088 = vmatprep.subr.mxu0 0.0
  %2089 = vmatpush1.msra.mxu0 0.0
  %2090 = vmatprep.subr.mxu0 0.0
  %2091 = vmatpush1.msra.mxu0 0.0
  %2092 = vmatprep.subr.mxu0 0.0
  %2093 = vmatpush1.msra.mxu0 0.0
  %2094 = vmatprep.subr.mxu0 0.0
  %2095 = vmatpush1.msra.mxu0 0.0
  %2096 = vmatprep.subr.mxu0 0.0
  %2097 = vmatpush1.msra.mxu0 0.0
  %2098 = vmatprep.subr.mxu0 0.0
  %2099 = vmatpush1.msra.mxu0 0.0
  %2100 = vmatprep.subr.mxu0 0.0
  %2101 = vmatpush1.msra.mxu0 0.0
  %2102 = vmatprep.subr.mxu0 0.0
  %2103 = vmatpush1.msra.mxu0 0.0
  %2104 = vmatprep.subr.mxu0 0.0
  %2105 = vmatpush1.msra.mxu0 0.0
  %2106 = vmatprep.subr.mxu0 0.0
  %2107 = vmatpush1.msra.mxu0 0.0
  %2108 = vmatprep.subr.mxu0 0.0
  %2109 = vmatpush1.msra.mxu0 0.0
  %2110 = vmatprep.subr.mxu0 0.0
  %2111 = vmatpush1.msra.mxu0 0.0
  %2112 = vmatprep.subr.mxu0 0.0
  %2113 = vmatpush1.msra.mxu0 0.0
  %2114 = vmatprep.subr.mxu0 0.0
  %2115 = vmatpush1.msra.mxu0 0.0
  %2116 = vmatprep.subr.mxu0 0.0
  %2117 = vmatpush1.msra.mxu0 0.0
  %2118 = vmatprep.subr.mxu0 0.0
  %2119 = vmatpush1.msra.mxu0 0.0
  %2120 = vmatprep.subr.mxu0 0.0
  %2121 = vmatpush1.msra.mxu0 0.0
  %2122 = vmatprep.subr.mxu0 0.0
  %2123 = vmatpush1.msra.mxu0 0.0
  %2124 = vmatprep.subr.mxu0 0.0
  %2125 = vmatpush1.msra.mxu0 0.0
  %2126 = vmatprep.subr.mxu0 0.0
  %2127 = vmatpush1.msra.mxu0 0.0
  %2128 = vmatprep.subr.mxu0 0.0
  %2129 = vmatpush1.msra.mxu0 0.0
  %2130 = vmatprep.subr.mxu0 0.0
  %2131 = vmatpush1.msra.mxu0 0.0
  %2132 = vmatprep.subr.mxu0 0.0
  %2133 = vmatpush1.msra.mxu0 0.0
  %2134 = vmatprep.subr.mxu0 0.0
  %2135 = vmatpush1.msra.mxu0 0.0
  %2136 = vmatprep.subr.mxu0 0.0
  %2137 = vmatpush1.msra.mxu0 0.0
  %2138 = vmatprep.subr.mxu0 0.0
  %2139 = vmatpush1.msra.mxu0 0.0
  %2140 = vmatprep.subr.mxu0 0.0
  %2141 = vmatpush1.msra.mxu0 0.0
  %2142 = vmatprep.subr.mxu0 0.0
  %2143 = vmatpush1.msra.mxu0 0.0
  %2144 = vmatprep.subr.mxu0 0.0
  %2145 = vmatpush1.msra.mxu0 0.0
  %2146 = vmatprep.mubr.f32.mxu0 0.0
  %v2147 = vand.u32 %v1992, 4294901760
  %2148 = vmatmul.mubr.f32.gmra.mrb[0].mxu0 %v2147
  %v2149 = vpop.f32.mrb[0].mxu0
  %v2150 = vadd.f32 %v2068, %v2149
  %v2151 = vpop.f32.mrb[0].mxu0
  %v2152 = vadd.f32 %v2070, %v2151
  %2153 = vdwg.mxu0
  %v2154 = vand.u32 %v236, 4294901760
  %v2155 = vsub.f32 %v236, %v2154
  %2156 = vmatprep.subr.mxu0 %v2155
  %v2157 = vand.u32 %v235, 4294901760
  %v2158 = vsub.f32 %v235, %v2157
  %2159 = vmatpush1.msra.mxu0 %v2158
  %2160 = vmatprep.subr.mxu0 0.0
  %2161 = vmatpush1.msra.mxu0 0.0
  %2162 = vmatprep.subr.mxu0 0.0
  %2163 = vmatpush1.msra.mxu0 0.0
  %2164 = vmatprep.subr.mxu0 0.0
  %2165 = vmatpush1.msra.mxu0 0.0
  %2166 = vmatprep.subr.mxu0 0.0
  %2167 = vmatpush1.msra.mxu0 0.0
  %2168 = vmatprep.subr.mxu0 0.0
  %2169 = vmatpush1.msra.mxu0 0.0
  %2170 = vmatprep.subr.mxu0 0.0
  %2171 = vmatpush1.msra.mxu0 0.0
  %2172 = vmatprep.subr.mxu0 0.0
  %2173 = vmatpush1.msra.mxu0 0.0
  %2174 = vmatprep.subr.mxu0 0.0
  %2175 = vmatpush1.msra.mxu0 0.0
  %2176 = vmatprep.subr.mxu0 0.0
  %2177 = vmatpush1.msra.mxu0 0.0
  %2178 = vmatprep.subr.mxu0 0.0
  %2179 = vmatpush1.msra.mxu0 0.0
  %2180 = vmatprep.subr.mxu0 0.0
  %2181 = vmatpush1.msra.mxu0 0.0
  %2182 = vmatprep.subr.mxu0 0.0
  %2183 = vmatpush1.msra.mxu0 0.0
  %2184 = vmatprep.subr.mxu0 0.0
  %2185 = vmatpush1.msra.mxu0 0.0
  %2186 = vmatprep.subr.mxu0 0.0
  %2187 = vmatpush1.msra.mxu0 0.0
  %2188 = vmatprep.subr.mxu0 0.0
  %2189 = vmatpush1.msra.mxu0 0.0
  %2190 = vmatprep.subr.mxu0 0.0
  %2191 = vmatpush1.msra.mxu0 0.0
  %2192 = vmatprep.subr.mxu0 0.0
  %2193 = vmatpush1.msra.mxu0 0.0
  %2194 = vmatprep.subr.mxu0 0.0
  %2195 = vmatpush1.msra.mxu0 0.0
  %2196 = vmatprep.subr.mxu0 0.0
  %2197 = vmatpush1.msra.mxu0 0.0
  %2198 = vmatprep.subr.mxu0 0.0
  %2199 = vmatpush1.msra.mxu0 0.0
  %2200 = vmatprep.subr.mxu0 0.0
  %2201 = vmatpush1.msra.mxu0 0.0
  %2202 = vmatprep.subr.mxu0 0.0
  %2203 = vmatpush1.msra.mxu0 0.0
  %2204 = vmatprep.subr.mxu0 0.0
  %2205 = vmatpush1.msra.mxu0 0.0
  %2206 = vmatprep.subr.mxu0 0.0
  %2207 = vmatpush1.msra.mxu0 0.0
  %2208 = vmatprep.subr.mxu0 0.0
  %2209 = vmatpush1.msra.mxu0 0.0
  %2210 = vmatprep.subr.mxu0 0.0
  %2211 = vmatpush1.msra.mxu0 0.0
  %2212 = vmatprep.subr.mxu0 0.0
  %2213 = vmatpush1.msra.mxu0 0.0
  %2214 = vmatprep.subr.mxu0 0.0
  %2215 = vmatpush1.msra.mxu0 0.0
  %2216 = vmatprep.subr.mxu0 0.0
  %2217 = vmatpush1.msra.mxu0 0.0
  %2218 = vmatprep.subr.mxu0 0.0
  %2219 = vmatpush1.msra.mxu0 0.0
  %2220 = vmatprep.subr.mxu0 0.0
  %2221 = vmatpush1.msra.mxu0 0.0
  %2222 = vmatprep.mubr.f32.mxu0 0.0
  %v2223 = vand.u32 %v1992, 4294901760
  %v2224 = vsub.f32 %v1992, %v2223
  %2225 = vmatmul.mubr.f32.gmra.mrb[0].mxu0 %v2224
  %v2226 = vpop.f32.mrb[0].mxu0
  %v2227 = vadd.f32 %v2150, %v2226
  %v2228 = vpop.f32.mrb[0].mxu0
  %v2229 = vadd.f32 %v2152, %v2228
  %2230 = vdwg.mxu0
  %v2231 = vand.u32 %v236, 4294901760
  %2232 = vmatprep.subr.mxu0 %v2231
  %v2233 = vand.u32 %v235, 4294901760
  %2234 = vmatpush1.msra.mxu0 %v2233
  %2235 = vmatprep.subr.mxu0 0.0
  %2236 = vmatpush1.msra.mxu0 0.0
  %2237 = vmatprep.subr.mxu0 0.0
  %2238 = vmatpush1.msra.mxu0 0.0
  %2239 = vmatprep.subr.mxu0 0.0
  %2240 = vmatpush1.msra.mxu0 0.0
  %2241 = vmatprep.subr.mxu0 0.0
  %2242 = vmatpush1.msra.mxu0 0.0
  %2243 = vmatprep.subr.mxu0 0.0
  %2244 = vmatpush1.msra.mxu0 0.0
  %2245 = vmatprep.subr.mxu0 0.0
  %2246 = vmatpush1.msra.mxu0 0.0
  %2247 = vmatprep.subr.mxu0 0.0
  %2248 = vmatpush1.msra.mxu0 0.0
  %2249 = vmatprep.subr.mxu0 0.0
  %2250 = vmatpush1.msra.mxu0 0.0
  %2251 = vmatprep.subr.mxu0 0.0
  %2252 = vmatpush1.msra.mxu0 0.0
  %2253 = vmatprep.subr.mxu0 0.0
  %2254 = vmatpush1.msra.mxu0 0.0
  %2255 = vmatprep.subr.mxu0 0.0
  %2256 = vmatpush1.msra.mxu0 0.0
  %2257 = vmatprep.subr.mxu0 0.0
  %2258 = vmatpush1.msra.mxu0 0.0
  %2259 = vmatprep.subr.mxu0 0.0
  %2260 = vmatpush1.msra.mxu0 0.0
  %2261 = vmatprep.subr.mxu0 0.0
  %2262 = vmatpush1.msra.mxu0 0.0
  %2263 = vmatprep.subr.mxu0 0.0
  %2264 = vmatpush1.msra.mxu0 0.0
  %2265 = vmatprep.subr.mxu0 0.0
  %2266 = vmatpush1.msra.mxu0 0.0
  %2267 = vmatprep.subr.mxu0 0.0
  %2268 = vmatpush1.msra.mxu0 0.0
  %2269 = vmatprep.subr.mxu0 0.0
  %2270 = vmatpush1.msra.mxu0 0.0
  %2271 = vmatprep.subr.mxu0 0.0
  %2272 = vmatpush1.msra.mxu0 0.0
  %2273 = vmatprep.subr.mxu0 0.0
  %2274 = vmatpush1.msra.mxu0 0.0
  %2275 = vmatprep.subr.mxu0 0.0
  %2276 = vmatpush1.msra.mxu0 0.0
  %2277 = vmatprep.subr.mxu0 0.0
  %2278 = vmatpush1.msra.mxu0 0.0
  %2279 = vmatprep.subr.mxu0 0.0
  %2280 = vmatpush1.msra.mxu0 0.0
  %2281 = vmatprep.subr.mxu0 0.0
  %2282 = vmatpush1.msra.mxu0 0.0
  %2283 = vmatprep.subr.mxu0 0.0
  %2284 = vmatpush1.msra.mxu0 0.0
  %2285 = vmatprep.subr.mxu0 0.0
  %2286 = vmatpush1.msra.mxu0 0.0
  %2287 = vmatprep.subr.mxu0 0.0
  %2288 = vmatpush1.msra.mxu0 0.0
  %2289 = vmatprep.subr.mxu0 0.0
  %2290 = vmatpush1.msra.mxu0 0.0
  %2291 = vmatprep.subr.mxu0 0.0
  %2292 = vmatpush1.msra.mxu0 0.0
  %2293 = vmatprep.subr.mxu0 0.0
  %2294 = vmatpush1.msra.mxu0 0.0
  %2295 = vmatprep.subr.mxu0 0.0
  %2296 = vmatpush1.msra.mxu0 0.0
  %2297 = vmatprep.mubr.f32.mxu0 0.0
  %v2298 = vand.u32 %v1992, 4294901760
  %v2299 = vsub.f32 %v1992, %v2298
  %v2300 = vand.u32 %v2299, 4294901760
  %2301 = vmatmul.mubr.f32.gmra.mrb[0].mxu0 %v2300
  %v2302 = vpop.f32.mrb[0].mxu0
  %v2303 = vadd.f32 %v2227, %v2302
  %v2304 = vpop.f32.mrb[0].mxu0
  %v2305 = vadd.f32 %v2229, %v2304
  %2306 = vdwg.mxu0
  %v2307 = vand.u32 %v236, 4294901760
  %v2308 = vsub.f32 %v236, %v2307
  %v2309 = vand.u32 %v2308, 4294901760
  %2310 = vmatprep.subr.mxu0 %v2309
  %v2311 = vand.u32 %v235, 4294901760
  %v2312 = vsub.f32 %v235, %v2311
  %v2313 = vand.u32 %v2312, 4294901760
  %2314 = vmatpush1.msra.mxu0 %v2313
  %2315 = vmatprep.subr.mxu0 0.0
  %2316 = vmatpush1.msra.mxu0 0.0
  %2317 = vmatprep.subr.mxu0 0.0
  %2318 = vmatpush1.msra.mxu0 0.0
  %2319 = vmatprep.subr.mxu0 0.0
  %2320 = vmatpush1.msra.mxu0 0.0
  %2321 = vmatprep.subr.mxu0 0.0
  %2322 = vmatpush1.msra.mxu0 0.0
  %2323 = vmatprep.subr.mxu0 0.0
  %2324 = vmatpush1.msra.mxu0 0.0
  %2325 = vmatprep.subr.mxu0 0.0
  %2326 = vmatpush1.msra.mxu0 0.0
  %2327 = vmatprep.subr.mxu0 0.0
  %2328 = vmatpush1.msra.mxu0 0.0
  %2329 = vmatprep.subr.mxu0 0.0
  %2330 = vmatpush1.msra.mxu0 0.0
  %2331 = vmatprep.subr.mxu0 0.0
  %2332 = vmatpush1.msra.mxu0 0.0
  %2333 = vmatprep.subr.mxu0 0.0
  %2334 = vmatpush1.msra.mxu0 0.0
  %2335 = vmatprep.subr.mxu0 0.0
  %2336 = vmatpush1.msra.mxu0 0.0
  %2337 = vmatprep.subr.mxu0 0.0
  %2338 = vmatpush1.msra.mxu0 0.0
  %2339 = vmatprep.subr.mxu0 0.0
  %2340 = vmatpush1.msra.mxu0 0.0
  %2341 = vmatprep.subr.mxu0 0.0
  %2342 = vmatpush1.msra.mxu0 0.0
  %2343 = vmatprep.subr.mxu0 0.0
  %2344 = vmatpush1.msra.mxu0 0.0
  %2345 = vmatprep.subr.mxu0 0.0
  %2346 = vmatpush1.msra.mxu0 0.0
  %2347 = vmatprep.subr.mxu0 0.0
  %2348 = vmatpush1.msra.mxu0 0.0
  %2349 = vmatprep.subr.mxu0 0.0
  %2350 = vmatpush1.msra.mxu0 0.0
  %2351 = vmatprep.subr.mxu0 0.0
  %2352 = vmatpush1.msra.mxu0 0.0
  %2353 = vmatprep.subr.mxu0 0.0
  %2354 = vmatpush1.msra.mxu0 0.0
  %2355 = vmatprep.subr.mxu0 0.0
  %2356 = vmatpush1.msra.mxu0 0.0
  %2357 = vmatprep.subr.mxu0 0.0
  %2358 = vmatpush1.msra.mxu0 0.0
  %2359 = vmatprep.subr.mxu0 0.0
  %2360 = vmatpush1.msra.mxu0 0.0
  %2361 = vmatprep.subr.mxu0 0.0
  %2362 = vmatpush1.msra.mxu0 0.0
  %2363 = vmatprep.subr.mxu0 0.0
  %2364 = vmatpush1.msra.mxu0 0.0
  %2365 = vmatprep.subr.mxu0 0.0
  %2366 = vmatpush1.msra.mxu0 0.0
  %2367 = vmatprep.subr.mxu0 0.0
  %2368 = vmatpush1.msra.mxu0 0.0
  %2369 = vmatprep.subr.mxu0 0.0
  %2370 = vmatpush1.msra.mxu0 0.0
  %2371 = vmatprep.subr.mxu0 0.0
  %2372 = vmatpush1.msra.mxu0 0.0
  %2373 = vmatprep.subr.mxu0 0.0
  %2374 = vmatpush1.msra.mxu0 0.0
  %2375 = vmatprep.subr.mxu0 0.0
  %2376 = vmatpush1.msra.mxu0 0.0
  %2377 = vmatprep.mubr.f32.mxu0 0.0
  %v2378 = vand.u32 %v1992, 4294901760
  %2379 = vmatmul.mubr.f32.gmra.mrb[0].mxu0 %v2378
  %v2380 = vpop.f32.mrb[0].mxu0
  %v2381 = vadd.f32 %v2303, %v2380
  %v2382 = vpop.f32.mrb[0].mxu0
  %v2383 = vadd.f32 %v2305, %v2382
  %2384 = vdwg.mxu0
  %v2385 = vand.u32 %v236, 4294901760
  %2386 = vmatprep.subr.mxu0 %v2385
  %v2387 = vand.u32 %v235, 4294901760
  %2388 = vmatpush1.msra.mxu0 %v2387
  %2389 = vmatprep.subr.mxu0 0.0
  %2390 = vmatpush1.msra.mxu0 0.0
  %2391 = vmatprep.subr.mxu0 0.0
  %2392 = vmatpush1.msra.mxu0 0.0
  %2393 = vmatprep.subr.mxu0 0.0
  %2394 = vmatpush1.msra.mxu0 0.0
  %2395 = vmatprep.subr.mxu0 0.0
  %2396 = vmatpush1.msra.mxu0 0.0
  %2397 = vmatprep.subr.mxu0 0.0
  %2398 = vmatpush1.msra.mxu0 0.0
  %2399 = vmatprep.subr.mxu0 0.0
  %2400 = vmatpush1.msra.mxu0 0.0
  %2401 = vmatprep.subr.mxu0 0.0
  %2402 = vmatpush1.msra.mxu0 0.0
  %2403 = vmatprep.subr.mxu0 0.0
  %2404 = vmatpush1.msra.mxu0 0.0
  %2405 = vmatprep.subr.mxu0 0.0
  %2406 = vmatpush1.msra.mxu0 0.0
  %2407 = vmatprep.subr.mxu0 0.0
  %2408 = vmatpush1.msra.mxu0 0.0
  %2409 = vmatprep.subr.mxu0 0.0
  %2410 = vmatpush1.msra.mxu0 0.0
  %2411 = vmatprep.subr.mxu0 0.0
  %2412 = vmatpush1.msra.mxu0 0.0
  %2413 = vmatprep.subr.mxu0 0.0
  %2414 = vmatpush1.msra.mxu0 0.0
  %2415 = vmatprep.subr.mxu0 0.0
  %2416 = vmatpush1.msra.mxu0 0.0
  %2417 = vmatprep.subr.mxu0 0.0
  %2418 = vmatpush1.msra.mxu0 0.0
  %2419 = vmatprep.subr.mxu0 0.0
  %2420 = vmatpush1.msra.mxu0 0.0
  %2421 = vmatprep.subr.mxu0 0.0
  %2422 = vmatpush1.msra.mxu0 0.0
  %2423 = vmatprep.subr.mxu0 0.0
  %2424 = vmatpush1.msra.mxu0 0.0
  %2425 = vmatprep.subr.mxu0 0.0
  %2426 = vmatpush1.msra.mxu0 0.0
  %2427 = vmatprep.subr.mxu0 0.0
  %2428 = vmatpush1.msra.mxu0 0.0
  %2429 = vmatprep.subr.mxu0 0.0
  %2430 = vmatpush1.msra.mxu0 0.0
  %2431 = vmatprep.subr.mxu0 0.0
  %2432 = vmatpush1.msra.mxu0 0.0
  %2433 = vmatprep.subr.mxu0 0.0
  %2434 = vmatpush1.msra.mxu0 0.0
  %2435 = vmatprep.subr.mxu0 0.0
  %2436 = vmatpush1.msra.mxu0 0.0
  %2437 = vmatprep.subr.mxu0 0.0
  %2438 = vmatpush1.msra.mxu0 0.0
  %2439 = vmatprep.subr.mxu0 0.0
  %2440 = vmatpush1.msra.mxu0 0.0
  %2441 = vmatprep.subr.mxu0 0.0
  %2442 = vmatpush1.msra.mxu0 0.0
  %2443 = vmatprep.subr.mxu0 0.0
  %2444 = vmatpush1.msra.mxu0 0.0
  %2445 = vmatprep.subr.mxu0 0.0
  %2446 = vmatpush1.msra.mxu0 0.0
  %2447 = vmatprep.subr.mxu0 0.0
  %2448 = vmatpush1.msra.mxu0 0.0
  %2449 = vmatprep.subr.mxu0 0.0
  %2450 = vmatpush1.msra.mxu0 0.0
  %2451 = vmatprep.mubr.f32.mxu0 0.0
  %v2452 = vand.u32 %v1992, 4294901760
  %2453 = vmatmul.mubr.f32.gmra.mrb[0].mxu0 %v2452
  %v2454 = vpop.f32.mrb[0].mxu0
  %v2455 = vadd.f32 %v2381, %v2454
  %v2456 = vpop.f32.mrb[0].mxu0
  %v2457 = vadd.f32 %v2383, %v2456
  %2458 = vdwg.mxu0
  %v2459 = vmul.f32 %v1984, %v1989
  %v2461 = vsel %vm1990, %v2459, 0
  %v2463 = vand.u32 %v236, 4294901760
  %2464 = vmatprep.subr.mxu0 %v2463
  %v2465 = vand.u32 %v235, 4294901760
  %2466 = vmatpush1.msra.mxu0 %v2465
  %2467 = vmatprep.subr.mxu0 0.0
  %2468 = vmatpush1.msra.mxu0 0.0
  %2469 = vmatprep.subr.mxu0 0.0
  %2470 = vmatpush1.msra.mxu0 0.0
  %2471 = vmatprep.subr.mxu0 0.0
  %2472 = vmatpush1.msra.mxu0 0.0
  %2473 = vmatprep.subr.mxu0 0.0
  %2474 = vmatpush1.msra.mxu0 0.0
  %2475 = vmatprep.subr.mxu0 0.0
  %2476 = vmatpush1.msra.mxu0 0.0
  %2477 = vmatprep.subr.mxu0 0.0
  %2478 = vmatpush1.msra.mxu0 0.0
  %2479 = vmatprep.subr.mxu0 0.0
  %2480 = vmatpush1.msra.mxu0 0.0
  %2481 = vmatprep.subr.mxu0 0.0
  %2482 = vmatpush1.msra.mxu0 0.0
  %2483 = vmatprep.subr.mxu0 0.0
  %2484 = vmatpush1.msra.mxu0 0.0
  %2485 = vmatprep.subr.mxu0 0.0
  %2486 = vmatpush1.msra.mxu0 0.0
  %2487 = vmatprep.subr.mxu0 0.0
  %2488 = vmatpush1.msra.mxu0 0.0
  %2489 = vmatprep.subr.mxu0 0.0
  %2490 = vmatpush1.msra.mxu0 0.0
  %2491 = vmatprep.subr.mxu0 0.0
  %2492 = vmatpush1.msra.mxu0 0.0
  %2493 = vmatprep.subr.mxu0 0.0
  %2494 = vmatpush1.msra.mxu0 0.0
  %2495 = vmatprep.subr.mxu0 0.0
  %2496 = vmatpush1.msra.mxu0 0.0
  %2497 = vmatprep.subr.mxu0 0.0
  %2498 = vmatpush1.msra.mxu0 0.0
  %2499 = vmatprep.subr.mxu0 0.0
  %2500 = vmatpush1.msra.mxu0 0.0
  %2501 = vmatprep.subr.mxu0 0.0
  %2502 = vmatpush1.msra.mxu0 0.0
  %2503 = vmatprep.subr.mxu0 0.0
  %2504 = vmatpush1.msra.mxu0 0.0
  %2505 = vmatprep.subr.mxu0 0.0
  %2506 = vmatpush1.msra.mxu0 0.0
  %2507 = vmatprep.subr.mxu0 0.0
  %2508 = vmatpush1.msra.mxu0 0.0
  %2509 = vmatprep.subr.mxu0 0.0
  %2510 = vmatpush1.msra.mxu0 0.0
  %2511 = vmatprep.subr.mxu0 0.0
  %2512 = vmatpush1.msra.mxu0 0.0
  %2513 = vmatprep.subr.mxu0 0.0
  %2514 = vmatpush1.msra.mxu0 0.0
  %2515 = vmatprep.subr.mxu0 0.0
  %2516 = vmatpush1.msra.mxu0 0.0
  %2517 = vmatprep.subr.mxu0 0.0
  %2518 = vmatpush1.msra.mxu0 0.0
  %2519 = vmatprep.subr.mxu0 0.0
  %2520 = vmatpush1.msra.mxu0 0.0
  %2521 = vmatprep.subr.mxu0 0.0
  %2522 = vmatpush1.msra.mxu0 0.0
  %2523 = vmatprep.subr.mxu0 0.0
  %2524 = vmatpush1.msra.mxu0 0.0
  %2525 = vmatprep.subr.mxu0 0.0
  %2526 = vmatpush1.msra.mxu0 0.0
  %2527 = vmatprep.subr.mxu0 0.0
  %2528 = vmatpush1.msra.mxu0 0.0
  %2529 = vmatprep.mubr.f32.mxu0 0.0
  %v2530 = vand.u32 %v2461, 4294901760
  %v2531 = vsub.f32 %v2461, %v2530
  %v2532 = vand.u32 %v2531, 4294901760
  %v2533 = vsub.f32 %v2531, %v2532
  %v2534 = vand.u32 %v2533, 4294901760
  %2535 = vmatmul.mubr.f32.gmra.mrb[0].mxu0 %v2534
  %v2536 = vpop.f32.mrb[0].mxu0
  %v2537 = vadd.f32 0.0, %v2536
  %v2538 = vpop.f32.mrb[0].mxu0
  %v2539 = vadd.f32 0.0, %v2538
  %2540 = vdwg.mxu0
  %v2541 = vand.u32 %v236, 4294901760
  %v2542 = vsub.f32 %v236, %v2541
  %v2543 = vand.u32 %v2542, 4294901760
  %v2544 = vsub.f32 %v2542, %v2543
  %v2545 = vand.u32 %v2544, 4294901760
  %2546 = vmatprep.subr.mxu0 %v2545
  %v2547 = vand.u32 %v235, 4294901760
  %v2548 = vsub.f32 %v235, %v2547
  %v2549 = vand.u32 %v2548, 4294901760
  %v2550 = vsub.f32 %v2548, %v2549
  %v2551 = vand.u32 %v2550, 4294901760
  %2552 = vmatpush1.msra.mxu0 %v2551
  %2553 = vmatprep.subr.mxu0 0.0
  %2554 = vmatpush1.msra.mxu0 0.0
  %2555 = vmatprep.subr.mxu0 0.0
  %2556 = vmatpush1.msra.mxu0 0.0
  %2557 = vmatprep.subr.mxu0 0.0
  %2558 = vmatpush1.msra.mxu0 0.0
  %2559 = vmatprep.subr.mxu0 0.0
  %2560 = vmatpush1.msra.mxu0 0.0
  %2561 = vmatprep.subr.mxu0 0.0
  %2562 = vmatpush1.msra.mxu0 0.0
  %2563 = vmatprep.subr.mxu0 0.0
  %2564 = vmatpush1.msra.mxu0 0.0
  %2565 = vmatprep.subr.mxu0 0.0
  %2566 = vmatpush1.msra.mxu0 0.0
  %2567 = vmatprep.subr.mxu0 0.0
  %2568 = vmatpush1.msra.mxu0 0.0
  %2569 = vmatprep.subr.mxu0 0.0
  %2570 = vmatpush1.msra.mxu0 0.0
  %2571 = vmatprep.subr.mxu0 0.0
  %2572 = vmatpush1.msra.mxu0 0.0
  %2573 = vmatprep.subr.mxu0 0.0
  %2574 = vmatpush1.msra.mxu0 0.0
  %2575 = vmatprep.subr.mxu0 0.0
  %2576 = vmatpush1.msra.mxu0 0.0
  %2577 = vmatprep.subr.mxu0 0.0
  %2578 = vmatpush1.msra.mxu0 0.0
  %2579 = vmatprep.subr.mxu0 0.0
  %2580 = vmatpush1.msra.mxu0 0.0
  %2581 = vmatprep.subr.mxu0 0.0
  %2582 = vmatpush1.msra.mxu0 0.0
  %2583 = vmatprep.subr.mxu0 0.0
  %2584 = vmatpush1.msra.mxu0 0.0
  %2585 = vmatprep.subr.mxu0 0.0
  %2586 = vmatpush1.msra.mxu0 0.0
  %2587 = vmatprep.subr.mxu0 0.0
  %2588 = vmatpush1.msra.mxu0 0.0
  %2589 = vmatprep.subr.mxu0 0.0
  %2590 = vmatpush1.msra.mxu0 0.0
  %2591 = vmatprep.subr.mxu0 0.0
  %2592 = vmatpush1.msra.mxu0 0.0
  %2593 = vmatprep.subr.mxu0 0.0
  %2594 = vmatpush1.msra.mxu0 0.0
  %2595 = vmatprep.subr.mxu0 0.0
  %2596 = vmatpush1.msra.mxu0 0.0
  %2597 = vmatprep.subr.mxu0 0.0
  %2598 = vmatpush1.msra.mxu0 0.0
  %2599 = vmatprep.subr.mxu0 0.0
  %2600 = vmatpush1.msra.mxu0 0.0
  %2601 = vmatprep.subr.mxu0 0.0
  %2602 = vmatpush1.msra.mxu0 0.0
  %2603 = vmatprep.subr.mxu0 0.0
  %2604 = vmatpush1.msra.mxu0 0.0
  %2605 = vmatprep.subr.mxu0 0.0
  %2606 = vmatpush1.msra.mxu0 0.0
  %2607 = vmatprep.subr.mxu0 0.0
  %2608 = vmatpush1.msra.mxu0 0.0
  %2609 = vmatprep.subr.mxu0 0.0
  %2610 = vmatpush1.msra.mxu0 0.0
  %2611 = vmatprep.subr.mxu0 0.0
  %2612 = vmatpush1.msra.mxu0 0.0
  %2613 = vmatprep.subr.mxu0 0.0
  %2614 = vmatpush1.msra.mxu0 0.0
  %2615 = vmatprep.mubr.f32.mxu0 0.0
  %v2616 = vand.u32 %v2461, 4294901760
  %2617 = vmatmul.mubr.f32.gmra.mrb[0].mxu0 %v2616
  %v2618 = vpop.f32.mrb[0].mxu0
  %v2619 = vadd.f32 %v2537, %v2618
  %v2620 = vpop.f32.mrb[0].mxu0
  %v2621 = vadd.f32 %v2539, %v2620
  %2622 = vdwg.mxu0
  %v2623 = vand.u32 %v236, 4294901760
  %v2624 = vsub.f32 %v236, %v2623
  %2625 = vmatprep.subr.mxu0 %v2624
  %v2626 = vand.u32 %v235, 4294901760
  %v2627 = vsub.f32 %v235, %v2626
  %2628 = vmatpush1.msra.mxu0 %v2627
  %2629 = vmatprep.subr.mxu0 0.0
  %2630 = vmatpush1.msra.mxu0 0.0
  %2631 = vmatprep.subr.mxu0 0.0
  %2632 = vmatpush1.msra.mxu0 0.0
  %2633 = vmatprep.subr.mxu0 0.0
  %2634 = vmatpush1.msra.mxu0 0.0
  %2635 = vmatprep.subr.mxu0 0.0
  %2636 = vmatpush1.msra.mxu0 0.0
  %2637 = vmatprep.subr.mxu0 0.0
  %2638 = vmatpush1.msra.mxu0 0.0
  %2639 = vmatprep.subr.mxu0 0.0
  %2640 = vmatpush1.msra.mxu0 0.0
  %2641 = vmatprep.subr.mxu0 0.0
  %2642 = vmatpush1.msra.mxu0 0.0
  %2643 = vmatprep.subr.mxu0 0.0
  %2644 = vmatpush1.msra.mxu0 0.0
  %2645 = vmatprep.subr.mxu0 0.0
  %2646 = vmatpush1.msra.mxu0 0.0
  %2647 = vmatprep.subr.mxu0 0.0
  %2648 = vmatpush1.msra.mxu0 0.0
  %2649 = vmatprep.subr.mxu0 0.0
  %2650 = vmatpush1.msra.mxu0 0.0
  %2651 = vmatprep.subr.mxu0 0.0
  %2652 = vmatpush1.msra.mxu0 0.0
  %2653 = vmatprep.subr.mxu0 0.0
  %2654 = vmatpush1.msra.mxu0 0.0
  %2655 = vmatprep.subr.mxu0 0.0
  %2656 = vmatpush1.msra.mxu0 0.0
  %2657 = vmatprep.subr.mxu0 0.0
  %2658 = vmatpush1.msra.mxu0 0.0
  %2659 = vmatprep.subr.mxu0 0.0
  %2660 = vmatpush1.msra.mxu0 0.0
  %2661 = vmatprep.subr.mxu0 0.0
  %2662 = vmatpush1.msra.mxu0 0.0
  %2663 = vmatprep.subr.mxu0 0.0
  %2664 = vmatpush1.msra.mxu0 0.0
  %2665 = vmatprep.subr.mxu0 0.0
  %2666 = vmatpush1.msra.mxu0 0.0
  %2667 = vmatprep.subr.mxu0 0.0
  %2668 = vmatpush1.msra.mxu0 0.0
  %2669 = vmatprep.subr.mxu0 0.0
  %2670 = vmatpush1.msra.mxu0 0.0
  %2671 = vmatprep.subr.mxu0 0.0
  %2672 = vmatpush1.msra.mxu0 0.0
  %2673 = vmatprep.subr.mxu0 0.0
  %2674 = vmatpush1.msra.mxu0 0.0
  %2675 = vmatprep.subr.mxu0 0.0
  %2676 = vmatpush1.msra.mxu0 0.0
  %2677 = vmatprep.subr.mxu0 0.0
  %2678 = vmatpush1.msra.mxu0 0.0
  %2679 = vmatprep.subr.mxu0 0.0
  %2680 = vmatpush1.msra.mxu0 0.0
  %2681 = vmatprep.subr.mxu0 0.0
  %2682 = vmatpush1.msra.mxu0 0.0
  %2683 = vmatprep.subr.mxu0 0.0
  %2684 = vmatpush1.msra.mxu0 0.0
  %2685 = vmatprep.subr.mxu0 0.0
  %2686 = vmatpush1.msra.mxu0 0.0
  %2687 = vmatprep.subr.mxu0 0.0
  %2688 = vmatpush1.msra.mxu0 0.0
  %2689 = vmatprep.subr.mxu0 0.0
  %2690 = vmatpush1.msra.mxu0 0.0
  %2691 = vmatprep.mubr.f32.mxu0 0.0
  %v2692 = vand.u32 %v2461, 4294901760
  %v2693 = vsub.f32 %v2461, %v2692
  %2694 = vmatmul.mubr.f32.gmra.mrb[0].mxu0 %v2693
  %v2695 = vpop.f32.mrb[0].mxu0
  %v2696 = vadd.f32 %v2619, %v2695
  %v2697 = vpop.f32.mrb[0].mxu0
  %v2698 = vadd.f32 %v2621, %v2697
  %2699 = vdwg.mxu0
  %v2700 = vand.u32 %v236, 4294901760
  %2701 = vmatprep.subr.mxu0 %v2700
  %v2702 = vand.u32 %v235, 4294901760
  %2703 = vmatpush1.msra.mxu0 %v2702
  %2704 = vmatprep.subr.mxu0 0.0
  %2705 = vmatpush1.msra.mxu0 0.0
  %2706 = vmatprep.subr.mxu0 0.0
  %2707 = vmatpush1.msra.mxu0 0.0
  %2708 = vmatprep.subr.mxu0 0.0
  %2709 = vmatpush1.msra.mxu0 0.0
  %2710 = vmatprep.subr.mxu0 0.0
  %2711 = vmatpush1.msra.mxu0 0.0
  %2712 = vmatprep.subr.mxu0 0.0
  %2713 = vmatpush1.msra.mxu0 0.0
  %2714 = vmatprep.subr.mxu0 0.0
  %2715 = vmatpush1.msra.mxu0 0.0
  %2716 = vmatprep.subr.mxu0 0.0
  %2717 = vmatpush1.msra.mxu0 0.0
  %2718 = vmatprep.subr.mxu0 0.0
  %2719 = vmatpush1.msra.mxu0 0.0
  %2720 = vmatprep.subr.mxu0 0.0
  %2721 = vmatpush1.msra.mxu0 0.0
  %2722 = vmatprep.subr.mxu0 0.0
  %2723 = vmatpush1.msra.mxu0 0.0
  %2724 = vmatprep.subr.mxu0 0.0
  %2725 = vmatpush1.msra.mxu0 0.0
  %2726 = vmatprep.subr.mxu0 0.0
  %2727 = vmatpush1.msra.mxu0 0.0
  %2728 = vmatprep.subr.mxu0 0.0
  %2729 = vmatpush1.msra.mxu0 0.0
  %2730 = vmatprep.subr.mxu0 0.0
  %2731 = vmatpush1.msra.mxu0 0.0
  %2732 = vmatprep.subr.mxu0 0.0
  %2733 = vmatpush1.msra.mxu0 0.0
  %2734 = vmatprep.subr.mxu0 0.0
  %2735 = vmatpush1.msra.mxu0 0.0
  %2736 = vmatprep.subr.mxu0 0.0
  %2737 = vmatpush1.msra.mxu0 0.0
  %2738 = vmatprep.subr.mxu0 0.0
  %2739 = vmatpush1.msra.mxu0 0.0
  %2740 = vmatprep.subr.mxu0 0.0
  %2741 = vmatpush1.msra.mxu0 0.0
  %2742 = vmatprep.subr.mxu0 0.0
  %2743 = vmatpush1.msra.mxu0 0.0
  %2744 = vmatprep.subr.mxu0 0.0
  %2745 = vmatpush1.msra.mxu0 0.0
  %2746 = vmatprep.subr.mxu0 0.0
  %2747 = vmatpush1.msra.mxu0 0.0
  %2748 = vmatprep.subr.mxu0 0.0
  %2749 = vmatpush1.msra.mxu0 0.0
  %2750 = vmatprep.subr.mxu0 0.0
  %2751 = vmatpush1.msra.mxu0 0.0
  %2752 = vmatprep.subr.mxu0 0.0
  %2753 = vmatpush1.msra.mxu0 0.0
  %2754 = vmatprep.subr.mxu0 0.0
  %2755 = vmatpush1.msra.mxu0 0.0
  %2756 = vmatprep.subr.mxu0 0.0
  %2757 = vmatpush1.msra.mxu0 0.0
  %2758 = vmatprep.subr.mxu0 0.0
  %2759 = vmatpush1.msra.mxu0 0.0
  %2760 = vmatprep.subr.mxu0 0.0
  %2761 = vmatpush1.msra.mxu0 0.0
  %2762 = vmatprep.subr.mxu0 0.0
  %2763 = vmatpush1.msra.mxu0 0.0
  %2764 = vmatprep.subr.mxu0 0.0
  %2765 = vmatpush1.msra.mxu0 0.0
  %2766 = vmatprep.mubr.f32.mxu0 0.0
  %v2767 = vand.u32 %v2461, 4294901760
  %v2768 = vsub.f32 %v2461, %v2767
  %v2769 = vand.u32 %v2768, 4294901760
  %2770 = vmatmul.mubr.f32.gmra.mrb[0].mxu0 %v2769
  %v2771 = vpop.f32.mrb[0].mxu0
  %v2772 = vadd.f32 %v2696, %v2771
  %v2773 = vpop.f32.mrb[0].mxu0
  %v2774 = vadd.f32 %v2698, %v2773
  %2775 = vdwg.mxu0
  %v2776 = vand.u32 %v236, 4294901760
  %v2777 = vsub.f32 %v236, %v2776
  %v2778 = vand.u32 %v2777, 4294901760
  %2779 = vmatprep.subr.mxu0 %v2778
  %v2780 = vand.u32 %v235, 4294901760
  %v2781 = vsub.f32 %v235, %v2780
  %v2782 = vand.u32 %v2781, 4294901760
  %2783 = vmatpush1.msra.mxu0 %v2782
  %2784 = vmatprep.subr.mxu0 0.0
  %2785 = vmatpush1.msra.mxu0 0.0
  %2786 = vmatprep.subr.mxu0 0.0
  %2787 = vmatpush1.msra.mxu0 0.0
  %2788 = vmatprep.subr.mxu0 0.0
  %2789 = vmatpush1.msra.mxu0 0.0
  %2790 = vmatprep.subr.mxu0 0.0
  %2791 = vmatpush1.msra.mxu0 0.0
  %2792 = vmatprep.subr.mxu0 0.0
  %2793 = vmatpush1.msra.mxu0 0.0
  %2794 = vmatprep.subr.mxu0 0.0
  %2795 = vmatpush1.msra.mxu0 0.0
  %2796 = vmatprep.subr.mxu0 0.0
  %2797 = vmatpush1.msra.mxu0 0.0
  %2798 = vmatprep.subr.mxu0 0.0
  %2799 = vmatpush1.msra.mxu0 0.0
  %2800 = vmatprep.subr.mxu0 0.0
  %2801 = vmatpush1.msra.mxu0 0.0
  %2802 = vmatprep.subr.mxu0 0.0
  %2803 = vmatpush1.msra.mxu0 0.0
  %2804 = vmatprep.subr.mxu0 0.0
  %2805 = vmatpush1.msra.mxu0 0.0
  %2806 = vmatprep.subr.mxu0 0.0
  %2807 = vmatpush1.msra.mxu0 0.0
  %2808 = vmatprep.subr.mxu0 0.0
  %2809 = vmatpush1.msra.mxu0 0.0
  %2810 = vmatprep.subr.mxu0 0.0
  %2811 = vmatpush1.msra.mxu0 0.0
  %2812 = vmatprep.subr.mxu0 0.0
  %2813 = vmatpush1.msra.mxu0 0.0
  %2814 = vmatprep.subr.mxu0 0.0
  %2815 = vmatpush1.msra.mxu0 0.0
  %2816 = vmatprep.subr.mxu0 0.0
  %2817 = vmatpush1.msra.mxu0 0.0
  %2818 = vmatprep.subr.mxu0 0.0
  %2819 = vmatpush1.msra.mxu0 0.0
  %2820 = vmatprep.subr.mxu0 0.0
  %2821 = vmatpush1.msra.mxu0 0.0
  %2822 = vmatprep.subr.mxu0 0.0
  %2823 = vmatpush1.msra.mxu0 0.0
  %2824 = vmatprep.subr.mxu0 0.0
  %2825 = vmatpush1.msra.mxu0 0.0
  %2826 = vmatprep.subr.mxu0 0.0
  %2827 = vmatpush1.msra.mxu0 0.0
  %2828 = vmatprep.subr.mxu0 0.0
  %2829 = vmatpush1.msra.mxu0 0.0
  %2830 = vmatprep.subr.mxu0 0.0
  %2831 = vmatpush1.msra.mxu0 0.0
  %2832 = vmatprep.subr.mxu0 0.0
  %2833 = vmatpush1.msra.mxu0 0.0
  %2834 = vmatprep.subr.mxu0 0.0
  %2835 = vmatpush1.msra.mxu0 0.0
  %2836 = vmatprep.subr.mxu0 0.0
  %2837 = vmatpush1.msra.mxu0 0.0
  %2838 = vmatprep.subr.mxu0 0.0
  %2839 = vmatpush1.msra.mxu0 0.0
  %2840 = vmatprep.subr.mxu0 0.0
  %2841 = vmatpush1.msra.mxu0 0.0
  %2842 = vmatprep.subr.mxu0 0.0
  %2843 = vmatpush1.msra.mxu0 0.0
  %2844 = vmatprep.subr.mxu0 0.0
  %2845 = vmatpush1.msra.mxu0 0.0
  %2846 = vmatprep.mubr.f32.mxu0 0.0
  %v2847 = vand.u32 %v2461, 4294901760
  %2848 = vmatmul.mubr.f32.gmra.mrb[0].mxu0 %v2847
  %v2849 = vpop.f32.mrb[0].mxu0
  %v2850 = vadd.f32 %v2772, %v2849
  %v2851 = vpop.f32.mrb[0].mxu0
  %v2852 = vadd.f32 %v2774, %v2851
  %2853 = vdwg.mxu0
  %v2854 = vand.u32 %v236, 4294901760
  %2855 = vmatprep.subr.mxu0 %v2854
  %v2856 = vand.u32 %v235, 4294901760
  %2857 = vmatpush1.msra.mxu0 %v2856
  %2858 = vmatprep.subr.mxu0 0.0
  %2859 = vmatpush1.msra.mxu0 0.0
  %2860 = vmatprep.subr.mxu0 0.0
  %2861 = vmatpush1.msra.mxu0 0.0
  %2862 = vmatprep.subr.mxu0 0.0
  %2863 = vmatpush1.msra.mxu0 0.0
  %2864 = vmatprep.subr.mxu0 0.0
  %2865 = vmatpush1.msra.mxu0 0.0
  %2866 = vmatprep.subr.mxu0 0.0
  %2867 = vmatpush1.msra.mxu0 0.0
  %2868 = vmatprep.subr.mxu0 0.0
  %2869 = vmatpush1.msra.mxu0 0.0
  %2870 = vmatprep.subr.mxu0 0.0
  %2871 = vmatpush1.msra.mxu0 0.0
  %2872 = vmatprep.subr.mxu0 0.0
  %2873 = vmatpush1.msra.mxu0 0.0
  %2874 = vmatprep.subr.mxu0 0.0
  %2875 = vmatpush1.msra.mxu0 0.0
  %2876 = vmatprep.subr.mxu0 0.0
  %2877 = vmatpush1.msra.mxu0 0.0
  %2878 = vmatprep.subr.mxu0 0.0
  %2879 = vmatpush1.msra.mxu0 0.0
  %2880 = vmatprep.subr.mxu0 0.0
  %2881 = vmatpush1.msra.mxu0 0.0
  %2882 = vmatprep.subr.mxu0 0.0
  %2883 = vmatpush1.msra.mxu0 0.0
  %2884 = vmatprep.subr.mxu0 0.0
  %2885 = vmatpush1.msra.mxu0 0.0
  %2886 = vmatprep.subr.mxu0 0.0
  %2887 = vmatpush1.msra.mxu0 0.0
  %2888 = vmatprep.subr.mxu0 0.0
  %2889 = vmatpush1.msra.mxu0 0.0
  %2890 = vmatprep.subr.mxu0 0.0
  %2891 = vmatpush1.msra.mxu0 0.0
  %2892 = vmatprep.subr.mxu0 0.0
  %2893 = vmatpush1.msra.mxu0 0.0
  %2894 = vmatprep.subr.mxu0 0.0
  %2895 = vmatpush1.msra.mxu0 0.0
  %2896 = vmatprep.subr.mxu0 0.0
  %2897 = vmatpush1.msra.mxu0 0.0
  %2898 = vmatprep.subr.mxu0 0.0
  %2899 = vmatpush1.msra.mxu0 0.0
  %2900 = vmatprep.subr.mxu0 0.0
  %2901 = vmatpush1.msra.mxu0 0.0
  %2902 = vmatprep.subr.mxu0 0.0
  %2903 = vmatpush1.msra.mxu0 0.0
  %2904 = vmatprep.subr.mxu0 0.0
  %2905 = vmatpush1.msra.mxu0 0.0
  %2906 = vmatprep.subr.mxu0 0.0
  %2907 = vmatpush1.msra.mxu0 0.0
  %2908 = vmatprep.subr.mxu0 0.0
  %2909 = vmatpush1.msra.mxu0 0.0
  %2910 = vmatprep.subr.mxu0 0.0
  %2911 = vmatpush1.msra.mxu0 0.0
  %2912 = vmatprep.subr.mxu0 0.0
  %2913 = vmatpush1.msra.mxu0 0.0
  %2914 = vmatprep.subr.mxu0 0.0
  %2915 = vmatpush1.msra.mxu0 0.0
  %2916 = vmatprep.subr.mxu0 0.0
  %2917 = vmatpush1.msra.mxu0 0.0
  %2918 = vmatprep.subr.mxu0 0.0
  %2919 = vmatpush1.msra.mxu0 0.0
  %2920 = vmatprep.mubr.f32.mxu0 0.0
  %v2921 = vand.u32 %v2461, 4294901760
  %2922 = vmatmul.mubr.f32.gmra.mrb[0].mxu0 %v2921
  %v2923 = vpop.f32.mrb[0].mxu0
  %v2924 = vadd.f32 %v2850, %v2923
  %v2925 = vpop.f32.mrb[0].mxu0
  %v2926 = vadd.f32 %v2852, %v2925
  %2927 = vdwg.mxu0
  %v2930 = vcombine.low %v2455, %v2457
  %v2932 = vunpack.c.l.s4 1983009808
  %v2933 = vunpack.c.0.s8 %v2932
  %v2934 = vlaneseq
  %v2935 = vshrl.u32 %v2934, 7
  %v2936 = vsub.s32 %v2933, %v2935
  %v2937 = vrot.slane %v2930, %v2936
  %v2939 = vmul.f32 %v23, %v2937
  %v2942 = vcombine.low %v2924, %v2926
  %v2944 = vunpack.c.l.s4 1983009808
  %v2945 = vunpack.c.0.s8 %v2944
  %v2946 = vlaneseq
  %v2947 = vshrl.u32 %v2946, 7
  %v2948 = vsub.s32 %v2945, %v2947
  %v2949 = vrot.slane %v2942, %v2948
  %v2951 = vsub.f32 %v2939, %v2949
  %v2953 = vlaneseq
  %v2954 = vshrl.u32 %v2953, 7
  %v2955 = vsub.s32 0, %v2954
  %v2956 = vrot.slane %v25, %v2955
  %v2957 = vlaneseq
  %v2958 = vshrl.u32 %v2957, 7
  %v2959 = vsub.s32 1, %v2958
  %v2960 = vrot.slane %v25, %v2959
  %v2961 = vcombine.low %v2956, %v2960
  %v2963 = vunpack.c.l.s4 1983009808
  %v2964 = vunpack.c.0.s8 %v2963
  %v2965 = vlaneseq
  %v2966 = vshrl.u32 %v2965, 7
  %v2967 = vsub.s32 %v2964, %v2966
  %v2968 = vrot.slane %v2961, %v2967
  %v2970 = vmul.f32 %v2951, %v2968
  %v2972 = vlaneseq
  %v2973 = vshrl.u32 %v2972, 7
  %v2974 = vsub.s32 0, %v2973
  %v2975 = vrot.slane %v26, %v2974
  %v2976 = vlaneseq
  %v2977 = vshrl.u32 %v2976, 7
  %v2978 = vsub.s32 1, %v2977
  %v2979 = vrot.slane %v26, %v2978
  %v2980 = vcombine.low %v2975, %v2979
  %v2982 = vunpack.c.l.s4 1983009808
  %v2983 = vunpack.c.0.s8 %v2982
  %v2984 = vlaneseq
  %v2985 = vshrl.u32 %v2984, 7
  %v2986 = vsub.s32 %v2983, %v2985
  %v2987 = vrot.slane %v2980, %v2986
  %v2989 = vadd.f32 %v2970, %v2987
  %v2990 = vld [vmem:[%s4] sm:$0x3]
  %v2991 = vld [vmem:[%s5] sm:$0x3]
  %v2994 = vunpack.c.l.s4 1983009808
  %v2995 = vunpack.c.0.s8 %v2994
  %v2996 = vlaneseq
  %v2997 = vshrl.u32 %v2996, 7
  %v2998 = vsub.s32 %v2995, %v2997
  %v2999 = vrot.slane %v24, %v2998
  %v3000 = vcombine.high %v2999, %v2999
  %3003 = vmatprep.subr.mxu0 0.0
  %v3004 = vand.u32 %v192, 4294901760
  %3005 = vmatpush1.msra.mxu0 %v3004
  %3006 = vmatprep.subr.mxu0 0.0
  %v3007 = vand.u32 %v193, 4294901760
  %3008 = vmatpush1.msra.mxu0 %v3007
  %3009 = vmatprep.subr.mxu0 0.0
  %v3010 = vand.u32 %v194, 4294901760
  %3011 = vmatpush1.msra.mxu0 %v3010
  %3012 = vmatprep.subr.mxu0 0.0
  %v3013 = vand.u32 %v195, 4294901760
  %3014 = vmatpush1.msra.mxu0 %v3013
  %3015 = vmatprep.subr.mxu0 0.0
  %v3016 = vand.u32 %v196, 4294901760
  %3017 = vmatpush1.msra.mxu0 %v3016
  %3018 = vmatprep.subr.mxu0 0.0
  %v3019 = vand.u32 %v197, 4294901760
  %3020 = vmatpush1.msra.mxu0 %v3019
  %3021 = vmatprep.subr.mxu0 0.0
  %v3022 = vand.u32 %v198, 4294901760
  %3023 = vmatpush1.msra.mxu0 %v3022
  %3024 = vmatprep.subr.mxu0 0.0
  %v3025 = vand.u32 %v199, 4294901760
  %3026 = vmatpush1.msra.mxu0 %v3025
  %3027 = vmatprep.subr.mxu0 0.0
  %v3028 = vand.u32 %v200, 4294901760
  %3029 = vmatpush1.msra.mxu0 %v3028
  %3030 = vmatprep.subr.mxu0 0.0
  %v3031 = vand.u32 %v201, 4294901760
  %3032 = vmatpush1.msra.mxu0 %v3031
  %3033 = vmatprep.subr.mxu0 0.0
  %v3034 = vand.u32 %v202, 4294901760
  %3035 = vmatpush1.msra.mxu0 %v3034
  %3036 = vmatprep.subr.mxu0 0.0
  %v3037 = vand.u32 %v203, 4294901760
  %3038 = vmatpush1.msra.mxu0 %v3037
  %3039 = vmatprep.subr.mxu0 0.0
  %v3040 = vand.u32 %v204, 4294901760
  %3041 = vmatpush1.msra.mxu0 %v3040
  %3042 = vmatprep.subr.mxu0 0.0
  %v3043 = vand.u32 %v205, 4294901760
  %3044 = vmatpush1.msra.mxu0 %v3043
  %3045 = vmatprep.subr.mxu0 0.0
  %v3046 = vand.u32 %v206, 4294901760
  %3047 = vmatpush1.msra.mxu0 %v3046
  %3048 = vmatprep.subr.mxu0 0.0
  %v3049 = vand.u32 %v207, 4294901760
  %3050 = vmatpush1.msra.mxu0 %v3049
  %3051 = vmatprep.subr.mxu0 0.0
  %v3052 = vand.u32 %v208, 4294901760
  %3053 = vmatpush1.msra.mxu0 %v3052
  %3054 = vmatprep.subr.mxu0 0.0
  %v3055 = vand.u32 %v209, 4294901760
  %3056 = vmatpush1.msra.mxu0 %v3055
  %3057 = vmatprep.subr.mxu0 0.0
  %v3058 = vand.u32 %v210, 4294901760
  %3059 = vmatpush1.msra.mxu0 %v3058
  %3060 = vmatprep.subr.mxu0 0.0
  %v3061 = vand.u32 %v211, 4294901760
  %3062 = vmatpush1.msra.mxu0 %v3061
  %3063 = vmatprep.subr.mxu0 0.0
  %v3064 = vand.u32 %v212, 4294901760
  %3065 = vmatpush1.msra.mxu0 %v3064
  %3066 = vmatprep.subr.mxu0 0.0
  %v3067 = vand.u32 %v213, 4294901760
  %3068 = vmatpush1.msra.mxu0 %v3067
  %3069 = vmatprep.subr.mxu0 0.0
  %v3070 = vand.u32 %v214, 4294901760
  %3071 = vmatpush1.msra.mxu0 %v3070
  %3072 = vmatprep.subr.mxu0 0.0
  %v3073 = vand.u32 %v215, 4294901760
  %3074 = vmatpush1.msra.mxu0 %v3073
  %3075 = vmatprep.subr.mxu0 0.0
  %v3076 = vand.u32 %v216, 4294901760
  %3077 = vmatpush1.msra.mxu0 %v3076
  %3078 = vmatprep.subr.mxu0 0.0
  %v3079 = vand.u32 %v217, 4294901760
  %3080 = vmatpush1.msra.mxu0 %v3079
  %3081 = vmatprep.subr.mxu0 0.0
  %v3082 = vand.u32 %v218, 4294901760
  %3083 = vmatpush1.msra.mxu0 %v3082
  %3084 = vmatprep.subr.mxu0 0.0
  %v3085 = vand.u32 %v219, 4294901760
  %3086 = vmatpush1.msra.mxu0 %v3085
  %3087 = vmatprep.subr.mxu0 0.0
  %v3088 = vand.u32 %v220, 4294901760
  %3089 = vmatpush1.msra.mxu0 %v3088
  %3090 = vmatprep.subr.mxu0 0.0
  %v3091 = vand.u32 %v221, 4294901760
  %3092 = vmatpush1.msra.mxu0 %v3091
  %3093 = vmatprep.subr.mxu0 0.0
  %v3094 = vand.u32 %v222, 4294901760
  %3095 = vmatpush1.msra.mxu0 %v3094
  %3096 = vmatprep.subr.mxu0 0.0
  %v3097 = vand.u32 %v223, 4294901760
  %3098 = vmatpush1.msra.mxu0 %v3097
  %v3099 = vand.u32 %v3000, 4294901760
  %v3100 = vsub.f32 %v3000, %v3099
  %v3101 = vand.u32 %v3100, 4294901760
  %v3102 = vsub.f32 %v3100, %v3101
  %v3103 = vand.u32 %v3102, 4294901760
  %3104 = vmatprep.mubr.f32.mxu0 %v3103
  %v3105 = vand.u32 %v2999, 4294901760
  %v3106 = vsub.f32 %v2999, %v3105
  %v3107 = vand.u32 %v3106, 4294901760
  %v3108 = vsub.f32 %v3106, %v3107
  %v3109 = vand.u32 %v3108, 4294901760
  %3110 = vmatmul.mubr.f32.gmra.mrb[0].mxu0 %v3109
  %v3111 = vpop.f32.mrb[0].mxu0
  %v3112 = vadd.f32 0.0, %v3111
  %v3113 = vpop.f32.mrb[0].mxu0
  %3114 = vdwg.mxu0
  %3115 = vmatprep.subr.mxu0 0.0
  %v3116 = vand.u32 %v192, 4294901760
  %v3117 = vsub.f32 %v192, %v3116
  %v3118 = vand.u32 %v3117, 4294901760
  %v3119 = vsub.f32 %v3117, %v3118
  %v3120 = vand.u32 %v3119, 4294901760
  %3121 = vmatpush1.msra.mxu0 %v3120
  %3122 = vmatprep.subr.mxu0 0.0
  %v3123 = vand.u32 %v193, 4294901760
  %v3124 = vsub.f32 %v193, %v3123
  %v3125 = vand.u32 %v3124, 4294901760
  %v3126 = vsub.f32 %v3124, %v3125
  %v3127 = vand.u32 %v3126, 4294901760
  %3128 = vmatpush1.msra.mxu0 %v3127
  %3129 = vmatprep.subr.mxu0 0.0
  %v3130 = vand.u32 %v194, 4294901760
  %v3131 = vsub.f32 %v194, %v3130
  %v3132 = vand.u32 %v3131, 4294901760
  %v3133 = vsub.f32 %v3131, %v3132
  %v3134 = vand.u32 %v3133, 4294901760
  %3135 = vmatpush1.msra.mxu0 %v3134
  %3136 = vmatprep.subr.mxu0 0.0
  %v3137 = vand.u32 %v195, 4294901760
  %v3138 = vsub.f32 %v195, %v3137
  %v3139 = vand.u32 %v3138, 4294901760
  %v3140 = vsub.f32 %v3138, %v3139
  %v3141 = vand.u32 %v3140, 4294901760
  %3142 = vmatpush1.msra.mxu0 %v3141
  %3143 = vmatprep.subr.mxu0 0.0
  %v3144 = vand.u32 %v196, 4294901760
  %v3145 = vsub.f32 %v196, %v3144
  %v3146 = vand.u32 %v3145, 4294901760
  %v3147 = vsub.f32 %v3145, %v3146
  %v3148 = vand.u32 %v3147, 4294901760
  %3149 = vmatpush1.msra.mxu0 %v3148
  %3150 = vmatprep.subr.mxu0 0.0
  %v3151 = vand.u32 %v197, 4294901760
  %v3152 = vsub.f32 %v197, %v3151
  %v3153 = vand.u32 %v3152, 4294901760
  %v3154 = vsub.f32 %v3152, %v3153
  %v3155 = vand.u32 %v3154, 4294901760
  %3156 = vmatpush1.msra.mxu0 %v3155
  %3157 = vmatprep.subr.mxu0 0.0
  %v3158 = vand.u32 %v198, 4294901760
  %v3159 = vsub.f32 %v198, %v3158
  %v3160 = vand.u32 %v3159, 4294901760
  %v3161 = vsub.f32 %v3159, %v3160
  %v3162 = vand.u32 %v3161, 4294901760
  %3163 = vmatpush1.msra.mxu0 %v3162
  %3164 = vmatprep.subr.mxu0 0.0
  %v3165 = vand.u32 %v199, 4294901760
  %v3166 = vsub.f32 %v199, %v3165
  %v3167 = vand.u32 %v3166, 4294901760
  %v3168 = vsub.f32 %v3166, %v3167
  %v3169 = vand.u32 %v3168, 4294901760
  %3170 = vmatpush1.msra.mxu0 %v3169
  %3171 = vmatprep.subr.mxu0 0.0
  %v3172 = vand.u32 %v200, 4294901760
  %v3173 = vsub.f32 %v200, %v3172
  %v3174 = vand.u32 %v3173, 4294901760
  %v3175 = vsub.f32 %v3173, %v3174
  %v3176 = vand.u32 %v3175, 4294901760
  %3177 = vmatpush1.msra.mxu0 %v3176
  %3178 = vmatprep.subr.mxu0 0.0
  %v3179 = vand.u32 %v201, 4294901760
  %v3180 = vsub.f32 %v201, %v3179
  %v3181 = vand.u32 %v3180, 4294901760
  %v3182 = vsub.f32 %v3180, %v3181
  %v3183 = vand.u32 %v3182, 4294901760
  %3184 = vmatpush1.msra.mxu0 %v3183
  %3185 = vmatprep.subr.mxu0 0.0
  %v3186 = vand.u32 %v202, 4294901760
  %v3187 = vsub.f32 %v202, %v3186
  %v3188 = vand.u32 %v3187, 4294901760
  %v3189 = vsub.f32 %v3187, %v3188
  %v3190 = vand.u32 %v3189, 4294901760
  %3191 = vmatpush1.msra.mxu0 %v3190
  %3192 = vmatprep.subr.mxu0 0.0
  %v3193 = vand.u32 %v203, 4294901760
  %v3194 = vsub.f32 %v203, %v3193
  %v3195 = vand.u32 %v3194, 4294901760
  %v3196 = vsub.f32 %v3194, %v3195
  %v3197 = vand.u32 %v3196, 4294901760
  %3198 = vmatpush1.msra.mxu0 %v3197
  %3199 = vmatprep.subr.mxu0 0.0
  %v3200 = vand.u32 %v204, 4294901760
  %v3201 = vsub.f32 %v204, %v3200
  %v3202 = vand.u32 %v3201, 4294901760
  %v3203 = vsub.f32 %v3201, %v3202
  %v3204 = vand.u32 %v3203, 4294901760
  %3205 = vmatpush1.msra.mxu0 %v3204
  %3206 = vmatprep.subr.mxu0 0.0
  %v3207 = vand.u32 %v205, 4294901760
  %v3208 = vsub.f32 %v205, %v3207
  %v3209 = vand.u32 %v3208, 4294901760
  %v3210 = vsub.f32 %v3208, %v3209
  %v3211 = vand.u32 %v3210, 4294901760
  %3212 = vmatpush1.msra.mxu0 %v3211
  %3213 = vmatprep.subr.mxu0 0.0
  %v3214 = vand.u32 %v206, 4294901760
  %v3215 = vsub.f32 %v206, %v3214
  %v3216 = vand.u32 %v3215, 4294901760
  %v3217 = vsub.f32 %v3215, %v3216
  %v3218 = vand.u32 %v3217, 4294901760
  %3219 = vmatpush1.msra.mxu0 %v3218
  %3220 = vmatprep.subr.mxu0 0.0
  %v3221 = vand.u32 %v207, 4294901760
  %v3222 = vsub.f32 %v207, %v3221
  %v3223 = vand.u32 %v3222, 4294901760
  %v3224 = vsub.f32 %v3222, %v3223
  %v3225 = vand.u32 %v3224, 4294901760
  %3226 = vmatpush1.msra.mxu0 %v3225
  %3227 = vmatprep.subr.mxu0 0.0
  %v3228 = vand.u32 %v208, 4294901760
  %v3229 = vsub.f32 %v208, %v3228
  %v3230 = vand.u32 %v3229, 4294901760
  %v3231 = vsub.f32 %v3229, %v3230
  %v3232 = vand.u32 %v3231, 4294901760
  %3233 = vmatpush1.msra.mxu0 %v3232
  %3234 = vmatprep.subr.mxu0 0.0
  %v3235 = vand.u32 %v209, 4294901760
  %v3236 = vsub.f32 %v209, %v3235
  %v3237 = vand.u32 %v3236, 4294901760
  %v3238 = vsub.f32 %v3236, %v3237
  %v3239 = vand.u32 %v3238, 4294901760
  %3240 = vmatpush1.msra.mxu0 %v3239
  %3241 = vmatprep.subr.mxu0 0.0
  %v3242 = vand.u32 %v210, 4294901760
  %v3243 = vsub.f32 %v210, %v3242
  %v3244 = vand.u32 %v3243, 4294901760
  %v3245 = vsub.f32 %v3243, %v3244
  %v3246 = vand.u32 %v3245, 4294901760
  %3247 = vmatpush1.msra.mxu0 %v3246
  %3248 = vmatprep.subr.mxu0 0.0
  %v3249 = vand.u32 %v211, 4294901760
  %v3250 = vsub.f32 %v211, %v3249
  %v3251 = vand.u32 %v3250, 4294901760
  %v3252 = vsub.f32 %v3250, %v3251
  %v3253 = vand.u32 %v3252, 4294901760
  %3254 = vmatpush1.msra.mxu0 %v3253
  %3255 = vmatprep.subr.mxu0 0.0
  %v3256 = vand.u32 %v212, 4294901760
  %v3257 = vsub.f32 %v212, %v3256
  %v3258 = vand.u32 %v3257, 4294901760
  %v3259 = vsub.f32 %v3257, %v3258
  %v3260 = vand.u32 %v3259, 4294901760
  %3261 = vmatpush1.msra.mxu0 %v3260
  %3262 = vmatprep.subr.mxu0 0.0
  %v3263 = vand.u32 %v213, 4294901760
  %v3264 = vsub.f32 %v213, %v3263
  %v3265 = vand.u32 %v3264, 4294901760
  %v3266 = vsub.f32 %v3264, %v3265
  %v3267 = vand.u32 %v3266, 4294901760
  %3268 = vmatpush1.msra.mxu0 %v3267
  %3269 = vmatprep.subr.mxu0 0.0
  %v3270 = vand.u32 %v214, 4294901760
  %v3271 = vsub.f32 %v214, %v3270
  %v3272 = vand.u32 %v3271, 4294901760
  %v3273 = vsub.f32 %v3271, %v3272
  %v3274 = vand.u32 %v3273, 4294901760
  %3275 = vmatpush1.msra.mxu0 %v3274
  %3276 = vmatprep.subr.mxu0 0.0
  %v3277 = vand.u32 %v215, 4294901760
  %v3278 = vsub.f32 %v215, %v3277
  %v3279 = vand.u32 %v3278, 4294901760
  %v3280 = vsub.f32 %v3278, %v3279
  %v3281 = vand.u32 %v3280, 4294901760
  %3282 = vmatpush1.msra.mxu0 %v3281
  %3283 = vmatprep.subr.mxu0 0.0
  %v3284 = vand.u32 %v216, 4294901760
  %v3285 = vsub.f32 %v216, %v3284
  %v3286 = vand.u32 %v3285, 4294901760
  %v3287 = vsub.f32 %v3285, %v3286
  %v3288 = vand.u32 %v3287, 4294901760
  %3289 = vmatpush1.msra.mxu0 %v3288
  %3290 = vmatprep.subr.mxu0 0.0
  %v3291 = vand.u32 %v217, 4294901760
  %v3292 = vsub.f32 %v217, %v3291
  %v3293 = vand.u32 %v3292, 4294901760
  %v3294 = vsub.f32 %v3292, %v3293
  %v3295 = vand.u32 %v3294, 4294901760
  %3296 = vmatpush1.msra.mxu0 %v3295
  %3297 = vmatprep.subr.mxu0 0.0
  %v3298 = vand.u32 %v218, 4294901760
  %v3299 = vsub.f32 %v218, %v3298
  %v3300 = vand.u32 %v3299, 4294901760
  %v3301 = vsub.f32 %v3299, %v3300
  %v3302 = vand.u32 %v3301, 4294901760
  %3303 = vmatpush1.msra.mxu0 %v3302
  %3304 = vmatprep.subr.mxu0 0.0
  %v3305 = vand.u32 %v219, 4294901760
  %v3306 = vsub.f32 %v219, %v3305
  %v3307 = vand.u32 %v3306, 4294901760
  %v3308 = vsub.f32 %v3306, %v3307
  %v3309 = vand.u32 %v3308, 4294901760
  %3310 = vmatpush1.msra.mxu0 %v3309
  %3311 = vmatprep.subr.mxu0 0.0
  %v3312 = vand.u32 %v220, 4294901760
  %v3313 = vsub.f32 %v220, %v3312
  %v3314 = vand.u32 %v3313, 4294901760
  %v3315 = vsub.f32 %v3313, %v3314
  %v3316 = vand.u32 %v3315, 4294901760
  %3317 = vmatpush1.msra.mxu0 %v3316
  %3318 = vmatprep.subr.mxu0 0.0
  %v3319 = vand.u32 %v221, 4294901760
  %v3320 = vsub.f32 %v221, %v3319
  %v3321 = vand.u32 %v3320, 4294901760
  %v3322 = vsub.f32 %v3320, %v3321
  %v3323 = vand.u32 %v3322, 4294901760
  %3324 = vmatpush1.msra.mxu0 %v3323
  %3325 = vmatprep.subr.mxu0 0.0
  %v3326 = vand.u32 %v222, 4294901760
  %v3327 = vsub.f32 %v222, %v3326
  %v3328 = vand.u32 %v3327, 4294901760
  %v3329 = vsub.f32 %v3327, %v3328
  %v3330 = vand.u32 %v3329, 4294901760
  %3331 = vmatpush1.msra.mxu0 %v3330
  %3332 = vmatprep.subr.mxu0 0.0
  %v3333 = vand.u32 %v223, 4294901760
  %v3334 = vsub.f32 %v223, %v3333
  %v3335 = vand.u32 %v3334, 4294901760
  %v3336 = vsub.f32 %v3334, %v3335
  %v3337 = vand.u32 %v3336, 4294901760
  %3338 = vmatpush1.msra.mxu0 %v3337
  %v3339 = vand.u32 %v3000, 4294901760
  %3340 = vmatprep.mubr.f32.mxu0 %v3339
  %v3341 = vand.u32 %v2999, 4294901760
  %3342 = vmatmul.mubr.f32.gmra.mrb[0].mxu0 %v3341
  %v3343 = vpop.f32.mrb[0].mxu0
  %v3344 = vadd.f32 %v3112, %v3343
  %v3345 = vpop.f32.mrb[0].mxu0
  %3346 = vdwg.mxu0
  %3347 = vmatprep.subr.mxu0 0.0
  %v3348 = vand.u32 %v192, 4294901760
  %v3349 = vsub.f32 %v192, %v3348
  %3350 = vmatpush1.msra.mxu0 %v3349
  %3351 = vmatprep.subr.mxu0 0.0
  %v3352 = vand.u32 %v193, 4294901760
  %v3353 = vsub.f32 %v193, %v3352
  %3354 = vmatpush1.msra.mxu0 %v3353
  %3355 = vmatprep.subr.mxu0 0.0
  %v3356 = vand.u32 %v194, 4294901760
  %v3357 = vsub.f32 %v194, %v3356
  %3358 = vmatpush1.msra.mxu0 %v3357
  %3359 = vmatprep.subr.mxu0 0.0
  %v3360 = vand.u32 %v195, 4294901760
  %v3361 = vsub.f32 %v195, %v3360
  %3362 = vmatpush1.msra.mxu0 %v3361
  %3363 = vmatprep.subr.mxu0 0.0
  %v3364 = vand.u32 %v196, 4294901760
  %v3365 = vsub.f32 %v196, %v3364
  %3366 = vmatpush1.msra.mxu0 %v3365
  %3367 = vmatprep.subr.mxu0 0.0
  %v3368 = vand.u32 %v197, 4294901760
  %v3369 = vsub.f32 %v197, %v3368
  %3370 = vmatpush1.msra.mxu0 %v3369
  %3371 = vmatprep.subr.mxu0 0.0
  %v3372 = vand.u32 %v198, 4294901760
  %v3373 = vsub.f32 %v198, %v3372
  %3374 = vmatpush1.msra.mxu0 %v3373
  %3375 = vmatprep.subr.mxu0 0.0
  %v3376 = vand.u32 %v199, 4294901760
  %v3377 = vsub.f32 %v199, %v3376
  %3378 = vmatpush1.msra.mxu0 %v3377
  %3379 = vmatprep.subr.mxu0 0.0
  %v3380 = vand.u32 %v200, 4294901760
  %v3381 = vsub.f32 %v200, %v3380
  %3382 = vmatpush1.msra.mxu0 %v3381
  %3383 = vmatprep.subr.mxu0 0.0
  %v3384 = vand.u32 %v201, 4294901760
  %v3385 = vsub.f32 %v201, %v3384
  %3386 = vmatpush1.msra.mxu0 %v3385
  %3387 = vmatprep.subr.mxu0 0.0
  %v3388 = vand.u32 %v202, 4294901760
  %v3389 = vsub.f32 %v202, %v3388
  %3390 = vmatpush1.msra.mxu0 %v3389
  %3391 = vmatprep.subr.mxu0 0.0
  %v3392 = vand.u32 %v203, 4294901760
  %v3393 = vsub.f32 %v203, %v3392
  %3394 = vmatpush1.msra.mxu0 %v3393
  %3395 = vmatprep.subr.mxu0 0.0
  %v3396 = vand.u32 %v204, 4294901760
  %v3397 = vsub.f32 %v204, %v3396
  %3398 = vmatpush1.msra.mxu0 %v3397
  %3399 = vmatprep.subr.mxu0 0.0
  %v3400 = vand.u32 %v205, 4294901760
  %v3401 = vsub.f32 %v205, %v3400
  %3402 = vmatpush1.msra.mxu0 %v3401
  %3403 = vmatprep.subr.mxu0 0.0
  %v3404 = vand.u32 %v206, 4294901760
  %v3405 = vsub.f32 %v206, %v3404
  %3406 = vmatpush1.msra.mxu0 %v3405
  %3407 = vmatprep.subr.mxu0 0.0
  %v3408 = vand.u32 %v207, 4294901760
  %v3409 = vsub.f32 %v207, %v3408
  %3410 = vmatpush1.msra.mxu0 %v3409
  %3411 = vmatprep.subr.mxu0 0.0
  %v3412 = vand.u32 %v208, 4294901760
  %v3413 = vsub.f32 %v208, %v3412
  %3414 = vmatpush1.msra.mxu0 %v3413
  %3415 = vmatprep.subr.mxu0 0.0
  %v3416 = vand.u32 %v209, 4294901760
  %v3417 = vsub.f32 %v209, %v3416
  %3418 = vmatpush1.msra.mxu0 %v3417
  %3419 = vmatprep.subr.mxu0 0.0
  %v3420 = vand.u32 %v210, 4294901760
  %v3421 = vsub.f32 %v210, %v3420
  %3422 = vmatpush1.msra.mxu0 %v3421
  %3423 = vmatprep.subr.mxu0 0.0
  %v3424 = vand.u32 %v211, 4294901760
  %v3425 = vsub.f32 %v211, %v3424
  %3426 = vmatpush1.msra.mxu0 %v3425
  %3427 = vmatprep.subr.mxu0 0.0
  %v3428 = vand.u32 %v212, 4294901760
  %v3429 = vsub.f32 %v212, %v3428
  %3430 = vmatpush1.msra.mxu0 %v3429
  %3431 = vmatprep.subr.mxu0 0.0
  %v3432 = vand.u32 %v213, 4294901760
  %v3433 = vsub.f32 %v213, %v3432
  %3434 = vmatpush1.msra.mxu0 %v3433
  %3435 = vmatprep.subr.mxu0 0.0
  %v3436 = vand.u32 %v214, 4294901760
  %v3437 = vsub.f32 %v214, %v3436
  %3438 = vmatpush1.msra.mxu0 %v3437
  %3439 = vmatprep.subr.mxu0 0.0
  %v3440 = vand.u32 %v215, 4294901760
  %v3441 = vsub.f32 %v215, %v3440
  %3442 = vmatpush1.msra.mxu0 %v3441
  %3443 = vmatprep.subr.mxu0 0.0
  %v3444 = vand.u32 %v216, 4294901760
  %v3445 = vsub.f32 %v216, %v3444
  %3446 = vmatpush1.msra.mxu0 %v3445
  %3447 = vmatprep.subr.mxu0 0.0
  %v3448 = vand.u32 %v217, 4294901760
  %v3449 = vsub.f32 %v217, %v3448
  %3450 = vmatpush1.msra.mxu0 %v3449
  %3451 = vmatprep.subr.mxu0 0.0
  %v3452 = vand.u32 %v218, 4294901760
  %v3453 = vsub.f32 %v218, %v3452
  %3454 = vmatpush1.msra.mxu0 %v3453
  %3455 = vmatprep.subr.mxu0 0.0
  %v3456 = vand.u32 %v219, 4294901760
  %v3457 = vsub.f32 %v219, %v3456
  %3458 = vmatpush1.msra.mxu0 %v3457
  %3459 = vmatprep.subr.mxu0 0.0
  %v3460 = vand.u32 %v220, 4294901760
  %v3461 = vsub.f32 %v220, %v3460
  %3462 = vmatpush1.msra.mxu0 %v3461
  %3463 = vmatprep.subr.mxu0 0.0
  %v3464 = vand.u32 %v221, 4294901760
  %v3465 = vsub.f32 %v221, %v3464
  %3466 = vmatpush1.msra.mxu0 %v3465
  %3467 = vmatprep.subr.mxu0 0.0
  %v3468 = vand.u32 %v222, 4294901760
  %v3469 = vsub.f32 %v222, %v3468
  %3470 = vmatpush1.msra.mxu0 %v3469
  %3471 = vmatprep.subr.mxu0 0.0
  %v3472 = vand.u32 %v223, 4294901760
  %v3473 = vsub.f32 %v223, %v3472
  %3474 = vmatpush1.msra.mxu0 %v3473
  %v3475 = vand.u32 %v3000, 4294901760
  %v3476 = vsub.f32 %v3000, %v3475
  %3477 = vmatprep.mubr.f32.mxu0 %v3476
  %v3478 = vand.u32 %v2999, 4294901760
  %v3479 = vsub.f32 %v2999, %v3478
  %3480 = vmatmul.mubr.f32.gmra.mrb[0].mxu0 %v3479
  %v3481 = vpop.f32.mrb[0].mxu0
  %v3482 = vadd.f32 %v3344, %v3481
  %v3483 = vpop.f32.mrb[0].mxu0
  %3484 = vdwg.mxu0
  %3485 = vmatprep.subr.mxu0 0.0
  %v3486 = vand.u32 %v192, 4294901760
  %3487 = vmatpush1.msra.mxu0 %v3486
  %3488 = vmatprep.subr.mxu0 0.0
  %v3489 = vand.u32 %v193, 4294901760
  %3490 = vmatpush1.msra.mxu0 %v3489
  %3491 = vmatprep.subr.mxu0 0.0
  %v3492 = vand.u32 %v194, 4294901760
  %3493 = vmatpush1.msra.mxu0 %v3492
  %3494 = vmatprep.subr.mxu0 0.0
  %v3495 = vand.u32 %v195, 4294901760
  %3496 = vmatpush1.msra.mxu0 %v3495
  %3497 = vmatprep.subr.mxu0 0.0
  %v3498 = vand.u32 %v196, 4294901760
  %3499 = vmatpush1.msra.mxu0 %v3498
  %3500 = vmatprep.subr.mxu0 0.0
  %v3501 = vand.u32 %v197, 4294901760
  %3502 = vmatpush1.msra.mxu0 %v3501
  %3503 = vmatprep.subr.mxu0 0.0
  %v3504 = vand.u32 %v198, 4294901760
  %3505 = vmatpush1.msra.mxu0 %v3504
  %3506 = vmatprep.subr.mxu0 0.0
  %v3507 = vand.u32 %v199, 4294901760
  %3508 = vmatpush1.msra.mxu0 %v3507
  %3509 = vmatprep.subr.mxu0 0.0
  %v3510 = vand.u32 %v200, 4294901760
  %3511 = vmatpush1.msra.mxu0 %v3510
  %3512 = vmatprep.subr.mxu0 0.0
  %v3513 = vand.u32 %v201, 4294901760
  %3514 = vmatpush1.msra.mxu0 %v3513
  %3515 = vmatprep.subr.mxu0 0.0
  %v3516 = vand.u32 %v202, 4294901760
  %3517 = vmatpush1.msra.mxu0 %v3516
  %3518 = vmatprep.subr.mxu0 0.0
  %v3519 = vand.u32 %v203, 4294901760
  %3520 = vmatpush1.msra.mxu0 %v3519
  %3521 = vmatprep.subr.mxu0 0.0
  %v3522 = vand.u32 %v204, 4294901760
  %3523 = vmatpush1.msra.mxu0 %v3522
  %3524 = vmatprep.subr.mxu0 0.0
  %v3525 = vand.u32 %v205, 4294901760
  %3526 = vmatpush1.msra.mxu0 %v3525
  %3527 = vmatprep.subr.mxu0 0.0
  %v3528 = vand.u32 %v206, 4294901760
  %3529 = vmatpush1.msra.mxu0 %v3528
  %3530 = vmatprep.subr.mxu0 0.0
  %v3531 = vand.u32 %v207, 4294901760
  %3532 = vmatpush1.msra.mxu0 %v3531
  %3533 = vmatprep.subr.mxu0 0.0
  %v3534 = vand.u32 %v208, 4294901760
  %3535 = vmatpush1.msra.mxu0 %v3534
  %3536 = vmatprep.subr.mxu0 0.0
  %v3537 = vand.u32 %v209, 4294901760
  %3538 = vmatpush1.msra.mxu0 %v3537
  %3539 = vmatprep.subr.mxu0 0.0
  %v3540 = vand.u32 %v210, 4294901760
  %3541 = vmatpush1.msra.mxu0 %v3540
  %3542 = vmatprep.subr.mxu0 0.0
  %v3543 = vand.u32 %v211, 4294901760
  %3544 = vmatpush1.msra.mxu0 %v3543
  %3545 = vmatprep.subr.mxu0 0.0
  %v3546 = vand.u32 %v212, 4294901760
  %3547 = vmatpush1.msra.mxu0 %v3546
  %3548 = vmatprep.subr.mxu0 0.0
  %v3549 = vand.u32 %v213, 4294901760
  %3550 = vmatpush1.msra.mxu0 %v3549
  %3551 = vmatprep.subr.mxu0 0.0
  %v3552 = vand.u32 %v214, 4294901760
  %3553 = vmatpush1.msra.mxu0 %v3552
  %3554 = vmatprep.subr.mxu0 0.0
  %v3555 = vand.u32 %v215, 4294901760
  %3556 = vmatpush1.msra.mxu0 %v3555
  %3557 = vmatprep.subr.mxu0 0.0
  %v3558 = vand.u32 %v216, 4294901760
  %3559 = vmatpush1.msra.mxu0 %v3558
  %3560 = vmatprep.subr.mxu0 0.0
  %v3561 = vand.u32 %v217, 4294901760
  %3562 = vmatpush1.msra.mxu0 %v3561
  %3563 = vmatprep.subr.mxu0 0.0
  %v3564 = vand.u32 %v218, 4294901760
  %3565 = vmatpush1.msra.mxu0 %v3564
  %3566 = vmatprep.subr.mxu0 0.0
  %v3567 = vand.u32 %v219, 4294901760
  %3568 = vmatpush1.msra.mxu0 %v3567
  %3569 = vmatprep.subr.mxu0 0.0
  %v3570 = vand.u32 %v220, 4294901760
  %3571 = vmatpush1.msra.mxu0 %v3570
  %3572 = vmatprep.subr.mxu0 0.0
  %v3573 = vand.u32 %v221, 4294901760
  %3574 = vmatpush1.msra.mxu0 %v3573
  %3575 = vmatprep.subr.mxu0 0.0
  %v3576 = vand.u32 %v222, 4294901760
  %3577 = vmatpush1.msra.mxu0 %v3576
  %3578 = vmatprep.subr.mxu0 0.0
  %v3579 = vand.u32 %v223, 4294901760
  %3580 = vmatpush1.msra.mxu0 %v3579
  %v3581 = vand.u32 %v3000, 4294901760
  %v3582 = vsub.f32 %v3000, %v3581
  %v3583 = vand.u32 %v3582, 4294901760
  %3584 = vmatprep.mubr.f32.mxu0 %v3583
  %v3585 = vand.u32 %v2999, 4294901760
  %v3586 = vsub.f32 %v2999, %v3585
  %v3587 = vand.u32 %v3586, 4294901760
  %3588 = vmatmul.mubr.f32.gmra.mrb[0].mxu0 %v3587
  %v3589 = vpop.f32.mrb[0].mxu0
  %v3590 = vadd.f32 %v3482, %v3589
  %v3591 = vpop.f32.mrb[0].mxu0
  %3592 = vdwg.mxu0
  %3593 = vmatprep.subr.mxu0 0.0
  %v3594 = vand.u32 %v192, 4294901760
  %v3595 = vsub.f32 %v192, %v3594
  %v3596 = vand.u32 %v3595, 4294901760
  %3597 = vmatpush1.msra.mxu0 %v3596
  %3598 = vmatprep.subr.mxu0 0.0
  %v3599 = vand.u32 %v193, 4294901760
  %v3600 = vsub.f32 %v193, %v3599
  %v3601 = vand.u32 %v3600, 4294901760
  %3602 = vmatpush1.msra.mxu0 %v3601
  %3603 = vmatprep.subr.mxu0 0.0
  %v3604 = vand.u32 %v194, 4294901760
  %v3605 = vsub.f32 %v194, %v3604
  %v3606 = vand.u32 %v3605, 4294901760
  %3607 = vmatpush1.msra.mxu0 %v3606
  %3608 = vmatprep.subr.mxu0 0.0
  %v3609 = vand.u32 %v195, 4294901760
  %v3610 = vsub.f32 %v195, %v3609
  %v3611 = vand.u32 %v3610, 4294901760
  %3612 = vmatpush1.msra.mxu0 %v3611
  %3613 = vmatprep.subr.mxu0 0.0
  %v3614 = vand.u32 %v196, 4294901760
  %v3615 = vsub.f32 %v196, %v3614
  %v3616 = vand.u32 %v3615, 4294901760
  %3617 = vmatpush1.msra.mxu0 %v3616
  %3618 = vmatprep.subr.mxu0 0.0
  %v3619 = vand.u32 %v197, 4294901760
  %v3620 = vsub.f32 %v197, %v3619
  %v3621 = vand.u32 %v3620, 4294901760
  %3622 = vmatpush1.msra.mxu0 %v3621
  %3623 = vmatprep.subr.mxu0 0.0
  %v3624 = vand.u32 %v198, 4294901760
  %v3625 = vsub.f32 %v198, %v3624
  %v3626 = vand.u32 %v3625, 4294901760
  %3627 = vmatpush1.msra.mxu0 %v3626
  %3628 = vmatprep.subr.mxu0 0.0
  %v3629 = vand.u32 %v199, 4294901760
  %v3630 = vsub.f32 %v199, %v3629
  %v3631 = vand.u32 %v3630, 4294901760
  %3632 = vmatpush1.msra.mxu0 %v3631
  %3633 = vmatprep.subr.mxu0 0.0
  %v3634 = vand.u32 %v200, 4294901760
  %v3635 = vsub.f32 %v200, %v3634
  %v3636 = vand.u32 %v3635, 4294901760
  %3637 = vmatpush1.msra.mxu0 %v3636
  %3638 = vmatprep.subr.mxu0 0.0
  %v3639 = vand.u32 %v201, 4294901760
  %v3640 = vsub.f32 %v201, %v3639
  %v3641 = vand.u32 %v3640, 4294901760
  %3642 = vmatpush1.msra.mxu0 %v3641
  %3643 = vmatprep.subr.mxu0 0.0
  %v3644 = vand.u32 %v202, 4294901760
  %v3645 = vsub.f32 %v202, %v3644
  %v3646 = vand.u32 %v3645, 4294901760
  %3647 = vmatpush1.msra.mxu0 %v3646
  %3648 = vmatprep.subr.mxu0 0.0
  %v3649 = vand.u32 %v203, 4294901760
  %v3650 = vsub.f32 %v203, %v3649
  %v3651 = vand.u32 %v3650, 4294901760
  %3652 = vmatpush1.msra.mxu0 %v3651
  %3653 = vmatprep.subr.mxu0 0.0
  %v3654 = vand.u32 %v204, 4294901760
  %v3655 = vsub.f32 %v204, %v3654
  %v3656 = vand.u32 %v3655, 4294901760
  %3657 = vmatpush1.msra.mxu0 %v3656
  %3658 = vmatprep.subr.mxu0 0.0
  %v3659 = vand.u32 %v205, 4294901760
  %v3660 = vsub.f32 %v205, %v3659
  %v3661 = vand.u32 %v3660, 4294901760
  %3662 = vmatpush1.msra.mxu0 %v3661
  %3663 = vmatprep.subr.mxu0 0.0
  %v3664 = vand.u32 %v206, 4294901760
  %v3665 = vsub.f32 %v206, %v3664
  %v3666 = vand.u32 %v3665, 4294901760
  %3667 = vmatpush1.msra.mxu0 %v3666
  %3668 = vmatprep.subr.mxu0 0.0
  %v3669 = vand.u32 %v207, 4294901760
  %v3670 = vsub.f32 %v207, %v3669
  %v3671 = vand.u32 %v3670, 4294901760
  %3672 = vmatpush1.msra.mxu0 %v3671
  %3673 = vmatprep.subr.mxu0 0.0
  %v3674 = vand.u32 %v208, 4294901760
  %v3675 = vsub.f32 %v208, %v3674
  %v3676 = vand.u32 %v3675, 4294901760
  %3677 = vmatpush1.msra.mxu0 %v3676
  %3678 = vmatprep.subr.mxu0 0.0
  %v3679 = vand.u32 %v209, 4294901760
  %v3680 = vsub.f32 %v209, %v3679
  %v3681 = vand.u32 %v3680, 4294901760
  %3682 = vmatpush1.msra.mxu0 %v3681
  %3683 = vmatprep.subr.mxu0 0.0
  %v3684 = vand.u32 %v210, 4294901760
  %v3685 = vsub.f32 %v210, %v3684
  %v3686 = vand.u32 %v3685, 4294901760
  %3687 = vmatpush1.msra.mxu0 %v3686
  %3688 = vmatprep.subr.mxu0 0.0
  %v3689 = vand.u32 %v211, 4294901760
  %v3690 = vsub.f32 %v211, %v3689
  %v3691 = vand.u32 %v3690, 4294901760
  %3692 = vmatpush1.msra.mxu0 %v3691
  %3693 = vmatprep.subr.mxu0 0.0
  %v3694 = vand.u32 %v212, 4294901760
  %v3695 = vsub.f32 %v212, %v3694
  %v3696 = vand.u32 %v3695, 4294901760
  %3697 = vmatpush1.msra.mxu0 %v3696
  %3698 = vmatprep.subr.mxu0 0.0
  %v3699 = vand.u32 %v213, 4294901760
  %v3700 = vsub.f32 %v213, %v3699
  %v3701 = vand.u32 %v3700, 4294901760
  %3702 = vmatpush1.msra.mxu0 %v3701
  %3703 = vmatprep.subr.mxu0 0.0
  %v3704 = vand.u32 %v214, 4294901760
  %v3705 = vsub.f32 %v214, %v3704
  %v3706 = vand.u32 %v3705, 4294901760
  %3707 = vmatpush1.msra.mxu0 %v3706
  %3708 = vmatprep.subr.mxu0 0.0
  %v3709 = vand.u32 %v215, 4294901760
  %v3710 = vsub.f32 %v215, %v3709
  %v3711 = vand.u32 %v3710, 4294901760
  %3712 = vmatpush1.msra.mxu0 %v3711
  %3713 = vmatprep.subr.mxu0 0.0
  %v3714 = vand.u32 %v216, 4294901760
  %v3715 = vsub.f32 %v216, %v3714
  %v3716 = vand.u32 %v3715, 4294901760
  %3717 = vmatpush1.msra.mxu0 %v3716
  %3718 = vmatprep.subr.mxu0 0.0
  %v3719 = vand.u32 %v217, 4294901760
  %v3720 = vsub.f32 %v217, %v3719
  %v3721 = vand.u32 %v3720, 4294901760
  %3722 = vmatpush1.msra.mxu0 %v3721
  %3723 = vmatprep.subr.mxu0 0.0
  %v3724 = vand.u32 %v218, 4294901760
  %v3725 = vsub.f32 %v218, %v3724
  %v3726 = vand.u32 %v3725, 4294901760
  %3727 = vmatpush1.msra.mxu0 %v3726
  %3728 = vmatprep.subr.mxu0 0.0
  %v3729 = vand.u32 %v219, 4294901760
  %v3730 = vsub.f32 %v219, %v3729
  %v3731 = vand.u32 %v3730, 4294901760
  %3732 = vmatpush1.msra.mxu0 %v3731
  %3733 = vmatprep.subr.mxu0 0.0
  %v3734 = vand.u32 %v220, 4294901760
  %v3735 = vsub.f32 %v220, %v3734
  %v3736 = vand.u32 %v3735, 4294901760
  %3737 = vmatpush1.msra.mxu0 %v3736
  %3738 = vmatprep.subr.mxu0 0.0
  %v3739 = vand.u32 %v221, 4294901760
  %v3740 = vsub.f32 %v221, %v3739
  %v3741 = vand.u32 %v3740, 4294901760
  %3742 = vmatpush1.msra.mxu0 %v3741
  %3743 = vmatprep.subr.mxu0 0.0
  %v3744 = vand.u32 %v222, 4294901760
  %v3745 = vsub.f32 %v222, %v3744
  %v3746 = vand.u32 %v3745, 4294901760
  %3747 = vmatpush1.msra.mxu0 %v3746
  %3748 = vmatprep.subr.mxu0 0.0
  %v3749 = vand.u32 %v223, 4294901760
  %v3750 = vsub.f32 %v223, %v3749
  %v3751 = vand.u32 %v3750, 4294901760
  %3752 = vmatpush1.msra.mxu0 %v3751
  %v3753 = vand.u32 %v3000, 4294901760
  %3754 = vmatprep.mubr.f32.mxu0 %v3753
  %v3755 = vand.u32 %v2999, 4294901760
  %3756 = vmatmul.mubr.f32.gmra.mrb[0].mxu0 %v3755
  %v3757 = vpop.f32.mrb[0].mxu0
  %v3758 = vadd.f32 %v3590, %v3757
  %v3759 = vpop.f32.mrb[0].mxu0
  %3760 = vdwg.mxu0
  %3761 = vmatprep.subr.mxu0 0.0
  %v3762 = vand.u32 %v192, 4294901760
  %3763 = vmatpush1.msra.mxu0 %v3762
  %3764 = vmatprep.subr.mxu0 0.0
  %v3765 = vand.u32 %v193, 4294901760
  %3766 = vmatpush1.msra.mxu0 %v3765
  %3767 = vmatprep.subr.mxu0 0.0
  %v3768 = vand.u32 %v194, 4294901760
  %3769 = vmatpush1.msra.mxu0 %v3768
  %3770 = vmatprep.subr.mxu0 0.0
  %v3771 = vand.u32 %v195, 4294901760
  %3772 = vmatpush1.msra.mxu0 %v3771
  %3773 = vmatprep.subr.mxu0 0.0
  %v3774 = vand.u32 %v196, 4294901760
  %3775 = vmatpush1.msra.mxu0 %v3774
  %3776 = vmatprep.subr.mxu0 0.0
  %v3777 = vand.u32 %v197, 4294901760
  %3778 = vmatpush1.msra.mxu0 %v3777
  %3779 = vmatprep.subr.mxu0 0.0
  %v3780 = vand.u32 %v198, 4294901760
  %3781 = vmatpush1.msra.mxu0 %v3780
  %3782 = vmatprep.subr.mxu0 0.0
  %v3783 = vand.u32 %v199, 4294901760
  %3784 = vmatpush1.msra.mxu0 %v3783
  %3785 = vmatprep.subr.mxu0 0.0
  %v3786 = vand.u32 %v200, 4294901760
  %3787 = vmatpush1.msra.mxu0 %v3786
  %3788 = vmatprep.subr.mxu0 0.0
  %v3789 = vand.u32 %v201, 4294901760
  %3790 = vmatpush1.msra.mxu0 %v3789
  %3791 = vmatprep.subr.mxu0 0.0
  %v3792 = vand.u32 %v202, 4294901760
  %3793 = vmatpush1.msra.mxu0 %v3792
  %3794 = vmatprep.subr.mxu0 0.0
  %v3795 = vand.u32 %v203, 4294901760
  %3796 = vmatpush1.msra.mxu0 %v3795
  %3797 = vmatprep.subr.mxu0 0.0
  %v3798 = vand.u32 %v204, 4294901760
  %3799 = vmatpush1.msra.mxu0 %v3798
  %3800 = vmatprep.subr.mxu0 0.0
  %v3801 = vand.u32 %v205, 4294901760
  %3802 = vmatpush1.msra.mxu0 %v3801
  %3803 = vmatprep.subr.mxu0 0.0
  %v3804 = vand.u32 %v206, 4294901760
  %3805 = vmatpush1.msra.mxu0 %v3804
  %3806 = vmatprep.subr.mxu0 0.0
  %v3807 = vand.u32 %v207, 4294901760
  %3808 = vmatpush1.msra.mxu0 %v3807
  %3809 = vmatprep.subr.mxu0 0.0
  %v3810 = vand.u32 %v208, 4294901760
  %3811 = vmatpush1.msra.mxu0 %v3810
  %3812 = vmatprep.subr.mxu0 0.0
  %v3813 = vand.u32 %v209, 4294901760
  %3814 = vmatpush1.msra.mxu0 %v3813
  %3815 = vmatprep.subr.mxu0 0.0
  %v3816 = vand.u32 %v210, 4294901760
  %3817 = vmatpush1.msra.mxu0 %v3816
  %3818 = vmatprep.subr.mxu0 0.0
  %v3819 = vand.u32 %v211, 4294901760
  %3820 = vmatpush1.msra.mxu0 %v3819
  %3821 = vmatprep.subr.mxu0 0.0
  %v3822 = vand.u32 %v212, 4294901760
  %3823 = vmatpush1.msra.mxu0 %v3822
  %3824 = vmatprep.subr.mxu0 0.0
  %v3825 = vand.u32 %v213, 4294901760
  %3826 = vmatpush1.msra.mxu0 %v3825
  %3827 = vmatprep.subr.mxu0 0.0
  %v3828 = vand.u32 %v214, 4294901760
  %3829 = vmatpush1.msra.mxu0 %v3828
  %3830 = vmatprep.subr.mxu0 0.0
  %v3831 = vand.u32 %v215, 4294901760
  %3832 = vmatpush1.msra.mxu0 %v3831
  %3833 = vmatprep.subr.mxu0 0.0
  %v3834 = vand.u32 %v216, 4294901760
  %3835 = vmatpush1.msra.mxu0 %v3834
  %3836 = vmatprep.subr.mxu0 0.0
  %v3837 = vand.u32 %v217, 4294901760
  %3838 = vmatpush1.msra.mxu0 %v3837
  %3839 = vmatprep.subr.mxu0 0.0
  %v3840 = vand.u32 %v218, 4294901760
  %3841 = vmatpush1.msra.mxu0 %v3840
  %3842 = vmatprep.subr.mxu0 0.0
  %v3843 = vand.u32 %v219, 4294901760
  %3844 = vmatpush1.msra.mxu0 %v3843
  %3845 = vmatprep.subr.mxu0 0.0
  %v3846 = vand.u32 %v220, 4294901760
  %3847 = vmatpush1.msra.mxu0 %v3846
  %3848 = vmatprep.subr.mxu0 0.0
  %v3849 = vand.u32 %v221, 4294901760
  %3850 = vmatpush1.msra.mxu0 %v3849
  %3851 = vmatprep.subr.mxu0 0.0
  %v3852 = vand.u32 %v222, 4294901760
  %3853 = vmatpush1.msra.mxu0 %v3852
  %3854 = vmatprep.subr.mxu0 0.0
  %v3855 = vand.u32 %v223, 4294901760
  %3856 = vmatpush1.msra.mxu0 %v3855
  %v3857 = vand.u32 %v3000, 4294901760
  %3858 = vmatprep.mubr.f32.mxu0 %v3857
  %v3859 = vand.u32 %v2999, 4294901760
  %3860 = vmatmul.mubr.f32.gmra.mrb[0].mxu0 %v3859
  %v3861 = vpop.f32.mrb[0].mxu0
  %v3862 = vadd.f32 %v3758, %v3861
  %v3863 = vpop.f32.mrb[0].mxu0
  %3864 = vdwg.mxu0
  %v3865 = vmul.f32 %v24, %v24
  %v3868 = vunpack.c.l.s4 1983009808
  %v3869 = vunpack.c.0.s8 %v3868
  %v3870 = vlaneseq
  %v3871 = vshrl.u32 %v3870, 7
  %v3872 = vsub.s32 %v3869, %v3871
  %v3873 = vrot.slane %v3865, %v3872
  %v3874 = vcombine.high %v3873, %v3873
  %3877 = vmatprep.subr.mxu0 0.0
  %v3878 = vand.u32 %v192, 4294901760
  %3879 = vmatpush1.msra.mxu0 %v3878
  %3880 = vmatprep.subr.mxu0 0.0
  %v3881 = vand.u32 %v193, 4294901760
  %3882 = vmatpush1.msra.mxu0 %v3881
  %3883 = vmatprep.subr.mxu0 0.0
  %v3884 = vand.u32 %v194, 4294901760
  %3885 = vmatpush1.msra.mxu0 %v3884
  %3886 = vmatprep.subr.mxu0 0.0
  %v3887 = vand.u32 %v195, 4294901760
  %3888 = vmatpush1.msra.mxu0 %v3887
  %3889 = vmatprep.subr.mxu0 0.0
  %v3890 = vand.u32 %v196, 4294901760
  %3891 = vmatpush1.msra.mxu0 %v3890
  %3892 = vmatprep.subr.mxu0 0.0
  %v3893 = vand.u32 %v197, 4294901760
  %3894 = vmatpush1.msra.mxu0 %v3893
  %3895 = vmatprep.subr.mxu0 0.0
  %v3896 = vand.u32 %v198, 4294901760
  %3897 = vmatpush1.msra.mxu0 %v3896
  %3898 = vmatprep.subr.mxu0 0.0
  %v3899 = vand.u32 %v199, 4294901760
  %3900 = vmatpush1.msra.mxu0 %v3899
  %3901 = vmatprep.subr.mxu0 0.0
  %v3902 = vand.u32 %v200, 4294901760
  %3903 = vmatpush1.msra.mxu0 %v3902
  %3904 = vmatprep.subr.mxu0 0.0
  %v3905 = vand.u32 %v201, 4294901760
  %3906 = vmatpush1.msra.mxu0 %v3905
  %3907 = vmatprep.subr.mxu0 0.0
  %v3908 = vand.u32 %v202, 4294901760
  %3909 = vmatpush1.msra.mxu0 %v3908
  %3910 = vmatprep.subr.mxu0 0.0
  %v3911 = vand.u32 %v203, 4294901760
  %3912 = vmatpush1.msra.mxu0 %v3911
  %3913 = vmatprep.subr.mxu0 0.0
  %v3914 = vand.u32 %v204, 4294901760
  %3915 = vmatpush1.msra.mxu0 %v3914
  %3916 = vmatprep.subr.mxu0 0.0
  %v3917 = vand.u32 %v205, 4294901760
  %3918 = vmatpush1.msra.mxu0 %v3917
  %3919 = vmatprep.subr.mxu0 0.0
  %v3920 = vand.u32 %v206, 4294901760
  %3921 = vmatpush1.msra.mxu0 %v3920
  %3922 = vmatprep.subr.mxu0 0.0
  %v3923 = vand.u32 %v207, 4294901760
  %3924 = vmatpush1.msra.mxu0 %v3923
  %3925 = vmatprep.subr.mxu0 0.0
  %v3926 = vand.u32 %v208, 4294901760
  %3927 = vmatpush1.msra.mxu0 %v3926
  %3928 = vmatprep.subr.mxu0 0.0
  %v3929 = vand.u32 %v209, 4294901760
  %3930 = vmatpush1.msra.mxu0 %v3929
  %3931 = vmatprep.subr.mxu0 0.0
  %v3932 = vand.u32 %v210, 4294901760
  %3933 = vmatpush1.msra.mxu0 %v3932
  %3934 = vmatprep.subr.mxu0 0.0
  %v3935 = vand.u32 %v211, 4294901760
  %3936 = vmatpush1.msra.mxu0 %v3935
  %3937 = vmatprep.subr.mxu0 0.0
  %v3938 = vand.u32 %v212, 4294901760
  %3939 = vmatpush1.msra.mxu0 %v3938
  %3940 = vmatprep.subr.mxu0 0.0
  %v3941 = vand.u32 %v213, 4294901760
  %3942 = vmatpush1.msra.mxu0 %v3941
  %3943 = vmatprep.subr.mxu0 0.0
  %v3944 = vand.u32 %v214, 4294901760
  %3945 = vmatpush1.msra.mxu0 %v3944
  %3946 = vmatprep.subr.mxu0 0.0
  %v3947 = vand.u32 %v215, 4294901760
  %3948 = vmatpush1.msra.mxu0 %v3947
  %3949 = vmatprep.subr.mxu0 0.0
  %v3950 = vand.u32 %v216, 4294901760
  %3951 = vmatpush1.msra.mxu0 %v3950
  %3952 = vmatprep.subr.mxu0 0.0
  %v3953 = vand.u32 %v217, 4294901760
  %3954 = vmatpush1.msra.mxu0 %v3953
  %3955 = vmatprep.subr.mxu0 0.0
  %v3956 = vand.u32 %v218, 4294901760
  %3957 = vmatpush1.msra.mxu0 %v3956
  %3958 = vmatprep.subr.mxu0 0.0
  %v3959 = vand.u32 %v219, 4294901760
  %3960 = vmatpush1.msra.mxu0 %v3959
  %3961 = vmatprep.subr.mxu0 0.0
  %v3962 = vand.u32 %v220, 4294901760
  %3963 = vmatpush1.msra.mxu0 %v3962
  %3964 = vmatprep.subr.mxu0 0.0
  %v3965 = vand.u32 %v221, 4294901760
  %3966 = vmatpush1.msra.mxu0 %v3965
  %3967 = vmatprep.subr.mxu0 0.0
  %v3968 = vand.u32 %v222, 4294901760
  %3969 = vmatpush1.msra.mxu0 %v3968
  %3970 = vmatprep.subr.mxu0 0.0
  %v3971 = vand.u32 %v223, 4294901760
  %3972 = vmatpush1.msra.mxu0 %v3971
  %v3973 = vand.u32 %v3874, 4294901760
  %v3974 = vsub.f32 %v3874, %v3973
  %v3975 = vand.u32 %v3974, 4294901760
  %v3976 = vsub.f32 %v3974, %v3975
  %v3977 = vand.u32 %v3976, 4294901760
  %3978 = vmatprep.mubr.f32.mxu0 %v3977
  %v3979 = vand.u32 %v3873, 4294901760
  %v3980 = vsub.f32 %v3873, %v3979
  %v3981 = vand.u32 %v3980, 4294901760
  %v3982 = vsub.f32 %v3980, %v3981
  %v3983 = vand.u32 %v3982, 4294901760
  %3984 = vmatmul.mubr.f32.gmra.mrb[0].mxu0 %v3983
  %v3985 = vpop.f32.mrb[0].mxu0
  %v3986 = vadd.f32 0.0, %v3985
  %v3987 = vpop.f32.mrb[0].mxu0
  %3988 = vdwg.mxu0
  %3989 = vmatprep.subr.mxu0 0.0
  %v3990 = vand.u32 %v192, 4294901760
  %v3991 = vsub.f32 %v192, %v3990
  %v3992 = vand.u32 %v3991, 4294901760
  %v3993 = vsub.f32 %v3991, %v3992
  %v3994 = vand.u32 %v3993, 4294901760
  %3995 = vmatpush1.msra.mxu0 %v3994
  %3996 = vmatprep.subr.mxu0 0.0
  %v3997 = vand.u32 %v193, 4294901760
  %v3998 = vsub.f32 %v193, %v3997
  %v3999 = vand.u32 %v3998, 4294901760
  %v4000 = vsub.f32 %v3998, %v3999
  %v4001 = vand.u32 %v4000, 4294901760
  %4002 = vmatpush1.msra.mxu0 %v4001
  %4003 = vmatprep.subr.mxu0 0.0
  %v4004 = vand.u32 %v194, 4294901760
  %v4005 = vsub.f32 %v194, %v4004
  %v4006 = vand.u32 %v4005, 4294901760
  %v4007 = vsub.f32 %v4005, %v4006
  %v4008 = vand.u32 %v4007, 4294901760
  %4009 = vmatpush1.msra.mxu0 %v4008
  %4010 = vmatprep.subr.mxu0 0.0
  %v4011 = vand.u32 %v195, 4294901760
  %v4012 = vsub.f32 %v195, %v4011
  %v4013 = vand.u32 %v4012, 4294901760
  %v4014 = vsub.f32 %v4012, %v4013
  %v4015 = vand.u32 %v4014, 4294901760
  %4016 = vmatpush1.msra.mxu0 %v4015
  %4017 = vmatprep.subr.mxu0 0.0
  %v4018 = vand.u32 %v196, 4294901760
  %v4019 = vsub.f32 %v196, %v4018
  %v4020 = vand.u32 %v4019, 4294901760
  %v4021 = vsub.f32 %v4019, %v4020
  %v4022 = vand.u32 %v4021, 4294901760
  %4023 = vmatpush1.msra.mxu0 %v4022
  %4024 = vmatprep.subr.mxu0 0.0
  %v4025 = vand.u32 %v197, 4294901760
  %v4026 = vsub.f32 %v197, %v4025
  %v4027 = vand.u32 %v4026, 4294901760
  %v4028 = vsub.f32 %v4026, %v4027
  %v4029 = vand.u32 %v4028, 4294901760
  %4030 = vmatpush1.msra.mxu0 %v4029
  %4031 = vmatprep.subr.mxu0 0.0
  %v4032 = vand.u32 %v198, 4294901760
  %v4033 = vsub.f32 %v198, %v4032
  %v4034 = vand.u32 %v4033, 4294901760
  %v4035 = vsub.f32 %v4033, %v4034
  %v4036 = vand.u32 %v4035, 4294901760
  %4037 = vmatpush1.msra.mxu0 %v4036
  %4038 = vmatprep.subr.mxu0 0.0
  %v4039 = vand.u32 %v199, 4294901760
  %v4040 = vsub.f32 %v199, %v4039
  %v4041 = vand.u32 %v4040, 4294901760
  %v4042 = vsub.f32 %v4040, %v4041
  %v4043 = vand.u32 %v4042, 4294901760
  %4044 = vmatpush1.msra.mxu0 %v4043
  %4045 = vmatprep.subr.mxu0 0.0
  %v4046 = vand.u32 %v200, 4294901760
  %v4047 = vsub.f32 %v200, %v4046
  %v4048 = vand.u32 %v4047, 4294901760
  %v4049 = vsub.f32 %v4047, %v4048
  %v4050 = vand.u32 %v4049, 4294901760
  %4051 = vmatpush1.msra.mxu0 %v4050
  %4052 = vmatprep.subr.mxu0 0.0
  %v4053 = vand.u32 %v201, 4294901760
  %v4054 = vsub.f32 %v201, %v4053
  %v4055 = vand.u32 %v4054, 4294901760
  %v4056 = vsub.f32 %v4054, %v4055
  %v4057 = vand.u32 %v4056, 4294901760
  %4058 = vmatpush1.msra.mxu0 %v4057
  %4059 = vmatprep.subr.mxu0 0.0
  %v4060 = vand.u32 %v202, 4294901760
  %v4061 = vsub.f32 %v202, %v4060
  %v4062 = vand.u32 %v4061, 4294901760
  %v4063 = vsub.f32 %v4061, %v4062
  %v4064 = vand.u32 %v4063, 4294901760
  %4065 = vmatpush1.msra.mxu0 %v4064
  %4066 = vmatprep.subr.mxu0 0.0
  %v4067 = vand.u32 %v203, 4294901760
  %v4068 = vsub.f32 %v203, %v4067
  %v4069 = vand.u32 %v4068, 4294901760
  %v4070 = vsub.f32 %v4068, %v4069
  %v4071 = vand.u32 %v4070, 4294901760
  %4072 = vmatpush1.msra.mxu0 %v4071
  %4073 = vmatprep.subr.mxu0 0.0
  %v4074 = vand.u32 %v204, 4294901760
  %v4075 = vsub.f32 %v204, %v4074
  %v4076 = vand.u32 %v4075, 4294901760
  %v4077 = vsub.f32 %v4075, %v4076
  %v4078 = vand.u32 %v4077, 4294901760
  %4079 = vmatpush1.msra.mxu0 %v4078
  %4080 = vmatprep.subr.mxu0 0.0
  %v4081 = vand.u32 %v205, 4294901760
  %v4082 = vsub.f32 %v205, %v4081
  %v4083 = vand.u32 %v4082, 4294901760
  %v4084 = vsub.f32 %v4082, %v4083
  %v4085 = vand.u32 %v4084, 4294901760
  %4086 = vmatpush1.msra.mxu0 %v4085
  %4087 = vmatprep.subr.mxu0 0.0
  %v4088 = vand.u32 %v206, 4294901760
  %v4089 = vsub.f32 %v206, %v4088
  %v4090 = vand.u32 %v4089, 4294901760
  %v4091 = vsub.f32 %v4089, %v4090
  %v4092 = vand.u32 %v4091, 4294901760
  %4093 = vmatpush1.msra.mxu0 %v4092
  %4094 = vmatprep.subr.mxu0 0.0
  %v4095 = vand.u32 %v207, 4294901760
  %v4096 = vsub.f32 %v207, %v4095
  %v4097 = vand.u32 %v4096, 4294901760
  %v4098 = vsub.f32 %v4096, %v4097
  %v4099 = vand.u32 %v4098, 4294901760
  %4100 = vmatpush1.msra.mxu0 %v4099
  %4101 = vmatprep.subr.mxu0 0.0
  %v4102 = vand.u32 %v208, 4294901760
  %v4103 = vsub.f32 %v208, %v4102
  %v4104 = vand.u32 %v4103, 4294901760
  %v4105 = vsub.f32 %v4103, %v4104
  %v4106 = vand.u32 %v4105, 4294901760
  %4107 = vmatpush1.msra.mxu0 %v4106
  %4108 = vmatprep.subr.mxu0 0.0
  %v4109 = vand.u32 %v209, 4294901760
  %v4110 = vsub.f32 %v209, %v4109
  %v4111 = vand.u32 %v4110, 4294901760
  %v4112 = vsub.f32 %v4110, %v4111
  %v4113 = vand.u32 %v4112, 4294901760
  %4114 = vmatpush1.msra.mxu0 %v4113
  %4115 = vmatprep.subr.mxu0 0.0
  %v4116 = vand.u32 %v210, 4294901760
  %v4117 = vsub.f32 %v210, %v4116
  %v4118 = vand.u32 %v4117, 4294901760
  %v4119 = vsub.f32 %v4117, %v4118
  %v4120 = vand.u32 %v4119, 4294901760
  %4121 = vmatpush1.msra.mxu0 %v4120
  %4122 = vmatprep.subr.mxu0 0.0
  %v4123 = vand.u32 %v211, 4294901760
  %v4124 = vsub.f32 %v211, %v4123
  %v4125 = vand.u32 %v4124, 4294901760
  %v4126 = vsub.f32 %v4124, %v4125
  %v4127 = vand.u32 %v4126, 4294901760
  %4128 = vmatpush1.msra.mxu0 %v4127
  %4129 = vmatprep.subr.mxu0 0.0
  %v4130 = vand.u32 %v212, 4294901760
  %v4131 = vsub.f32 %v212, %v4130
  %v4132 = vand.u32 %v4131, 4294901760
  %v4133 = vsub.f32 %v4131, %v4132
  %v4134 = vand.u32 %v4133, 4294901760
  %4135 = vmatpush1.msra.mxu0 %v4134
  %4136 = vmatprep.subr.mxu0 0.0
  %v4137 = vand.u32 %v213, 4294901760
  %v4138 = vsub.f32 %v213, %v4137
  %v4139 = vand.u32 %v4138, 4294901760
  %v4140 = vsub.f32 %v4138, %v4139
  %v4141 = vand.u32 %v4140, 4294901760
  %4142 = vmatpush1.msra.mxu0 %v4141
  %4143 = vmatprep.subr.mxu0 0.0
  %v4144 = vand.u32 %v214, 4294901760
  %v4145 = vsub.f32 %v214, %v4144
  %v4146 = vand.u32 %v4145, 4294901760
  %v4147 = vsub.f32 %v4145, %v4146
  %v4148 = vand.u32 %v4147, 4294901760
  %4149 = vmatpush1.msra.mxu0 %v4148
  %4150 = vmatprep.subr.mxu0 0.0
  %v4151 = vand.u32 %v215, 4294901760
  %v4152 = vsub.f32 %v215, %v4151
  %v4153 = vand.u32 %v4152, 4294901760
  %v4154 = vsub.f32 %v4152, %v4153
  %v4155 = vand.u32 %v4154, 4294901760
  %4156 = vmatpush1.msra.mxu0 %v4155
  %4157 = vmatprep.subr.mxu0 0.0
  %v4158 = vand.u32 %v216, 4294901760
  %v4159 = vsub.f32 %v216, %v4158
  %v4160 = vand.u32 %v4159, 4294901760
  %v4161 = vsub.f32 %v4159, %v4160
  %v4162 = vand.u32 %v4161, 4294901760
  %4163 = vmatpush1.msra.mxu0 %v4162
  %4164 = vmatprep.subr.mxu0 0.0
  %v4165 = vand.u32 %v217, 4294901760
  %v4166 = vsub.f32 %v217, %v4165
  %v4167 = vand.u32 %v4166, 4294901760
  %v4168 = vsub.f32 %v4166, %v4167
  %v4169 = vand.u32 %v4168, 4294901760
  %4170 = vmatpush1.msra.mxu0 %v4169
  %4171 = vmatprep.subr.mxu0 0.0
  %v4172 = vand.u32 %v218, 4294901760
  %v4173 = vsub.f32 %v218, %v4172
  %v4174 = vand.u32 %v4173, 4294901760
  %v4175 = vsub.f32 %v4173, %v4174
  %v4176 = vand.u32 %v4175, 4294901760
  %4177 = vmatpush1.msra.mxu0 %v4176
  %4178 = vmatprep.subr.mxu0 0.0
  %v4179 = vand.u32 %v219, 4294901760
  %v4180 = vsub.f32 %v219, %v4179
  %v4181 = vand.u32 %v4180, 4294901760
  %v4182 = vsub.f32 %v4180, %v4181
  %v4183 = vand.u32 %v4182, 4294901760
  %4184 = vmatpush1.msra.mxu0 %v4183
  %4185 = vmatprep.subr.mxu0 0.0
  %v4186 = vand.u32 %v220, 4294901760
  %v4187 = vsub.f32 %v220, %v4186
  %v4188 = vand.u32 %v4187, 4294901760
  %v4189 = vsub.f32 %v4187, %v4188
  %v4190 = vand.u32 %v4189, 4294901760
  %4191 = vmatpush1.msra.mxu0 %v4190
  %4192 = vmatprep.subr.mxu0 0.0
  %v4193 = vand.u32 %v221, 4294901760
  %v4194 = vsub.f32 %v221, %v4193
  %v4195 = vand.u32 %v4194, 4294901760
  %v4196 = vsub.f32 %v4194, %v4195
  %v4197 = vand.u32 %v4196, 4294901760
  %4198 = vmatpush1.msra.mxu0 %v4197
  %4199 = vmatprep.subr.mxu0 0.0
  %v4200 = vand.u32 %v222, 4294901760
  %v4201 = vsub.f32 %v222, %v4200
  %v4202 = vand.u32 %v4201, 4294901760
  %v4203 = vsub.f32 %v4201, %v4202
  %v4204 = vand.u32 %v4203, 4294901760
  %4205 = vmatpush1.msra.mxu0 %v4204
  %4206 = vmatprep.subr.mxu0 0.0
  %v4207 = vand.u32 %v223, 4294901760
  %v4208 = vsub.f32 %v223, %v4207
  %v4209 = vand.u32 %v4208, 4294901760
  %v4210 = vsub.f32 %v4208, %v4209
  %v4211 = vand.u32 %v4210, 4294901760
  %4212 = vmatpush1.msra.mxu0 %v4211
  %v4213 = vand.u32 %v3874, 4294901760
  %4214 = vmatprep.mubr.f32.mxu0 %v4213
  %v4215 = vand.u32 %v3873, 4294901760
  %4216 = vmatmul.mubr.f32.gmra.mrb[0].mxu0 %v4215
  %v4217 = vpop.f32.mrb[0].mxu0
  %v4218 = vadd.f32 %v3986, %v4217
  %v4219 = vpop.f32.mrb[0].mxu0
  %4220 = vdwg.mxu0
  %4221 = vmatprep.subr.mxu0 0.0
  %v4222 = vand.u32 %v192, 4294901760
  %v4223 = vsub.f32 %v192, %v4222
  %4224 = vmatpush1.msra.mxu0 %v4223
  %4225 = vmatprep.subr.mxu0 0.0
  %v4226 = vand.u32 %v193, 4294901760
  %v4227 = vsub.f32 %v193, %v4226
  %4228 = vmatpush1.msra.mxu0 %v4227
  %4229 = vmatprep.subr.mxu0 0.0
  %v4230 = vand.u32 %v194, 4294901760
  %v4231 = vsub.f32 %v194, %v4230
  %4232 = vmatpush1.msra.mxu0 %v4231
  %4233 = vmatprep.subr.mxu0 0.0
  %v4234 = vand.u32 %v195, 4294901760
  %v4235 = vsub.f32 %v195, %v4234
  %4236 = vmatpush1.msra.mxu0 %v4235
  %4237 = vmatprep.subr.mxu0 0.0
  %v4238 = vand.u32 %v196, 4294901760
  %v4239 = vsub.f32 %v196, %v4238
  %4240 = vmatpush1.msra.mxu0 %v4239
  %4241 = vmatprep.subr.mxu0 0.0
  %v4242 = vand.u32 %v197, 4294901760
  %v4243 = vsub.f32 %v197, %v4242
  %4244 = vmatpush1.msra.mxu0 %v4243
  %4245 = vmatprep.subr.mxu0 0.0
  %v4246 = vand.u32 %v198, 4294901760
  %v4247 = vsub.f32 %v198, %v4246
  %4248 = vmatpush1.msra.mxu0 %v4247
  %4249 = vmatprep.subr.mxu0 0.0
  %v4250 = vand.u32 %v199, 4294901760
  %v4251 = vsub.f32 %v199, %v4250
  %4252 = vmatpush1.msra.mxu0 %v4251
  %4253 = vmatprep.subr.mxu0 0.0
  %v4254 = vand.u32 %v200, 4294901760
  %v4255 = vsub.f32 %v200, %v4254
  %4256 = vmatpush1.msra.mxu0 %v4255
  %4257 = vmatprep.subr.mxu0 0.0
  %v4258 = vand.u32 %v201, 4294901760
  %v4259 = vsub.f32 %v201, %v4258
  %4260 = vmatpush1.msra.mxu0 %v4259
  %4261 = vmatprep.subr.mxu0 0.0
  %v4262 = vand.u32 %v202, 4294901760
  %v4263 = vsub.f32 %v202, %v4262
  %4264 = vmatpush1.msra.mxu0 %v4263
  %4265 = vmatprep.subr.mxu0 0.0
  %v4266 = vand.u32 %v203, 4294901760
  %v4267 = vsub.f32 %v203, %v4266
  %4268 = vmatpush1.msra.mxu0 %v4267
  %4269 = vmatprep.subr.mxu0 0.0
  %v4270 = vand.u32 %v204, 4294901760
  %v4271 = vsub.f32 %v204, %v4270
  %4272 = vmatpush1.msra.mxu0 %v4271
  %4273 = vmatprep.subr.mxu0 0.0
  %v4274 = vand.u32 %v205, 4294901760
  %v4275 = vsub.f32 %v205, %v4274
  %4276 = vmatpush1.msra.mxu0 %v4275
  %4277 = vmatprep.subr.mxu0 0.0
  %v4278 = vand.u32 %v206, 4294901760
  %v4279 = vsub.f32 %v206, %v4278
  %4280 = vmatpush1.msra.mxu0 %v4279
  %4281 = vmatprep.subr.mxu0 0.0
  %v4282 = vand.u32 %v207, 4294901760
  %v4283 = vsub.f32 %v207, %v4282
  %4284 = vmatpush1.msra.mxu0 %v4283
  %4285 = vmatprep.subr.mxu0 0.0
  %v4286 = vand.u32 %v208, 4294901760
  %v4287 = vsub.f32 %v208, %v4286
  %4288 = vmatpush1.msra.mxu0 %v4287
  %4289 = vmatprep.subr.mxu0 0.0
  %v4290 = vand.u32 %v209, 4294901760
  %v4291 = vsub.f32 %v209, %v4290
  %4292 = vmatpush1.msra.mxu0 %v4291
  %4293 = vmatprep.subr.mxu0 0.0
  %v4294 = vand.u32 %v210, 4294901760
  %v4295 = vsub.f32 %v210, %v4294
  %4296 = vmatpush1.msra.mxu0 %v4295
  %4297 = vmatprep.subr.mxu0 0.0
  %v4298 = vand.u32 %v211, 4294901760
  %v4299 = vsub.f32 %v211, %v4298
  %4300 = vmatpush1.msra.mxu0 %v4299
  %4301 = vmatprep.subr.mxu0 0.0
  %v4302 = vand.u32 %v212, 4294901760
  %v4303 = vsub.f32 %v212, %v4302
  %4304 = vmatpush1.msra.mxu0 %v4303
  %4305 = vmatprep.subr.mxu0 0.0
  %v4306 = vand.u32 %v213, 4294901760
  %v4307 = vsub.f32 %v213, %v4306
  %4308 = vmatpush1.msra.mxu0 %v4307
  %4309 = vmatprep.subr.mxu0 0.0
  %v4310 = vand.u32 %v214, 4294901760
  %v4311 = vsub.f32 %v214, %v4310
  %4312 = vmatpush1.msra.mxu0 %v4311
  %4313 = vmatprep.subr.mxu0 0.0
  %v4314 = vand.u32 %v215, 4294901760
  %v4315 = vsub.f32 %v215, %v4314
  %4316 = vmatpush1.msra.mxu0 %v4315
  %4317 = vmatprep.subr.mxu0 0.0
  %v4318 = vand.u32 %v216, 4294901760
  %v4319 = vsub.f32 %v216, %v4318
  %4320 = vmatpush1.msra.mxu0 %v4319
  %4321 = vmatprep.subr.mxu0 0.0
  %v4322 = vand.u32 %v217, 4294901760
  %v4323 = vsub.f32 %v217, %v4322
  %4324 = vmatpush1.msra.mxu0 %v4323
  %4325 = vmatprep.subr.mxu0 0.0
  %v4326 = vand.u32 %v218, 4294901760
  %v4327 = vsub.f32 %v218, %v4326
  %4328 = vmatpush1.msra.mxu0 %v4327
  %4329 = vmatprep.subr.mxu0 0.0
  %v4330 = vand.u32 %v219, 4294901760
  %v4331 = vsub.f32 %v219, %v4330
  %4332 = vmatpush1.msra.mxu0 %v4331
  %4333 = vmatprep.subr.mxu0 0.0
  %v4334 = vand.u32 %v220, 4294901760
  %v4335 = vsub.f32 %v220, %v4334
  %4336 = vmatpush1.msra.mxu0 %v4335
  %4337 = vmatprep.subr.mxu0 0.0
  %v4338 = vand.u32 %v221, 4294901760
  %v4339 = vsub.f32 %v221, %v4338
  %4340 = vmatpush1.msra.mxu0 %v4339
  %4341 = vmatprep.subr.mxu0 0.0
  %v4342 = vand.u32 %v222, 4294901760
  %v4343 = vsub.f32 %v222, %v4342
  %4344 = vmatpush1.msra.mxu0 %v4343
  %4345 = vmatprep.subr.mxu0 0.0
  %v4346 = vand.u32 %v223, 4294901760
  %v4347 = vsub.f32 %v223, %v4346
  %4348 = vmatpush1.msra.mxu0 %v4347
  %v4349 = vand.u32 %v3874, 4294901760
  %v4350 = vsub.f32 %v3874, %v4349
  %4351 = vmatprep.mubr.f32.mxu0 %v4350
  %v4352 = vand.u32 %v3873, 4294901760
  %v4353 = vsub.f32 %v3873, %v4352
  %4354 = vmatmul.mubr.f32.gmra.mrb[0].mxu0 %v4353
  %v4355 = vpop.f32.mrb[0].mxu0
  %v4356 = vadd.f32 %v4218, %v4355
  %v4357 = vpop.f32.mrb[0].mxu0
  %4358 = vdwg.mxu0
  %4359 = vmatprep.subr.mxu0 0.0
  %v4360 = vand.u32 %v192, 4294901760
  %4361 = vmatpush1.msra.mxu0 %v4360
  %4362 = vmatprep.subr.mxu0 0.0
  %v4363 = vand.u32 %v193, 4294901760
  %4364 = vmatpush1.msra.mxu0 %v4363
  %4365 = vmatprep.subr.mxu0 0.0
  %v4366 = vand.u32 %v194, 4294901760
  %4367 = vmatpush1.msra.mxu0 %v4366
  %4368 = vmatprep.subr.mxu0 0.0
  %v4369 = vand.u32 %v195, 4294901760
  %4370 = vmatpush1.msra.mxu0 %v4369
  %4371 = vmatprep.subr.mxu0 0.0
  %v4372 = vand.u32 %v196, 4294901760
  %4373 = vmatpush1.msra.mxu0 %v4372
  %4374 = vmatprep.subr.mxu0 0.0
  %v4375 = vand.u32 %v197, 4294901760
  %4376 = vmatpush1.msra.mxu0 %v4375
  %4377 = vmatprep.subr.mxu0 0.0
  %v4378 = vand.u32 %v198, 4294901760
  %4379 = vmatpush1.msra.mxu0 %v4378
  %4380 = vmatprep.subr.mxu0 0.0
  %v4381 = vand.u32 %v199, 4294901760
  %4382 = vmatpush1.msra.mxu0 %v4381
  %4383 = vmatprep.subr.mxu0 0.0
  %v4384 = vand.u32 %v200, 4294901760
  %4385 = vmatpush1.msra.mxu0 %v4384
  %4386 = vmatprep.subr.mxu0 0.0
  %v4387 = vand.u32 %v201, 4294901760
  %4388 = vmatpush1.msra.mxu0 %v4387
  %4389 = vmatprep.subr.mxu0 0.0
  %v4390 = vand.u32 %v202, 4294901760
  %4391 = vmatpush1.msra.mxu0 %v4390
  %4392 = vmatprep.subr.mxu0 0.0
  %v4393 = vand.u32 %v203, 4294901760
  %4394 = vmatpush1.msra.mxu0 %v4393
  %4395 = vmatprep.subr.mxu0 0.0
  %v4396 = vand.u32 %v204, 4294901760
  %4397 = vmatpush1.msra.mxu0 %v4396
  %4398 = vmatprep.subr.mxu0 0.0
  %v4399 = vand.u32 %v205, 4294901760
  %4400 = vmatpush1.msra.mxu0 %v4399
  %4401 = vmatprep.subr.mxu0 0.0
  %v4402 = vand.u32 %v206, 4294901760
  %4403 = vmatpush1.msra.mxu0 %v4402
  %4404 = vmatprep.subr.mxu0 0.0
  %v4405 = vand.u32 %v207, 4294901760
  %4406 = vmatpush1.msra.mxu0 %v4405
  %4407 = vmatprep.subr.mxu0 0.0
  %v4408 = vand.u32 %v208, 4294901760
  %4409 = vmatpush1.msra.mxu0 %v4408
  %4410 = vmatprep.subr.mxu0 0.0
  %v4411 = vand.u32 %v209, 4294901760
  %4412 = vmatpush1.msra.mxu0 %v4411
  %4413 = vmatprep.subr.mxu0 0.0
  %v4414 = vand.u32 %v210, 4294901760
  %4415 = vmatpush1.msra.mxu0 %v4414
  %4416 = vmatprep.subr.mxu0 0.0
  %v4417 = vand.u32 %v211, 4294901760
  %4418 = vmatpush1.msra.mxu0 %v4417
  %4419 = vmatprep.subr.mxu0 0.0
  %v4420 = vand.u32 %v212, 4294901760
  %4421 = vmatpush1.msra.mxu0 %v4420
  %4422 = vmatprep.subr.mxu0 0.0
  %v4423 = vand.u32 %v213, 4294901760
  %4424 = vmatpush1.msra.mxu0 %v4423
  %4425 = vmatprep.subr.mxu0 0.0
  %v4426 = vand.u32 %v214, 4294901760
  %4427 = vmatpush1.msra.mxu0 %v4426
  %4428 = vmatprep.subr.mxu0 0.0
  %v4429 = vand.u32 %v215, 4294901760
  %4430 = vmatpush1.msra.mxu0 %v4429
  %4431 = vmatprep.subr.mxu0 0.0
  %v4432 = vand.u32 %v216, 4294901760
  %4433 = vmatpush1.msra.mxu0 %v4432
  %4434 = vmatprep.subr.mxu0 0.0
  %v4435 = vand.u32 %v217, 4294901760
  %4436 = vmatpush1.msra.mxu0 %v4435
  %4437 = vmatprep.subr.mxu0 0.0
  %v4438 = vand.u32 %v218, 4294901760
  %4439 = vmatpush1.msra.mxu0 %v4438
  %4440 = vmatprep.subr.mxu0 0.0
  %v4441 = vand.u32 %v219, 4294901760
  %4442 = vmatpush1.msra.mxu0 %v4441
  %4443 = vmatprep.subr.mxu0 0.0
  %v4444 = vand.u32 %v220, 4294901760
  %4445 = vmatpush1.msra.mxu0 %v4444
  %4446 = vmatprep.subr.mxu0 0.0
  %v4447 = vand.u32 %v221, 4294901760
  %4448 = vmatpush1.msra.mxu0 %v4447
  %4449 = vmatprep.subr.mxu0 0.0
  %v4450 = vand.u32 %v222, 4294901760
  %4451 = vmatpush1.msra.mxu0 %v4450
  %4452 = vmatprep.subr.mxu0 0.0
  %v4453 = vand.u32 %v223, 4294901760
  %4454 = vmatpush1.msra.mxu0 %v4453
  %v4455 = vand.u32 %v3874, 4294901760
  %v4456 = vsub.f32 %v3874, %v4455
  %v4457 = vand.u32 %v4456, 4294901760
  %4458 = vmatprep.mubr.f32.mxu0 %v4457
  %v4459 = vand.u32 %v3873, 4294901760
  %v4460 = vsub.f32 %v3873, %v4459
  %v4461 = vand.u32 %v4460, 4294901760
  %4462 = vmatmul.mubr.f32.gmra.mrb[0].mxu0 %v4461
  %v4463 = vpop.f32.mrb[0].mxu0
  %v4464 = vadd.f32 %v4356, %v4463
  %v4465 = vpop.f32.mrb[0].mxu0
  %4466 = vdwg.mxu0
  %4467 = vmatprep.subr.mxu0 0.0
  %v4468 = vand.u32 %v192, 4294901760
  %v4469 = vsub.f32 %v192, %v4468
  %v4470 = vand.u32 %v4469, 4294901760
  %4471 = vmatpush1.msra.mxu0 %v4470
  %4472 = vmatprep.subr.mxu0 0.0
  %v4473 = vand.u32 %v193, 4294901760
  %v4474 = vsub.f32 %v193, %v4473
  %v4475 = vand.u32 %v4474, 4294901760
  %4476 = vmatpush1.msra.mxu0 %v4475
  %4477 = vmatprep.subr.mxu0 0.0
  %v4478 = vand.u32 %v194, 4294901760
  %v4479 = vsub.f32 %v194, %v4478
  %v4480 = vand.u32 %v4479, 4294901760
  %4481 = vmatpush1.msra.mxu0 %v4480
  %4482 = vmatprep.subr.mxu0 0.0
  %v4483 = vand.u32 %v195, 4294901760
  %v4484 = vsub.f32 %v195, %v4483
  %v4485 = vand.u32 %v4484, 4294901760
  %4486 = vmatpush1.msra.mxu0 %v4485
  %4487 = vmatprep.subr.mxu0 0.0
  %v4488 = vand.u32 %v196, 4294901760
  %v4489 = vsub.f32 %v196, %v4488
  %v4490 = vand.u32 %v4489, 4294901760
  %4491 = vmatpush1.msra.mxu0 %v4490
  %4492 = vmatprep.subr.mxu0 0.0
  %v4493 = vand.u32 %v197, 4294901760
  %v4494 = vsub.f32 %v197, %v4493
  %v4495 = vand.u32 %v4494, 4294901760
  %4496 = vmatpush1.msra.mxu0 %v4495
  %4497 = vmatprep.subr.mxu0 0.0
  %v4498 = vand.u32 %v198, 4294901760
  %v4499 = vsub.f32 %v198, %v4498
  %v4500 = vand.u32 %v4499, 4294901760
  %4501 = vmatpush1.msra.mxu0 %v4500
  %4502 = vmatprep.subr.mxu0 0.0
  %v4503 = vand.u32 %v199, 4294901760
  %v4504 = vsub.f32 %v199, %v4503
  %v4505 = vand.u32 %v4504, 4294901760
  %4506 = vmatpush1.msra.mxu0 %v4505
  %4507 = vmatprep.subr.mxu0 0.0
  %v4508 = vand.u32 %v200, 4294901760
  %v4509 = vsub.f32 %v200, %v4508
  %v4510 = vand.u32 %v4509, 4294901760
  %4511 = vmatpush1.msra.mxu0 %v4510
  %4512 = vmatprep.subr.mxu0 0.0
  %v4513 = vand.u32 %v201, 4294901760
  %v4514 = vsub.f32 %v201, %v4513
  %v4515 = vand.u32 %v4514, 4294901760
  %4516 = vmatpush1.msra.mxu0 %v4515
  %4517 = vmatprep.subr.mxu0 0.0
  %v4518 = vand.u32 %v202, 4294901760
  %v4519 = vsub.f32 %v202, %v4518
  %v4520 = vand.u32 %v4519, 4294901760
  %4521 = vmatpush1.msra.mxu0 %v4520
  %4522 = vmatprep.subr.mxu0 0.0
  %v4523 = vand.u32 %v203, 4294901760
  %v4524 = vsub.f32 %v203, %v4523
  %v4525 = vand.u32 %v4524, 4294901760
  %4526 = vmatpush1.msra.mxu0 %v4525
  %4527 = vmatprep.subr.mxu0 0.0
  %v4528 = vand.u32 %v204, 4294901760
  %v4529 = vsub.f32 %v204, %v4528
  %v4530 = vand.u32 %v4529, 4294901760
  %4531 = vmatpush1.msra.mxu0 %v4530
  %4532 = vmatprep.subr.mxu0 0.0
  %v4533 = vand.u32 %v205, 4294901760
  %v4534 = vsub.f32 %v205, %v4533
  %v4535 = vand.u32 %v4534, 4294901760
  %4536 = vmatpush1.msra.mxu0 %v4535
  %4537 = vmatprep.subr.mxu0 0.0
  %v4538 = vand.u32 %v206, 4294901760
  %v4539 = vsub.f32 %v206, %v4538
  %v4540 = vand.u32 %v4539, 4294901760
  %4541 = vmatpush1.msra.mxu0 %v4540
  %4542 = vmatprep.subr.mxu0 0.0
  %v4543 = vand.u32 %v207, 4294901760
  %v4544 = vsub.f32 %v207, %v4543
  %v4545 = vand.u32 %v4544, 4294901760
  %4546 = vmatpush1.msra.mxu0 %v4545
  %4547 = vmatprep.subr.mxu0 0.0
  %v4548 = vand.u32 %v208, 4294901760
  %v4549 = vsub.f32 %v208, %v4548
  %v4550 = vand.u32 %v4549, 4294901760
  %4551 = vmatpush1.msra.mxu0 %v4550
  %4552 = vmatprep.subr.mxu0 0.0
  %v4553 = vand.u32 %v209, 4294901760
  %v4554 = vsub.f32 %v209, %v4553
  %v4555 = vand.u32 %v4554, 4294901760
  %4556 = vmatpush1.msra.mxu0 %v4555
  %4557 = vmatprep.subr.mxu0 0.0
  %v4558 = vand.u32 %v210, 4294901760
  %v4559 = vsub.f32 %v210, %v4558
  %v4560 = vand.u32 %v4559, 4294901760
  %4561 = vmatpush1.msra.mxu0 %v4560
  %4562 = vmatprep.subr.mxu0 0.0
  %v4563 = vand.u32 %v211, 4294901760
  %v4564 = vsub.f32 %v211, %v4563
  %v4565 = vand.u32 %v4564, 4294901760
  %4566 = vmatpush1.msra.mxu0 %v4565
  %4567 = vmatprep.subr.mxu0 0.0
  %v4568 = vand.u32 %v212, 4294901760
  %v4569 = vsub.f32 %v212, %v4568
  %v4570 = vand.u32 %v4569, 4294901760
  %4571 = vmatpush1.msra.mxu0 %v4570
  %4572 = vmatprep.subr.mxu0 0.0
  %v4573 = vand.u32 %v213, 4294901760
  %v4574 = vsub.f32 %v213, %v4573
  %v4575 = vand.u32 %v4574, 4294901760
  %4576 = vmatpush1.msra.mxu0 %v4575
  %4577 = vmatprep.subr.mxu0 0.0
  %v4578 = vand.u32 %v214, 4294901760
  %v4579 = vsub.f32 %v214, %v4578
  %v4580 = vand.u32 %v4579, 4294901760
  %4581 = vmatpush1.msra.mxu0 %v4580
  %4582 = vmatprep.subr.mxu0 0.0
  %v4583 = vand.u32 %v215, 4294901760
  %v4584 = vsub.f32 %v215, %v4583
  %v4585 = vand.u32 %v4584, 4294901760
  %4586 = vmatpush1.msra.mxu0 %v4585
  %4587 = vmatprep.subr.mxu0 0.0
  %v4588 = vand.u32 %v216, 4294901760
  %v4589 = vsub.f32 %v216, %v4588
  %v4590 = vand.u32 %v4589, 4294901760
  %4591 = vmatpush1.msra.mxu0 %v4590
  %4592 = vmatprep.subr.mxu0 0.0
  %v4593 = vand.u32 %v217, 4294901760
  %v4594 = vsub.f32 %v217, %v4593
  %v4595 = vand.u32 %v4594, 4294901760
  %4596 = vmatpush1.msra.mxu0 %v4595
  %4597 = vmatprep.subr.mxu0 0.0
  %v4598 = vand.u32 %v218, 4294901760
  %v4599 = vsub.f32 %v218, %v4598
  %v4600 = vand.u32 %v4599, 4294901760
  %4601 = vmatpush1.msra.mxu0 %v4600
  %4602 = vmatprep.subr.mxu0 0.0
  %v4603 = vand.u32 %v219, 4294901760
  %v4604 = vsub.f32 %v219, %v4603
  %v4605 = vand.u32 %v4604, 4294901760
  %4606 = vmatpush1.msra.mxu0 %v4605
  %4607 = vmatprep.subr.mxu0 0.0
  %v4608 = vand.u32 %v220, 4294901760
  %v4609 = vsub.f32 %v220, %v4608
  %v4610 = vand.u32 %v4609, 4294901760
  %4611 = vmatpush1.msra.mxu0 %v4610
  %4612 = vmatprep.subr.mxu0 0.0
  %v4613 = vand.u32 %v221, 4294901760
  %v4614 = vsub.f32 %v221, %v4613
  %v4615 = vand.u32 %v4614, 4294901760
  %4616 = vmatpush1.msra.mxu0 %v4615
  %4617 = vmatprep.subr.mxu0 0.0
  %v4618 = vand.u32 %v222, 4294901760
  %v4619 = vsub.f32 %v222, %v4618
  %v4620 = vand.u32 %v4619, 4294901760
  %4621 = vmatpush1.msra.mxu0 %v4620
  %4622 = vmatprep.subr.mxu0 0.0
  %v4623 = vand.u32 %v223, 4294901760
  %v4624 = vsub.f32 %v223, %v4623
  %v4625 = vand.u32 %v4624, 4294901760
  %4626 = vmatpush1.msra.mxu0 %v4625
  %v4627 = vand.u32 %v3874, 4294901760
  %4628 = vmatprep.mubr.f32.mxu0 %v4627
  %v4629 = vand.u32 %v3873, 4294901760
  %4630 = vmatmul.mubr.f32.gmra.mrb[0].mxu0 %v4629
  %v4631 = vpop.f32.mrb[0].mxu0
  %v4632 = vadd.f32 %v4464, %v4631
  %v4633 = vpop.f32.mrb[0].mxu0
  %4634 = vdwg.mxu0
  %4635 = vmatprep.subr.mxu0 0.0
  %v4636 = vand.u32 %v192, 4294901760
  %4637 = vmatpush1.msra.mxu0 %v4636
  %4638 = vmatprep.subr.mxu0 0.0
  %v4639 = vand.u32 %v193, 4294901760
  %4640 = vmatpush1.msra.mxu0 %v4639
  %4641 = vmatprep.subr.mxu0 0.0
  %v4642 = vand.u32 %v194, 4294901760
  %4643 = vmatpush1.msra.mxu0 %v4642
  %4644 = vmatprep.subr.mxu0 0.0
  %v4645 = vand.u32 %v195, 4294901760
  %4646 = vmatpush1.msra.mxu0 %v4645
  %4647 = vmatprep.subr.mxu0 0.0
  %v4648 = vand.u32 %v196, 4294901760
  %4649 = vmatpush1.msra.mxu0 %v4648
  %4650 = vmatprep.subr.mxu0 0.0
  %v4651 = vand.u32 %v197, 4294901760
  %4652 = vmatpush1.msra.mxu0 %v4651
  %4653 = vmatprep.subr.mxu0 0.0
  %v4654 = vand.u32 %v198, 4294901760
  %4655 = vmatpush1.msra.mxu0 %v4654
  %4656 = vmatprep.subr.mxu0 0.0
  %v4657 = vand.u32 %v199, 4294901760
  %4658 = vmatpush1.msra.mxu0 %v4657
  %4659 = vmatprep.subr.mxu0 0.0
  %v4660 = vand.u32 %v200, 4294901760
  %4661 = vmatpush1.msra.mxu0 %v4660
  %4662 = vmatprep.subr.mxu0 0.0
  %v4663 = vand.u32 %v201, 4294901760
  %4664 = vmatpush1.msra.mxu0 %v4663
  %4665 = vmatprep.subr.mxu0 0.0
  %v4666 = vand.u32 %v202, 4294901760
  %4667 = vmatpush1.msra.mxu0 %v4666
  %4668 = vmatprep.subr.mxu0 0.0
  %v4669 = vand.u32 %v203, 4294901760
  %4670 = vmatpush1.msra.mxu0 %v4669
  %4671 = vmatprep.subr.mxu0 0.0
  %v4672 = vand.u32 %v204, 4294901760
  %4673 = vmatpush1.msra.mxu0 %v4672
  %4674 = vmatprep.subr.mxu0 0.0
  %v4675 = vand.u32 %v205, 4294901760
  %4676 = vmatpush1.msra.mxu0 %v4675
  %4677 = vmatprep.subr.mxu0 0.0
  %v4678 = vand.u32 %v206, 4294901760
  %4679 = vmatpush1.msra.mxu0 %v4678
  %4680 = vmatprep.subr.mxu0 0.0
  %v4681 = vand.u32 %v207, 4294901760
  %4682 = vmatpush1.msra.mxu0 %v4681
  %4683 = vmatprep.subr.mxu0 0.0
  %v4684 = vand.u32 %v208, 4294901760
  %4685 = vmatpush1.msra.mxu0 %v4684
  %4686 = vmatprep.subr.mxu0 0.0
  %v4687 = vand.u32 %v209, 4294901760
  %4688 = vmatpush1.msra.mxu0 %v4687
  %4689 = vmatprep.subr.mxu0 0.0
  %v4690 = vand.u32 %v210, 4294901760
  %4691 = vmatpush1.msra.mxu0 %v4690
  %4692 = vmatprep.subr.mxu0 0.0
  %v4693 = vand.u32 %v211, 4294901760
  %4694 = vmatpush1.msra.mxu0 %v4693
  %4695 = vmatprep.subr.mxu0 0.0
  %v4696 = vand.u32 %v212, 4294901760
  %4697 = vmatpush1.msra.mxu0 %v4696
  %4698 = vmatprep.subr.mxu0 0.0
  %v4699 = vand.u32 %v213, 4294901760
  %4700 = vmatpush1.msra.mxu0 %v4699
  %4701 = vmatprep.subr.mxu0 0.0
  %v4702 = vand.u32 %v214, 4294901760
  %4703 = vmatpush1.msra.mxu0 %v4702
  %4704 = vmatprep.subr.mxu0 0.0
  %v4705 = vand.u32 %v215, 4294901760
  %4706 = vmatpush1.msra.mxu0 %v4705
  %4707 = vmatprep.subr.mxu0 0.0
  %v4708 = vand.u32 %v216, 4294901760
  %4709 = vmatpush1.msra.mxu0 %v4708
  %4710 = vmatprep.subr.mxu0 0.0
  %v4711 = vand.u32 %v217, 4294901760
  %4712 = vmatpush1.msra.mxu0 %v4711
  %4713 = vmatprep.subr.mxu0 0.0
  %v4714 = vand.u32 %v218, 4294901760
  %4715 = vmatpush1.msra.mxu0 %v4714
  %4716 = vmatprep.subr.mxu0 0.0
  %v4717 = vand.u32 %v219, 4294901760
  %4718 = vmatpush1.msra.mxu0 %v4717
  %4719 = vmatprep.subr.mxu0 0.0
  %v4720 = vand.u32 %v220, 4294901760
  %4721 = vmatpush1.msra.mxu0 %v4720
  %4722 = vmatprep.subr.mxu0 0.0
  %v4723 = vand.u32 %v221, 4294901760
  %4724 = vmatpush1.msra.mxu0 %v4723
  %4725 = vmatprep.subr.mxu0 0.0
  %v4726 = vand.u32 %v222, 4294901760
  %4727 = vmatpush1.msra.mxu0 %v4726
  %4728 = vmatprep.subr.mxu0 0.0
  %v4729 = vand.u32 %v223, 4294901760
  %4730 = vmatpush1.msra.mxu0 %v4729
  %v4731 = vand.u32 %v3874, 4294901760
  %4732 = vmatprep.mubr.f32.mxu0 %v4731
  %v4733 = vand.u32 %v3873, 4294901760
  %4734 = vmatmul.mubr.f32.gmra.mrb[0].mxu0 %v4733
  %v4735 = vpop.f32.mrb[0].mxu0
  %v4736 = vadd.f32 %v4632, %v4735
  %v4737 = vpop.f32.mrb[0].mxu0
  %4738 = vdwg.mxu0
  %v4739 = vmul.f32 %v3862, 0.03125
  %v4740 = vmul.f32 %v4736, 0.03125
  %v4741 = vmul.f32 %v4739, %v4739
  %v4742 = vsub.f32 %v4740, %v4741
  %v4743 = vadd.f32 %v4742, 1e-05
  %v4744 = vrsqrt.pop %v4743
  %v4746 = vsel %vm1990, %v4744, 0
  %v4748 = vand.u32 %v236, 4294901760
  %4749 = vmatprep.subr.mxu0 %v4748
  %v4750 = vand.u32 %v235, 4294901760
  %4751 = vmatpush1.msra.mxu0 %v4750
  %4752 = vmatprep.subr.mxu0 0.0
  %4753 = vmatpush1.msra.mxu0 0.0
  %4754 = vmatprep.subr.mxu0 0.0
  %4755 = vmatpush1.msra.mxu0 0.0
  %4756 = vmatprep.subr.mxu0 0.0
  %4757 = vmatpush1.msra.mxu0 0.0
  %4758 = vmatprep.subr.mxu0 0.0
  %4759 = vmatpush1.msra.mxu0 0.0
  %4760 = vmatprep.subr.mxu0 0.0
  %4761 = vmatpush1.msra.mxu0 0.0
  %4762 = vmatprep.subr.mxu0 0.0
  %4763 = vmatpush1.msra.mxu0 0.0
  %4764 = vmatprep.subr.mxu0 0.0
  %4765 = vmatpush1.msra.mxu0 0.0
  %4766 = vmatprep.subr.mxu0 0.0
  %4767 = vmatpush1.msra.mxu0 0.0
  %4768 = vmatprep.subr.mxu0 0.0
  %4769 = vmatpush1.msra.mxu0 0.0
  %4770 = vmatprep.subr.mxu0 0.0
  %4771 = vmatpush1.msra.mxu0 0.0
  %4772 = vmatprep.subr.mxu0 0.0
  %4773 = vmatpush1.msra.mxu0 0.0
  %4774 = vmatprep.subr.mxu0 0.0
  %4775 = vmatpush1.msra.mxu0 0.0
  %4776 = vmatprep.subr.mxu0 0.0
  %4777 = vmatpush1.msra.mxu0 0.0
  %4778 = vmatprep.subr.mxu0 0.0
  %4779 = vmatpush1.msra.mxu0 0.0
  %4780 = vmatprep.subr.mxu0 0.0
  %4781 = vmatpush1.msra.mxu0 0.0
  %4782 = vmatprep.subr.mxu0 0.0
  %4783 = vmatpush1.msra.mxu0 0.0
  %4784 = vmatprep.subr.mxu0 0.0
  %4785 = vmatpush1.msra.mxu0 0.0
  %4786 = vmatprep.subr.mxu0 0.0
  %4787 = vmatpush1.msra.mxu0 0.0
  %4788 = vmatprep.subr.mxu0 0.0
  %4789 = vmatpush1.msra.mxu0 0.0
  %4790 = vmatprep.subr.mxu0 0.0
  %4791 = vmatpush1.msra.mxu0 0.0
  %4792 = vmatprep.subr.mxu0 0.0
  %4793 = vmatpush1.msra.mxu0 0.0
  %4794 = vmatprep.subr.mxu0 0.0
  %4795 = vmatpush1.msra.mxu0 0.0
  %4796 = vmatprep.subr.mxu0 0.0
  %4797 = vmatpush1.msra.mxu0 0.0
  %4798 = vmatprep.subr.mxu0 0.0
  %4799 = vmatpush1.msra.mxu0 0.0
  %4800 = vmatprep.subr.mxu0 0.0
  %4801 = vmatpush1.msra.mxu0 0.0
  %4802 = vmatprep.subr.mxu0 0.0
  %4803 = vmatpush1.msra.mxu0 0.0
  %4804 = vmatprep.subr.mxu0 0.0
  %4805 = vmatpush1.msra.mxu0 0.0
  %4806 = vmatprep.subr.mxu0 0.0
  %4807 = vmatpush1.msra.mxu0 0.0
  %4808 = vmatprep.subr.mxu0 0.0
  %4809 = vmatpush1.msra.mxu0 0.0
  %4810 = vmatprep.subr.mxu0 0.0
  %4811 = vmatpush1.msra.mxu0 0.0
  %4812 = vmatprep.subr.mxu0 0.0
  %4813 = vmatpush1.msra.mxu0 0.0
  %4814 = vmatprep.mubr.f32.mxu0 0.0
  %v4815 = vand.u32 %v4746, 4294901760
  %v4816 = vsub.f32 %v4746, %v4815
  %v4817 = vand.u32 %v4816, 4294901760
  %v4818 = vsub.f32 %v4816, %v4817
  %v4819 = vand.u32 %v4818, 4294901760
  %4820 = vmatmul.mubr.f32.gmra.mrb[0].mxu0 %v4819
  %v4821 = vpop.f32.mrb[0].mxu0
  %v4822 = vadd.f32 0.0, %v4821
  %v4823 = vpop.f32.mrb[0].mxu0
  %v4824 = vadd.f32 0.0, %v4823
  %4825 = vdwg.mxu0
  %v4826 = vand.u32 %v236, 4294901760
  %v4827 = vsub.f32 %v236, %v4826
  %v4828 = vand.u32 %v4827, 4294901760
  %v4829 = vsub.f32 %v4827, %v4828
  %v4830 = vand.u32 %v4829, 4294901760
  %4831 = vmatprep.subr.mxu0 %v4830
  %v4832 = vand.u32 %v235, 4294901760
  %v4833 = vsub.f32 %v235, %v4832
  %v4834 = vand.u32 %v4833, 4294901760
  %v4835 = vsub.f32 %v4833, %v4834
  %v4836 = vand.u32 %v4835, 4294901760
  %4837 = vmatpush1.msra.mxu0 %v4836
  %4838 = vmatprep.subr.mxu0 0.0
  %4839 = vmatpush1.msra.mxu0 0.0
  %4840 = vmatprep.subr.mxu0 0.0
  %4841 = vmatpush1.msra.mxu0 0.0
  %4842 = vmatprep.subr.mxu0 0.0
  %4843 = vmatpush1.msra.mxu0 0.0
  %4844 = vmatprep.subr.mxu0 0.0
  %4845 = vmatpush1.msra.mxu0 0.0
  %4846 = vmatprep.subr.mxu0 0.0
  %4847 = vmatpush1.msra.mxu0 0.0
  %4848 = vmatprep.subr.mxu0 0.0
  %4849 = vmatpush1.msra.mxu0 0.0
  %4850 = vmatprep.subr.mxu0 0.0
  %4851 = vmatpush1.msra.mxu0 0.0
  %4852 = vmatprep.subr.mxu0 0.0
  %4853 = vmatpush1.msra.mxu0 0.0
  %4854 = vmatprep.subr.mxu0 0.0
  %4855 = vmatpush1.msra.mxu0 0.0
  %4856 = vmatprep.subr.mxu0 0.0
  %4857 = vmatpush1.msra.mxu0 0.0
  %4858 = vmatprep.subr.mxu0 0.0
  %4859 = vmatpush1.msra.mxu0 0.0
  %4860 = vmatprep.subr.mxu0 0.0
  %4861 = vmatpush1.msra.mxu0 0.0
  %4862 = vmatprep.subr.mxu0 0.0
  %4863 = vmatpush1.msra.mxu0 0.0
  %4864 = vmatprep.subr.mxu0 0.0
  %4865 = vmatpush1.msra.mxu0 0.0
  %4866 = vmatprep.subr.mxu0 0.0
  %4867 = vmatpush1.msra.mxu0 0.0
  %4868 = vmatprep.subr.mxu0 0.0
  %4869 = vmatpush1.msra.mxu0 0.0
  %4870 = vmatprep.subr.mxu0 0.0
  %4871 = vmatpush1.msra.mxu0 0.0
  %4872 = vmatprep.subr.mxu0 0.0
  %4873 = vmatpush1.msra.mxu0 0.0
  %4874 = vmatprep.subr.mxu0 0.0
  %4875 = vmatpush1.msra.mxu0 0.0
  %4876 = vmatprep.subr.mxu0 0.0
  %4877 = vmatpush1.msra.mxu0 0.0
  %4878 = vmatprep.subr.mxu0 0.0
  %4879 = vmatpush1.msra.mxu0 0.0
  %4880 = vmatprep.subr.mxu0 0.0
  %4881 = vmatpush1.msra.mxu0 0.0
  %4882 = vmatprep.subr.mxu0 0.0
  %4883 = vmatpush1.msra.mxu0 0.0
  %4884 = vmatprep.subr.mxu0 0.0
  %4885 = vmatpush1.msra.mxu0 0.0
  %4886 = vmatprep.subr.mxu0 0.0
  %4887 = vmatpush1.msra.mxu0 0.0
  %4888 = vmatprep.subr.mxu0 0.0
  %4889 = vmatpush1.msra.mxu0 0.0
  %4890 = vmatprep.subr.mxu0 0.0
  %4891 = vmatpush1.msra.mxu0 0.0
  %4892 = vmatprep.subr.mxu0 0.0
  %4893 = vmatpush1.msra.mxu0 0.0
  %4894 = vmatprep.subr.mxu0 0.0
  %4895 = vmatpush1.msra.mxu0 0.0
  %4896 = vmatprep.subr.mxu0 0.0
  %4897 = vmatpush1.msra.mxu0 0.0
  %4898 = vmatprep.subr.mxu0 0.0
  %4899 = vmatpush1.msra.mxu0 0.0
  %4900 = vmatprep.mubr.f32.mxu0 0.0
  %v4901 = vand.u32 %v4746, 4294901760
  %4902 = vmatmul.mubr.f32.gmra.mrb[0].mxu0 %v4901
  %v4903 = vpop.f32.mrb[0].mxu0
  %v4904 = vadd.f32 %v4822, %v4903
  %v4905 = vpop.f32.mrb[0].mxu0
  %v4906 = vadd.f32 %v4824, %v4905
  %4907 = vdwg.mxu0
  %v4908 = vand.u32 %v236, 4294901760
  %v4909 = vsub.f32 %v236, %v4908
  %4910 = vmatprep.subr.mxu0 %v4909
  %v4911 = vand.u32 %v235, 4294901760
  %v4912 = vsub.f32 %v235, %v4911
  %4913 = vmatpush1.msra.mxu0 %v4912
  %4914 = vmatprep.subr.mxu0 0.0
  %4915 = vmatpush1.msra.mxu0 0.0
  %4916 = vmatprep.subr.mxu0 0.0
  %4917 = vmatpush1.msra.mxu0 0.0
  %4918 = vmatprep.subr.mxu0 0.0
  %4919 = vmatpush1.msra.mxu0 0.0
  %4920 = vmatprep.subr.mxu0 0.0
  %4921 = vmatpush1.msra.mxu0 0.0
  %4922 = vmatprep.subr.mxu0 0.0
  %4923 = vmatpush1.msra.mxu0 0.0
  %4924 = vmatprep.subr.mxu0 0.0
  %4925 = vmatpush1.msra.mxu0 0.0
  %4926 = vmatprep.subr.mxu0 0.0
  %4927 = vmatpush1.msra.mxu0 0.0
  %4928 = vmatprep.subr.mxu0 0.0
  %4929 = vmatpush1.msra.mxu0 0.0
  %4930 = vmatprep.subr.mxu0 0.0
  %4931 = vmatpush1.msra.mxu0 0.0
  %4932 = vmatprep.subr.mxu0 0.0
  %4933 = vmatpush1.msra.mxu0 0.0
  %4934 = vmatprep.subr.mxu0 0.0
  %4935 = vmatpush1.msra.mxu0 0.0
  %4936 = vmatprep.subr.mxu0 0.0
  %4937 = vmatpush1.msra.mxu0 0.0
  %4938 = vmatprep.subr.mxu0 0.0
  %4939 = vmatpush1.msra.mxu0 0.0
  %4940 = vmatprep.subr.mxu0 0.0
  %4941 = vmatpush1.msra.mxu0 0.0
  %4942 = vmatprep.subr.mxu0 0.0
  %4943 = vmatpush1.msra.mxu0 0.0
  %4944 = vmatprep.subr.mxu0 0.0
  %4945 = vmatpush1.msra.mxu0 0.0
  %4946 = vmatprep.subr.mxu0 0.0
  %4947 = vmatpush1.msra.mxu0 0.0
  %4948 = vmatprep.subr.mxu0 0.0
  %4949 = vmatpush1.msra.mxu0 0.0
  %4950 = vmatprep.subr.mxu0 0.0
  %4951 = vmatpush1.msra.mxu0 0.0
  %4952 = vmatprep.subr.mxu0 0.0
  %4953 = vmatpush1.msra.mxu0 0.0
  %4954 = vmatprep.subr.mxu0 0.0
  %4955 = vmatpush1.msra.mxu0 0.0
  %4956 = vmatprep.subr.mxu0 0.0
  %4957 = vmatpush1.msra.mxu0 0.0
  %4958 = vmatprep.subr.mxu0 0.0
  %4959 = vmatpush1.msra.mxu0 0.0
  %4960 = vmatprep.subr.mxu0 0.0
  %4961 = vmatpush1.msra.mxu0 0.0
  %4962 = vmatprep.subr.mxu0 0.0
  %4963 = vmatpush1.msra.mxu0 0.0
  %4964 = vmatprep.subr.mxu0 0.0
  %4965 = vmatpush1.msra.mxu0 0.0
  %4966 = vmatprep.subr.mxu0 0.0
  %4967 = vmatpush1.msra.mxu0 0.0
  %4968 = vmatprep.subr.mxu0 0.0
  %4969 = vmatpush1.msra.mxu0 0.0
  %4970 = vmatprep.subr.mxu0 0.0
  %4971 = vmatpush1.msra.mxu0 0.0
  %4972 = vmatprep.subr.mxu0 0.0
  %4973 = vmatpush1.msra.mxu0 0.0
  %4974 = vmatprep.subr.mxu0 0.0
  %4975 = vmatpush1.msra.mxu0 0.0
  %4976 = vmatprep.mubr.f32.mxu0 0.0
  %v4977 = vand.u32 %v4746, 4294901760
  %v4978 = vsub.f32 %v4746, %v4977
  %4979 = vmatmul.mubr.f32.gmra.mrb[0].mxu0 %v4978
  %v4980 = vpop.f32.mrb[0].mxu0
  %v4981 = vadd.f32 %v4904, %v4980
  %v4982 = vpop.f32.mrb[0].mxu0
  %v4983 = vadd.f32 %v4906, %v4982
  %4984 = vdwg.mxu0
  %v4985 = vand.u32 %v236, 4294901760
  %4986 = vmatprep.subr.mxu0 %v4985
  %v4987 = vand.u32 %v235, 4294901760
  %4988 = vmatpush1.msra.mxu0 %v4987
  %4989 = vmatprep.subr.mxu0 0.0
  %4990 = vmatpush1.msra.mxu0 0.0
  %4991 = vmatprep.subr.mxu0 0.0
  %4992 = vmatpush1.msra.mxu0 0.0
  %4993 = vmatprep.subr.mxu0 0.0
  %4994 = vmatpush1.msra.mxu0 0.0
  %4995 = vmatprep.subr.mxu0 0.0
  %4996 = vmatpush1.msra.mxu0 0.0
  %4997 = vmatprep.subr.mxu0 0.0
  %4998 = vmatpush1.msra.mxu0 0.0
  %4999 = vmatprep.subr.mxu0 0.0
  %5000 = vmatpush1.msra.mxu0 0.0
  %5001 = vmatprep.subr.mxu0 0.0
  %5002 = vmatpush1.msra.mxu0 0.0
  %5003 = vmatprep.subr.mxu0 0.0
  %5004 = vmatpush1.msra.mxu0 0.0
  %5005 = vmatprep.subr.mxu0 0.0
  %5006 = vmatpush1.msra.mxu0 0.0
  %5007 = vmatprep.subr.mxu0 0.0
  %5008 = vmatpush1.msra.mxu0 0.0
  %5009 = vmatprep.subr.mxu0 0.0
  %5010 = vmatpush1.msra.mxu0 0.0
  %5011 = vmatprep.subr.mxu0 0.0
  %5012 = vmatpush1.msra.mxu0 0.0
  %5013 = vmatprep.subr.mxu0 0.0
  %5014 = vmatpush1.msra.mxu0 0.0
  %5015 = vmatprep.subr.mxu0 0.0
  %5016 = vmatpush1.msra.mxu0 0.0
  %5017 = vmatprep.subr.mxu0 0.0
  %5018 = vmatpush1.msra.mxu0 0.0
  %5019 = vmatprep.subr.mxu0 0.0
  %5020 = vmatpush1.msra.mxu0 0.0
  %5021 = vmatprep.subr.mxu0 0.0
  %5022 = vmatpush1.msra.mxu0 0.0
  %5023 = vmatprep.subr.mxu0 0.0
  %5024 = vmatpush1.msra.mxu0 0.0
  %5025 = vmatprep.subr.mxu0 0.0
  %5026 = vmatpush1.msra.mxu0 0.0
  %5027 = vmatprep.subr.mxu0 0.0
  %5028 = vmatpush1.msra.mxu0 0.0
  %5029 = vmatprep.subr.mxu0 0.0
  %5030 = vmatpush1.msra.mxu0 0.0
  %5031 = vmatprep.subr.mxu0 0.0
  %5032 = vmatpush1.msra.mxu0 0.0
  %5033 = vmatprep.subr.mxu0 0.0
  %5034 = vmatpush1.msra.mxu0 0.0
  %5035 = vmatprep.subr.mxu0 0.0
  %5036 = vmatpush1.msra.mxu0 0.0
  %5037 = vmatprep.subr.mxu0 0.0
  %5038 = vmatpush1.msra.mxu0 0.0
  %5039 = vmatprep.subr.mxu0 0.0
  %5040 = vmatpush1.msra.mxu0 0.0
  %5041 = vmatprep.subr.mxu0 0.0
  %5042 = vmatpush1.msra.mxu0 0.0
  %5043 = vmatprep.subr.mxu0 0.0
  %5044 = vmatpush1.msra.mxu0 0.0
  %5045 = vmatprep.subr.mxu0 0.0
  %5046 = vmatpush1.msra.mxu0 0.0
  %5047 = vmatprep.subr.mxu0 0.0
  %5048 = vmatpush1.msra.mxu0 0.0
  %5049 = vmatprep.subr.mxu0 0.0
  %5050 = vmatpush1.msra.mxu0 0.0
  %5051 = vmatprep.mubr.f32.mxu0 0.0
  %v5052 = vand.u32 %v4746, 4294901760
  %v5053 = vsub.f32 %v4746, %v5052
  %v5054 = vand.u32 %v5053, 4294901760
  %5055 = vmatmul.mubr.f32.gmra.mrb[0].mxu0 %v5054
  %v5056 = vpop.f32.mrb[0].mxu0
  %v5057 = vadd.f32 %v4981, %v5056
  %v5058 = vpop.f32.mrb[0].mxu0
  %v5059 = vadd.f32 %v4983, %v5058
  %5060 = vdwg.mxu0
  %v5061 = vand.u32 %v236, 4294901760
  %v5062 = vsub.f32 %v236, %v5061
  %v5063 = vand.u32 %v5062, 4294901760
  %5064 = vmatprep.subr.mxu0 %v5063
  %v5065 = vand.u32 %v235, 4294901760
  %v5066 = vsub.f32 %v235, %v5065
  %v5067 = vand.u32 %v5066, 4294901760
  %5068 = vmatpush1.msra.mxu0 %v5067
  %5069 = vmatprep.subr.mxu0 0.0
  %5070 = vmatpush1.msra.mxu0 0.0
  %5071 = vmatprep.subr.mxu0 0.0
  %5072 = vmatpush1.msra.mxu0 0.0
  %5073 = vmatprep.subr.mxu0 0.0
  %5074 = vmatpush1.msra.mxu0 0.0
  %5075 = vmatprep.subr.mxu0 0.0
  %5076 = vmatpush1.msra.mxu0 0.0
  %5077 = vmatprep.subr.mxu0 0.0
  %5078 = vmatpush1.msra.mxu0 0.0
  %5079 = vmatprep.subr.mxu0 0.0
  %5080 = vmatpush1.msra.mxu0 0.0
  %5081 = vmatprep.subr.mxu0 0.0
  %5082 = vmatpush1.msra.mxu0 0.0
  %5083 = vmatprep.subr.mxu0 0.0
  %5084 = vmatpush1.msra.mxu0 0.0
  %5085 = vmatprep.subr.mxu0 0.0
  %5086 = vmatpush1.msra.mxu0 0.0
  %5087 = vmatprep.subr.mxu0 0.0
  %5088 = vmatpush1.msra.mxu0 0.0
  %5089 = vmatprep.subr.mxu0 0.0
  %5090 = vmatpush1.msra.mxu0 0.0
  %5091 = vmatprep.subr.mxu0 0.0
  %5092 = vmatpush1.msra.mxu0 0.0
  %5093 = vmatprep.subr.mxu0 0.0
  %5094 = vmatpush1.msra.mxu0 0.0
  %5095 = vmatprep.subr.mxu0 0.0
  %5096 = vmatpush1.msra.mxu0 0.0
  %5097 = vmatprep.subr.mxu0 0.0
  %5098 = vmatpush1.msra.mxu0 0.0
  %5099 = vmatprep.subr.mxu0 0.0
  %5100 = vmatpush1.msra.mxu0 0.0
  %5101 = vmatprep.subr.mxu0 0.0
  %5102 = vmatpush1.msra.mxu0 0.0
  %5103 = vmatprep.subr.mxu0 0.0
  %5104 = vmatpush1.msra.mxu0 0.0
  %5105 = vmatprep.subr.mxu0 0.0
  %5106 = vmatpush1.msra.mxu0 0.0
  %5107 = vmatprep.subr.mxu0 0.0
  %5108 = vmatpush1.msra.mxu0 0.0
  %5109 = vmatprep.subr.mxu0 0.0
  %5110 = vmatpush1.msra.mxu0 0.0
  %5111 = vmatprep.subr.mxu0 0.0
  %5112 = vmatpush1.msra.mxu0 0.0
  %5113 = vmatprep.subr.mxu0 0.0
  %5114 = vmatpush1.msra.mxu0 0.0
  %5115 = vmatprep.subr.mxu0 0.0
  %5116 = vmatpush1.msra.mxu0 0.0
  %5117 = vmatprep.subr.mxu0 0.0
  %5118 = vmatpush1.msra.mxu0 0.0
  %5119 = vmatprep.subr.mxu0 0.0
  %5120 = vmatpush1.msra.mxu0 0.0
  %5121 = vmatprep.subr.mxu0 0.0
  %5122 = vmatpush1.msra.mxu0 0.0
  %5123 = vmatprep.subr.mxu0 0.0
  %5124 = vmatpush1.msra.mxu0 0.0
  %5125 = vmatprep.subr.mxu0 0.0
  %5126 = vmatpush1.msra.mxu0 0.0
  %5127 = vmatprep.subr.mxu0 0.0
  %5128 = vmatpush1.msra.mxu0 0.0
  %5129 = vmatprep.subr.mxu0 0.0
  %5130 = vmatpush1.msra.mxu0 0.0
  %5131 = vmatprep.mubr.f32.mxu0 0.0
  %v5132 = vand.u32 %v4746, 4294901760
  %5133 = vmatmul.mubr.f32.gmra.mrb[0].mxu0 %v5132
  %v5134 = vpop.f32.mrb[0].mxu0
  %v5135 = vadd.f32 %v5057, %v5134
  %v5136 = vpop.f32.mrb[0].mxu0
  %v5137 = vadd.f32 %v5059, %v5136
  %5138 = vdwg.mxu0
  %v5139 = vand.u32 %v236, 4294901760
  %5140 = vmatprep.subr.mxu0 %v5139
  %v5141 = vand.u32 %v235, 4294901760
  %5142 = vmatpush1.msra.mxu0 %v5141
  %5143 = vmatprep.subr.mxu0 0.0
  %5144 = vmatpush1.msra.mxu0 0.0
  %5145 = vmatprep.subr.mxu0 0.0
  %5146 = vmatpush1.msra.mxu0 0.0
  %5147 = vmatprep.subr.mxu0 0.0
  %5148 = vmatpush1.msra.mxu0 0.0
  %5149 = vmatprep.subr.mxu0 0.0
  %5150 = vmatpush1.msra.mxu0 0.0
  %5151 = vmatprep.subr.mxu0 0.0
  %5152 = vmatpush1.msra.mxu0 0.0
  %5153 = vmatprep.subr.mxu0 0.0
  %5154 = vmatpush1.msra.mxu0 0.0
  %5155 = vmatprep.subr.mxu0 0.0
  %5156 = vmatpush1.msra.mxu0 0.0
  %5157 = vmatprep.subr.mxu0 0.0
  %5158 = vmatpush1.msra.mxu0 0.0
  %5159 = vmatprep.subr.mxu0 0.0
  %5160 = vmatpush1.msra.mxu0 0.0
  %5161 = vmatprep.subr.mxu0 0.0
  %5162 = vmatpush1.msra.mxu0 0.0
  %5163 = vmatprep.subr.mxu0 0.0
  %5164 = vmatpush1.msra.mxu0 0.0
  %5165 = vmatprep.subr.mxu0 0.0
  %5166 = vmatpush1.msra.mxu0 0.0
  %5167 = vmatprep.subr.mxu0 0.0
  %5168 = vmatpush1.msra.mxu0 0.0
  %5169 = vmatprep.subr.mxu0 0.0
  %5170 = vmatpush1.msra.mxu0 0.0
  %5171 = vmatprep.subr.mxu0 0.0
  %5172 = vmatpush1.msra.mxu0 0.0
  %5173 = vmatprep.subr.mxu0 0.0
  %5174 = vmatpush1.msra.mxu0 0.0
  %5175 = vmatprep.subr.mxu0 0.0
  %5176 = vmatpush1.msra.mxu0 0.0
  %5177 = vmatprep.subr.mxu0 0.0
  %5178 = vmatpush1.msra.mxu0 0.0
  %5179 = vmatprep.subr.mxu0 0.0
  %5180 = vmatpush1.msra.mxu0 0.0
  %5181 = vmatprep.subr.mxu0 0.0
  %5182 = vmatpush1.msra.mxu0 0.0
  %5183 = vmatprep.subr.mxu0 0.0
  %5184 = vmatpush1.msra.mxu0 0.0
  %5185 = vmatprep.subr.mxu0 0.0
  %5186 = vmatpush1.msra.mxu0 0.0
  %5187 = vmatprep.subr.mxu0 0.0
  %5188 = vmatpush1.msra.mxu0 0.0
  %5189 = vmatprep.subr.mxu0 0.0
  %5190 = vmatpush1.msra.mxu0 0.0
  %5191 = vmatprep.subr.mxu0 0.0
  %5192 = vmatpush1.msra.mxu0 0.0
  %5193 = vmatprep.subr.mxu0 0.0
  %5194 = vmatpush1.msra.mxu0 0.0
  %5195 = vmatprep.subr.mxu0 0.0
  %5196 = vmatpush1.msra.mxu0 0.0
  %5197 = vmatprep.subr.mxu0 0.0
  %5198 = vmatpush1.msra.mxu0 0.0
  %5199 = vmatprep.subr.mxu0 0.0
  %5200 = vmatpush1.msra.mxu0 0.0
  %5201 = vmatprep.subr.mxu0 0.0
  %5202 = vmatpush1.msra.mxu0 0.0
  %5203 = vmatprep.subr.mxu0 0.0
  %5204 = vmatpush1.msra.mxu0 0.0
  %5205 = vmatprep.mubr.f32.mxu0 0.0
  %v5206 = vand.u32 %v4746, 4294901760
  %5207 = vmatmul.mubr.f32.gmra.mrb[0].mxu0 %v5206
  %v5208 = vpop.f32.mrb[0].mxu0
  %v5209 = vadd.f32 %v5135, %v5208
  %v5210 = vpop.f32.mrb[0].mxu0
  %v5211 = vadd.f32 %v5137, %v5210
  %5212 = vdwg.mxu0
  %v5213 = vmul.f32 %v4739, %v4744
  %v5215 = vsel %vm1990, %v5213, 0
  %v5217 = vand.u32 %v236, 4294901760
  %5218 = vmatprep.subr.mxu0 %v5217
  %v5219 = vand.u32 %v235, 4294901760
  %5220 = vmatpush1.msra.mxu0 %v5219
  %5221 = vmatprep.subr.mxu0 0.0
  %5222 = vmatpush1.msra.mxu0 0.0
  %5223 = vmatprep.subr.mxu0 0.0
  %5224 = vmatpush1.msra.mxu0 0.0
  %5225 = vmatprep.subr.mxu0 0.0
  %5226 = vmatpush1.msra.mxu0 0.0
  %5227 = vmatprep.subr.mxu0 0.0
  %5228 = vmatpush1.msra.mxu0 0.0
  %5229 = vmatprep.subr.mxu0 0.0
  %5230 = vmatpush1.msra.mxu0 0.0
  %5231 = vmatprep.subr.mxu0 0.0
  %5232 = vmatpush1.msra.mxu0 0.0
  %5233 = vmatprep.subr.mxu0 0.0
  %5234 = vmatpush1.msra.mxu0 0.0
  %5235 = vmatprep.subr.mxu0 0.0
  %5236 = vmatpush1.msra.mxu0 0.0
  %5237 = vmatprep.subr.mxu0 0.0
  %5238 = vmatpush1.msra.mxu0 0.0
  %5239 = vmatprep.subr.mxu0 0.0
  %5240 = vmatpush1.msra.mxu0 0.0
  %5241 = vmatprep.subr.mxu0 0.0
  %5242 = vmatpush1.msra.mxu0 0.0
  %5243 = vmatprep.subr.mxu0 0.0
  %5244 = vmatpush1.msra.mxu0 0.0
  %5245 = vmatprep.subr.mxu0 0.0
  %5246 = vmatpush1.msra.mxu0 0.0
  %5247 = vmatprep.subr.mxu0 0.0
  %5248 = vmatpush1.msra.mxu0 0.0
  %5249 = vmatprep.subr.mxu0 0.0
  %5250 = vmatpush1.msra.mxu0 0.0
  %5251 = vmatprep.subr.mxu0 0.0
  %5252 = vmatpush1.msra.mxu0 0.0
  %5253 = vmatprep.subr.mxu0 0.0
  %5254 = vmatpush1.msra.mxu0 0.0
  %5255 = vmatprep.subr.mxu0 0.0
  %5256 = vmatpush1.msra.mxu0 0.0
  %5257 = vmatprep.subr.mxu0 0.0
  %5258 = vmatpush1.msra.mxu0 0.0
  %5259 = vmatprep.subr.mxu0 0.0
  %5260 = vmatpush1.msra.mxu0 0.0
  %5261 = vmatprep.subr.mxu0 0.0
  %5262 = vmatpush1.msra.mxu0 0.0
  %5263 = vmatprep.subr.mxu0 0.0
  %5264 = vmatpush1.msra.mxu0 0.0
  %5265 = vmatprep.subr.mxu0 0.0
  %5266 = vmatpush1.msra.mxu0 0.0
  %5267 = vmatprep.subr.mxu0 0.0
  %5268 = vmatpush1.msra.mxu0 0.0
  %5269 = vmatprep.subr.mxu0 0.0
  %5270 = vmatpush1.msra.mxu0 0.0
  %5271 = vmatprep.subr.mxu0 0.0
  %5272 = vmatpush1.msra.mxu0 0.0
  %5273 = vmatprep.subr.mxu0 0.0
  %5274 = vmatpush1.msra.mxu0 0.0
  %5275 = vmatprep.subr.mxu0 0.0
  %5276 = vmatpush1.msra.mxu0 0.0
  %5277 = vmatprep.subr.mxu0 0.0
  %5278 = vmatpush1.msra.mxu0 0.0
  %5279 = vmatprep.subr.mxu0 0.0
  %5280 = vmatpush1.msra.mxu0 0.0
  %5281 = vmatprep.subr.mxu0 0.0
  %5282 = vmatpush1.msra.mxu0 0.0
  %5283 = vmatprep.mubr.f32.mxu0 0.0
  %v5284 = vand.u32 %v5215, 4294901760
  %v5285 = vsub.f32 %v5215, %v5284
  %v5286 = vand.u32 %v5285, 4294901760
  %v5287 = vsub.f32 %v5285, %v5286
  %v5288 = vand.u32 %v5287, 4294901760
  %5289 = vmatmul.mubr.f32.gmra.mrb[0].mxu0 %v5288
  %v5290 = vpop.f32.mrb[0].mxu0
  %v5291 = vadd.f32 0.0, %v5290
  %v5292 = vpop.f32.mrb[0].mxu0
  %v5293 = vadd.f32 0.0, %v5292
  %5294 = vdwg.mxu0
  %v5295 = vand.u32 %v236, 4294901760
  %v5296 = vsub.f32 %v236, %v5295
  %v5297 = vand.u32 %v5296, 4294901760
  %v5298 = vsub.f32 %v5296, %v5297
  %v5299 = vand.u32 %v5298, 4294901760
  %5300 = vmatprep.subr.mxu0 %v5299
  %v5301 = vand.u32 %v235, 4294901760
  %v5302 = vsub.f32 %v235, %v5301
  %v5303 = vand.u32 %v5302, 4294901760
  %v5304 = vsub.f32 %v5302, %v5303
  %v5305 = vand.u32 %v5304, 4294901760
  %5306 = vmatpush1.msra.mxu0 %v5305
  %5307 = vmatprep.subr.mxu0 0.0
  %5308 = vmatpush1.msra.mxu0 0.0
  %5309 = vmatprep.subr.mxu0 0.0
  %5310 = vmatpush1.msra.mxu0 0.0
  %5311 = vmatprep.subr.mxu0 0.0
  %5312 = vmatpush1.msra.mxu0 0.0
  %5313 = vmatprep.subr.mxu0 0.0
  %5314 = vmatpush1.msra.mxu0 0.0
  %5315 = vmatprep.subr.mxu0 0.0
  %5316 = vmatpush1.msra.mxu0 0.0
  %5317 = vmatprep.subr.mxu0 0.0
  %5318 = vmatpush1.msra.mxu0 0.0
  %5319 = vmatprep.subr.mxu0 0.0
  %5320 = vmatpush1.msra.mxu0 0.0
  %5321 = vmatprep.subr.mxu0 0.0
  %5322 = vmatpush1.msra.mxu0 0.0
  %5323 = vmatprep.subr.mxu0 0.0
  %5324 = vmatpush1.msra.mxu0 0.0
  %5325 = vmatprep.subr.mxu0 0.0
  %5326 = vmatpush1.msra.mxu0 0.0
  %5327 = vmatprep.subr.mxu0 0.0
  %5328 = vmatpush1.msra.mxu0 0.0
  %5329 = vmatprep.subr.mxu0 0.0
  %5330 = vmatpush1.msra.mxu0 0.0
  %5331 = vmatprep.subr.mxu0 0.0
  %5332 = vmatpush1.msra.mxu0 0.0
  %5333 = vmatprep.subr.mxu0 0.0
  %5334 = vmatpush1.msra.mxu0 0.0
  %5335 = vmatprep.subr.mxu0 0.0
  %5336 = vmatpush1.msra.mxu0 0.0
  %5337 = vmatprep.subr.mxu0 0.0
  %5338 = vmatpush1.msra.mxu0 0.0
  %5339 = vmatprep.subr.mxu0 0.0
  %5340 = vmatpush1.msra.mxu0 0.0
  %5341 = vmatprep.subr.mxu0 0.0
  %5342 = vmatpush1.msra.mxu0 0.0
  %5343 = vmatprep.subr.mxu0 0.0
  %5344 = vmatpush1.msra.mxu0 0.0
  %5345 = vmatprep.subr.mxu0 0.0
  %5346 = vmatpush1.msra.mxu0 0.0
  %5347 = vmatprep.subr.mxu0 0.0
  %5348 = vmatpush1.msra.mxu0 0.0
  %5349 = vmatprep.subr.mxu0 0.0
  %5350 = vmatpush1.msra.mxu0 0.0
  %5351 = vmatprep.subr.mxu0 0.0
  %5352 = vmatpush1.msra.mxu0 0.0
  %5353 = vmatprep.subr.mxu0 0.0
  %5354 = vmatpush1.msra.mxu0 0.0
  %5355 = vmatprep.subr.mxu0 0.0
  %5356 = vmatpush1.msra.mxu0 0.0
  %5357 = vmatprep.subr.mxu0 0.0
  %5358 = vmatpush1.msra.mxu0 0.0
  %5359 = vmatprep.subr.mxu0 0.0
  %5360 = vmatpush1.msra.mxu0 0.0
  %5361 = vmatprep.subr.mxu0 0.0
  %5362 = vmatpush1.msra.mxu0 0.0
  %5363 = vmatprep.subr.mxu0 0.0
  %5364 = vmatpush1.msra.mxu0 0.0
  %5365 = vmatprep.subr.mxu0 0.0
  %5366 = vmatpush1.msra.mxu0 0.0
  %5367 = vmatprep.subr.mxu0 0.0
  %5368 = vmatpush1.msra.mxu0 0.0
  %5369 = vmatprep.mubr.f32.mxu0 0.0
  %v5370 = vand.u32 %v5215, 4294901760
  %5371 = vmatmul.mubr.f32.gmra.mrb[0].mxu0 %v5370
  %v5372 = vpop.f32.mrb[0].mxu0
  %v5373 = vadd.f32 %v5291, %v5372
  %v5374 = vpop.f32.mrb[0].mxu0
  %v5375 = vadd.f32 %v5293, %v5374
  %5376 = vdwg.mxu0
  %v5377 = vand.u32 %v236, 4294901760
  %v5378 = vsub.f32 %v236, %v5377
  %5379 = vmatprep.subr.mxu0 %v5378
  %v5380 = vand.u32 %v235, 4294901760
  %v5381 = vsub.f32 %v235, %v5380
  %5382 = vmatpush1.msra.mxu0 %v5381
  %5383 = vmatprep.subr.mxu0 0.0
  %5384 = vmatpush1.msra.mxu0 0.0
  %5385 = vmatprep.subr.mxu0 0.0
  %5386 = vmatpush1.msra.mxu0 0.0
  %5387 = vmatprep.subr.mxu0 0.0
  %5388 = vmatpush1.msra.mxu0 0.0
  %5389 = vmatprep.subr.mxu0 0.0
  %5390 = vmatpush1.msra.mxu0 0.0
  %5391 = vmatprep.subr.mxu0 0.0
  %5392 = vmatpush1.msra.mxu0 0.0
  %5393 = vmatprep.subr.mxu0 0.0
  %5394 = vmatpush1.msra.mxu0 0.0
  %5395 = vmatprep.subr.mxu0 0.0
  %5396 = vmatpush1.msra.mxu0 0.0
  %5397 = vmatprep.subr.mxu0 0.0
  %5398 = vmatpush1.msra.mxu0 0.0
  %5399 = vmatprep.subr.mxu0 0.0
  %5400 = vmatpush1.msra.mxu0 0.0
  %5401 = vmatprep.subr.mxu0 0.0
  %5402 = vmatpush1.msra.mxu0 0.0
  %5403 = vmatprep.subr.mxu0 0.0
  %5404 = vmatpush1.msra.mxu0 0.0
  %5405 = vmatprep.subr.mxu0 0.0
  %5406 = vmatpush1.msra.mxu0 0.0
  %5407 = vmatprep.subr.mxu0 0.0
  %5408 = vmatpush1.msra.mxu0 0.0
  %5409 = vmatprep.subr.mxu0 0.0
  %5410 = vmatpush1.msra.mxu0 0.0
  %5411 = vmatprep.subr.mxu0 0.0
  %5412 = vmatpush1.msra.mxu0 0.0
  %5413 = vmatprep.subr.mxu0 0.0
  %5414 = vmatpush1.msra.mxu0 0.0
  %5415 = vmatprep.subr.mxu0 0.0
  %5416 = vmatpush1.msra.mxu0 0.0
  %5417 = vmatprep.subr.mxu0 0.0
  %5418 = vmatpush1.msra.mxu0 0.0
  %5419 = vmatprep.subr.mxu0 0.0
  %5420 = vmatpush1.msra.mxu0 0.0
  %5421 = vmatprep.subr.mxu0 0.0
  %5422 = vmatpush1.msra.mxu0 0.0
  %5423 = vmatprep.subr.mxu0 0.0
  %5424 = vmatpush1.msra.mxu0 0.0
  %5425 = vmatprep.subr.mxu0 0.0
  %5426 = vmatpush1.msra.mxu0 0.0
  %5427 = vmatprep.subr.mxu0 0.0
  %5428 = vmatpush1.msra.mxu0 0.0
  %5429 = vmatprep.subr.mxu0 0.0
  %5430 = vmatpush1.msra.mxu0 0.0
  %5431 = vmatprep.subr.mxu0 0.0
  %5432 = vmatpush1.msra.mxu0 0.0
  %5433 = vmatprep.subr.mxu0 0.0
  %5434 = vmatpush1.msra.mxu0 0.0
  %5435 = vmatprep.subr.mxu0 0.0
  %5436 = vmatpush1.msra.mxu0 0.0
  %5437 = vmatprep.subr.mxu0 0.0
  %5438 = vmatpush1.msra.mxu0 0.0
  %5439 = vmatprep.subr.mxu0 0.0
  %5440 = vmatpush1.msra.mxu0 0.0
  %5441 = vmatprep.subr.mxu0 0.0
  %5442 = vmatpush1.msra.mxu0 0.0
  %5443 = vmatprep.subr.mxu0 0.0
  %5444 = vmatpush1.msra.mxu0 0.0
  %5445 = vmatprep.mubr.f32.mxu0 0.0
  %v5446 = vand.u32 %v5215, 4294901760
  %v5447 = vsub.f32 %v5215, %v5446
  %5448 = vmatmul.mubr.f32.gmra.mrb[0].mxu0 %v5447
  %v5449 = vpop.f32.mrb[0].mxu0
  %v5450 = vadd.f32 %v5373, %v5449
  %v5451 = vpop.f32.mrb[0].mxu0
  %v5452 = vadd.f32 %v5375, %v5451
  %5453 = vdwg.mxu0
  %v5454 = vand.u32 %v236, 4294901760
  %5455 = vmatprep.subr.mxu0 %v5454
  %v5456 = vand.u32 %v235, 4294901760
  %5457 = vmatpush1.msra.mxu0 %v5456
  %5458 = vmatprep.subr.mxu0 0.0
  %5459 = vmatpush1.msra.mxu0 0.0
  %5460 = vmatprep.subr.mxu0 0.0
  %5461 = vmatpush1.msra.mxu0 0.0
  %5462 = vmatprep.subr.mxu0 0.0
  %5463 = vmatpush1.msra.mxu0 0.0
  %5464 = vmatprep.subr.mxu0 0.0
  %5465 = vmatpush1.msra.mxu0 0.0
  %5466 = vmatprep.subr.mxu0 0.0
  %5467 = vmatpush1.msra.mxu0 0.0
  %5468 = vmatprep.subr.mxu0 0.0
  %5469 = vmatpush1.msra.mxu0 0.0
  %5470 = vmatprep.subr.mxu0 0.0
  %5471 = vmatpush1.msra.mxu0 0.0
  %5472 = vmatprep.subr.mxu0 0.0
  %5473 = vmatpush1.msra.mxu0 0.0
  %5474 = vmatprep.subr.mxu0 0.0
  %5475 = vmatpush1.msra.mxu0 0.0
  %5476 = vmatprep.subr.mxu0 0.0
  %5477 = vmatpush1.msra.mxu0 0.0
  %5478 = vmatprep.subr.mxu0 0.0
  %5479 = vmatpush1.msra.mxu0 0.0
  %5480 = vmatprep.subr.mxu0 0.0
  %5481 = vmatpush1.msra.mxu0 0.0
  %5482 = vmatprep.subr.mxu0 0.0
  %5483 = vmatpush1.msra.mxu0 0.0
  %5484 = vmatprep.subr.mxu0 0.0
  %5485 = vmatpush1.msra.mxu0 0.0
  %5486 = vmatprep.subr.mxu0 0.0
  %5487 = vmatpush1.msra.mxu0 0.0
  %5488 = vmatprep.subr.mxu0 0.0
  %5489 = vmatpush1.msra.mxu0 0.0
  %5490 = vmatprep.subr.mxu0 0.0
  %5491 = vmatpush1.msra.mxu0 0.0
  %5492 = vmatprep.subr.mxu0 0.0
  %5493 = vmatpush1.msra.mxu0 0.0
  %5494 = vmatprep.subr.mxu0 0.0
  %5495 = vmatpush1.msra.mxu0 0.0
  %5496 = vmatprep.subr.mxu0 0.0
  %5497 = vmatpush1.msra.mxu0 0.0
  %5498 = vmatprep.subr.mxu0 0.0
  %5499 = vmatpush1.msra.mxu0 0.0
  %5500 = vmatprep.subr.mxu0 0.0
  %5501 = vmatpush1.msra.mxu0 0.0
  %5502 = vmatprep.subr.mxu0 0.0
  %5503 = vmatpush1.msra.mxu0 0.0
  %5504 = vmatprep.subr.mxu0 0.0
  %5505 = vmatpush1.msra.mxu0 0.0
  %5506 = vmatprep.subr.mxu0 0.0
  %5507 = vmatpush1.msra.mxu0 0.0
  %5508 = vmatprep.subr.mxu0 0.0
  %5509 = vmatpush1.msra.mxu0 0.0
  %5510 = vmatprep.subr.mxu0 0.0
  %5511 = vmatpush1.msra.mxu0 0.0
  %5512 = vmatprep.subr.mxu0 0.0
  %5513 = vmatpush1.msra.mxu0 0.0
  %5514 = vmatprep.subr.mxu0 0.0
  %5515 = vmatpush1.msra.mxu0 0.0
  %5516 = vmatprep.subr.mxu0 0.0
  %5517 = vmatpush1.msra.mxu0 0.0
  %5518 = vmatprep.subr.mxu0 0.0
  %5519 = vmatpush1.msra.mxu0 0.0
  %5520 = vmatprep.mubr.f32.mxu0 0.0
  %v5521 = vand.u32 %v5215, 4294901760
  %v5522 = vsub.f32 %v5215, %v5521
  %v5523 = vand.u32 %v5522, 4294901760
  %5524 = vmatmul.mubr.f32.gmra.mrb[0].mxu0 %v5523
  %v5525 = vpop.f32.mrb[0].mxu0
  %v5526 = vadd.f32 %v5450, %v5525
  %v5527 = vpop.f32.mrb[0].mxu0
  %v5528 = vadd.f32 %v5452, %v5527
  %5529 = vdwg.mxu0
  %v5530 = vand.u32 %v236, 4294901760
  %v5531 = vsub.f32 %v236, %v5530
  %v5532 = vand.u32 %v5531, 4294901760
  %5533 = vmatprep.subr.mxu0 %v5532
  %v5534 = vand.u32 %v235, 4294901760
  %v5535 = vsub.f32 %v235, %v5534
  %v5536 = vand.u32 %v5535, 4294901760
  %5537 = vmatpush1.msra.mxu0 %v5536
  %5538 = vmatprep.subr.mxu0 0.0
  %5539 = vmatpush1.msra.mxu0 0.0
  %5540 = vmatprep.subr.mxu0 0.0
  %5541 = vmatpush1.msra.mxu0 0.0
  %5542 = vmatprep.subr.mxu0 0.0
  %5543 = vmatpush1.msra.mxu0 0.0
  %5544 = vmatprep.subr.mxu0 0.0
  %5545 = vmatpush1.msra.mxu0 0.0
  %5546 = vmatprep.subr.mxu0 0.0
  %5547 = vmatpush1.msra.mxu0 0.0
  %5548 = vmatprep.subr.mxu0 0.0
  %5549 = vmatpush1.msra.mxu0 0.0
  %5550 = vmatprep.subr.mxu0 0.0
  %5551 = vmatpush1.msra.mxu0 0.0
  %5552 = vmatprep.subr.mxu0 0.0
  %5553 = vmatpush1.msra.mxu0 0.0
  %5554 = vmatprep.subr.mxu0 0.0
  %5555 = vmatpush1.msra.mxu0 0.0
  %5556 = vmatprep.subr.mxu0 0.0
  %5557 = vmatpush1.msra.mxu0 0.0
  %5558 = vmatprep.subr.mxu0 0.0
  %5559 = vmatpush1.msra.mxu0 0.0
  %5560 = vmatprep.subr.mxu0 0.0
  %5561 = vmatpush1.msra.mxu0 0.0
  %5562 = vmatprep.subr.mxu0 0.0
  %5563 = vmatpush1.msra.mxu0 0.0
  %5564 = vmatprep.subr.mxu0 0.0
  %5565 = vmatpush1.msra.mxu0 0.0
  %5566 = vmatprep.subr.mxu0 0.0
  %5567 = vmatpush1.msra.mxu0 0.0
  %5568 = vmatprep.subr.mxu0 0.0
  %5569 = vmatpush1.msra.mxu0 0.0
  %5570 = vmatprep.subr.mxu0 0.0
  %5571 = vmatpush1.msra.mxu0 0.0
  %5572 = vmatprep.subr.mxu0 0.0
  %5573 = vmatpush1.msra.mxu0 0.0
  %5574 = vmatprep.subr.mxu0 0.0
  %5575 = vmatpush1.msra.mxu0 0.0
  %5576 = vmatprep.subr.mxu0 0.0
  %5577 = vmatpush1.msra.mxu0 0.0
  %5578 = vmatprep.subr.mxu0 0.0
  %5579 = vmatpush1.msra.mxu0 0.0
  %5580 = vmatprep.subr.mxu0 0.0
  %5581 = vmatpush1.msra.mxu0 0.0
  %5582 = vmatprep.subr.mxu0 0.0
  %5583 = vmatpush1.msra.mxu0 0.0
  %5584 = vmatprep.subr.mxu0 0.0
  %5585 = vmatpush1.msra.mxu0 0.0
  %5586 = vmatprep.subr.mxu0 0.0
  %5587 = vmatpush1.msra.mxu0 0.0
  %5588 = vmatprep.subr.mxu0 0.0
  %5589 = vmatpush1.msra.mxu0 0.0
  %5590 = vmatprep.subr.mxu0 0.0
  %5591 = vmatpush1.msra.mxu0 0.0
  %5592 = vmatprep.subr.mxu0 0.0
  %5593 = vmatpush1.msra.mxu0 0.0
  %5594 = vmatprep.subr.mxu0 0.0
  %5595 = vmatpush1.msra.mxu0 0.0
  %5596 = vmatprep.subr.mxu0 0.0
  %5597 = vmatpush1.msra.mxu0 0.0
  %5598 = vmatprep.subr.mxu0 0.0
  %5599 = vmatpush1.msra.mxu0 0.0
  %5600 = vmatprep.mubr.f32.mxu0 0.0
  %v5601 = vand.u32 %v5215, 4294901760
  %5602 = vmatmul.mubr.f32.gmra.mrb[0].mxu0 %v5601
  %v5603 = vpop.f32.mrb[0].mxu0
  %v5604 = vadd.f32 %v5526, %v5603
  %v5605 = vpop.f32.mrb[0].mxu0
  %v5606 = vadd.f32 %v5528, %v5605
  %5607 = vdwg.mxu0
  %v5608 = vand.u32 %v236, 4294901760
  %5609 = vmatprep.subr.mxu0 %v5608
  %v5610 = vand.u32 %v235, 4294901760
  %5611 = vmatpush1.msra.mxu0 %v5610
  %5612 = vmatprep.subr.mxu0 0.0
  %5613 = vmatpush1.msra.mxu0 0.0
  %5614 = vmatprep.subr.mxu0 0.0
  %5615 = vmatpush1.msra.mxu0 0.0
  %5616 = vmatprep.subr.mxu0 0.0
  %5617 = vmatpush1.msra.mxu0 0.0
  %5618 = vmatprep.subr.mxu0 0.0
  %5619 = vmatpush1.msra.mxu0 0.0
  %5620 = vmatprep.subr.mxu0 0.0
  %5621 = vmatpush1.msra.mxu0 0.0
  %5622 = vmatprep.subr.mxu0 0.0
  %5623 = vmatpush1.msra.mxu0 0.0
  %5624 = vmatprep.subr.mxu0 0.0
  %5625 = vmatpush1.msra.mxu0 0.0
  %5626 = vmatprep.subr.mxu0 0.0
  %5627 = vmatpush1.msra.mxu0 0.0
  %5628 = vmatprep.subr.mxu0 0.0
  %5629 = vmatpush1.msra.mxu0 0.0
  %5630 = vmatprep.subr.mxu0 0.0
  %5631 = vmatpush1.msra.mxu0 0.0
  %5632 = vmatprep.subr.mxu0 0.0
  %5633 = vmatpush1.msra.mxu0 0.0
  %5634 = vmatprep.subr.mxu0 0.0
  %5635 = vmatpush1.msra.mxu0 0.0
  %5636 = vmatprep.subr.mxu0 0.0
  %5637 = vmatpush1.msra.mxu0 0.0
  %5638 = vmatprep.subr.mxu0 0.0
  %5639 = vmatpush1.msra.mxu0 0.0
  %5640 = vmatprep.subr.mxu0 0.0
  %5641 = vmatpush1.msra.mxu0 0.0
  %5642 = vmatprep.subr.mxu0 0.0
  %5643 = vmatpush1.msra.mxu0 0.0
  %5644 = vmatprep.subr.mxu0 0.0
  %5645 = vmatpush1.msra.mxu0 0.0
  %5646 = vmatprep.subr.mxu0 0.0
  %5647 = vmatpush1.msra.mxu0 0.0
  %5648 = vmatprep.subr.mxu0 0.0
  %5649 = vmatpush1.msra.mxu0 0.0
  %5650 = vmatprep.subr.mxu0 0.0
  %5651 = vmatpush1.msra.mxu0 0.0
  %5652 = vmatprep.subr.mxu0 0.0
  %5653 = vmatpush1.msra.mxu0 0.0
  %5654 = vmatprep.subr.mxu0 0.0
  %5655 = vmatpush1.msra.mxu0 0.0
  %5656 = vmatprep.subr.mxu0 0.0
  %5657 = vmatpush1.msra.mxu0 0.0
  %5658 = vmatprep.subr.mxu0 0.0
  %5659 = vmatpush1.msra.mxu0 0.0
  %5660 = vmatprep.subr.mxu0 0.0
  %5661 = vmatpush1.msra.mxu0 0.0
  %5662 = vmatprep.subr.mxu0 0.0
  %5663 = vmatpush1.msra.mxu0 0.0
  %5664 = vmatprep.subr.mxu0 0.0
  %5665 = vmatpush1.msra.mxu0 0.0
  %5666 = vmatprep.subr.mxu0 0.0
  %5667 = vmatpush1.msra.mxu0 0.0
  %5668 = vmatprep.subr.mxu0 0.0
  %5669 = vmatpush1.msra.mxu0 0.0
  %5670 = vmatprep.subr.mxu0 0.0
  %5671 = vmatpush1.msra.mxu0 0.0
  %5672 = vmatprep.subr.mxu0 0.0
  %5673 = vmatpush1.msra.mxu0 0.0
  %5674 = vmatprep.mubr.f32.mxu0 0.0
  %v5675 = vand.u32 %v5215, 4294901760
  %5676 = vmatmul.mubr.f32.gmra.mrb[0].mxu0 %v5675
  %v5677 = vpop.f32.mrb[0].mxu0
  %v5678 = vadd.f32 %v5604, %v5677
  %v5679 = vpop.f32.mrb[0].mxu0
  %v5680 = vadd.f32 %v5606, %v5679
  %5681 = vdwg.mxu0
  %v5684 = vcombine.low %v5209, %v5211
  %v5686 = vunpack.c.l.s4 1983009808
  %v5687 = vunpack.c.0.s8 %v5686
  %v5688 = vlaneseq
  %v5689 = vshrl.u32 %v5688, 7
  %v5690 = vsub.s32 %v5687, %v5689
  %v5691 = vrot.slane %v5684, %v5690
  %v5693 = vmul.f32 %v24, %v5691
  %v5696 = vcombine.low %v5678, %v5680
  %v5698 = vunpack.c.l.s4 1983009808
  %v5699 = vunpack.c.0.s8 %v5698
  %v5700 = vlaneseq
  %v5701 = vshrl.u32 %v5700, 7
  %v5702 = vsub.s32 %v5699, %v5701
  %v5703 = vrot.slane %v5696, %v5702
  %v5705 = vsub.f32 %v5693, %v5703
  %v5707 = vlaneseq
  %v5708 = vshrl.u32 %v5707, 7
  %v5709 = vsub.s32 0, %v5708
  %v5710 = vrot.slane %v2990, %v5709
  %v5711 = vlaneseq
  %v5712 = vshrl.u32 %v5711, 7
  %v5713 = vsub.s32 1, %v5712
  %v5714 = vrot.slane %v2990, %v5713
  %v5715 = vcombine.low %v5710, %v5714
  %v5717 = vunpack.c.l.s4 1983009808
  %v5718 = vunpack.c.0.s8 %v5717
  %v5719 = vlaneseq
  %v5720 = vshrl.u32 %v5719, 7
  %v5721 = vsub.s32 %v5718, %v5720
  %v5722 = vrot.slane %v5715, %v5721
  %v5724 = vmul.f32 %v5705, %v5722
  %v5726 = vlaneseq
  %v5727 = vshrl.u32 %v5726, 7
  %v5728 = vsub.s32 0, %v5727
  %v5729 = vrot.slane %v2991, %v5728
  %v5730 = vlaneseq
  %v5731 = vshrl.u32 %v5730, 7
  %v5732 = vsub.s32 1, %v5731
  %v5733 = vrot.slane %v2991, %v5732
  %v5734 = vcombine.low %v5729, %v5733
  %v5736 = vunpack.c.l.s4 1983009808
  %v5737 = vunpack.c.0.s8 %v5736
  %v5738 = vlaneseq
  %v5739 = vshrl.u32 %v5738, 7
  %v5740 = vsub.s32 %v5737, %v5739
  %v5741 = vrot.slane %v5734, %v5740
  %v5743 = vadd.f32 %v5724, %v5741
  %5744 = vst [vmem:[%s6] sm:$0xf] %v2989
  %5745 = vst [vmem:[%s6 + $0x4] sm:$0xf] %v5743
  // Predicated region
  $region26: #{a_call__.1} parent=0 // pred_check
    _
  $region27: #{a_call__.1} parent=0 // pred_check_branch
    %5747 = sbr.rel (0) target = $region29
  $region28: #{a_call__.1} parent=0 // pred_region
    _
  $region29: #{a_call__.1} parent=0 // pred_fallthru
    _
  // Predicated region
  $region30: #{a_call__.1} parent=0 // pred_check
    _
  $region31: #{a_call__.1} parent=0 // pred_check_branch
    %5749 = sbr.rel (0) target = $region33
  $region32: #{a_call__.1} parent=0 // pred_region
    _
  $region33: #{a_call__.1} parent=0 // pred_fallthru
    _

</llo_original>
